<compile_context>
chip_gen: v5e
topology: v5e:2x2
jax: 0.10.0
libtpu: 0.0.40
codegen_flags: <defaults>
</compile_context>

<pallas_src>
import functools

import jax
import jax.numpy as jnp
import numpy as np
from jax import lax
from jax.experimental import pallas as pl
from jax.experimental.pallas import tpu as pltpu


# ----------------------------------------------------------------------------
# Fused BasicBlock kernel: one whole (padded, flattened) image per grid step.
# ----------------------------------------------------------------------------
def _basic_block_kernel(xp_ref, w1_ref, w2_ref, b1_ref, b2_ref, o_ref, mid_ref,
                        *, H, W, C, TH):
    Wp = W + 2                      # padded row width
    Mb = TH * Wp                    # wide-layout rows per in-kernel band
    n_bands = H // TH

    # Zero the 'mid' padding positions that the masked stores below never
    # touch (row 0, (1,0), rows H+1..H+2).  ~2*Wp rows -> trivial; done every
    # grid step so it is safe under megacore grid splitting (scratch is
    # per-core and not guaranteed zero-initialized).
    mid_ref[pl.ds(0, Wp + 1), :] = jnp.zeros((Wp + 1, C), jnp.bfloat16)
    mid_ref[pl.ds((H + 1) * Wp + 1, 2 * Wp - 1), :] = (
        jnp.zeros((2 * Wp - 1, C), jnp.bfloat16))

    # Valid-column mask for wide rows.  Band starts are multiples of Wp, so
    # one mask serves every band (hoisted out of the loops).
    col = lax.broadcasted_iota(jnp.int32, (Mb, 1), 0) % Wp
    valid = col < W

    def conv3x3(src_ref, w_ref, o0):
        """3x3 conv on the flat padded layout: 3 matmuls with K = 3*C.

        Wide output row o = y*Wp + x needs src[o + ky*Wp + kx]; each tap is a
        contiguous flat slice (zero-copy), the 3 kx taps are concatenated
        along lanes to feed a K=3*C MXU contraction.  Accumulation happens in
        registers (local value), not in a VMEM ref.
        """
        acc = None
        for ky in range(3):
            base = o0 + ky * Wp
            patch = jnp.concatenate(
                [src_ref[pl.ds(base + kx, Mb), :] for kx in range(3)],
                axis=-1)
            d = jnp.dot(patch, w_ref[ky], preferred_element_type=jnp.float32)
            acc = d if acc is None else acc + d
        return acc

    # ---- conv1 + folded BN1 + ReLU  ->  mid (bf16, padded layout) ----------
    # Wide row o maps to mid position o + Wp + 1 (i.e. padded coords
    # (y+1, x+1)); junk columns are masked to zero so the shifted contiguous
    # store writes exactly the zeros conv2's padding columns require.
    for b in range(n_bands):
        o0 = b * Mb
        h = jnp.maximum(conv3x3(xp_ref, w1_ref, o0) + b1_ref[...], 0.0)
        h = jnp.where(valid, h, 0.0)
        mid_ref[pl.ds(o0 + Wp + 1, Mb), :] = h.astype(jnp.bfloat16)

    # ---- conv2 + folded BN2 + identity residual + ReLU  ->  wide output ----
    for b in range(n_bands):
        o0 = b * Mb
        acc = conv3x3(mid_ref, w2_ref, o0)
        res = xp_ref[pl.ds(o0 + Wp + 1, Mb), :].astype(jnp.float32)
        out = jnp.maximum(acc + b2_ref[...] + res, 0.0)
        o_ref[pl.ds(o0, Mb), :] = out.astype(o_ref.dtype)


# ----------------------------------------------------------------------------
# Wrapper: NCHW in / NCHW out (matches the PyTorch module).
# ----------------------------------------------------------------------------
def _vmem_limit_bytes():
    # Generation-aware budget (v7x has 64 MiB physical vs 128 MiB on v5e/v6e).
    try:
        return int(pltpu.get_tpu_info().vmem_capacity_bytes // 2)
    except Exception:  # pragma: no cover - conservative fallback
        return 32 * 1024 * 1024


def basic_block_forward(x_nchw, params, *, acc_budget_bytes=96 * 1024):
    w1, w2, b1, b2 = params["w1"], params["w2"], params["b1"], params["b2"]
    C = w1.shape[-1]
    assert w1.shape == (3, 3 * C, C), "weights must be packed as (3, 3*C, C)"

    x = jnp.transpose(x_nchw, (0, 2, 3, 1)).astype(jnp.float32)   # NHWC
    N, H, W, Cin = x.shape
    assert Cin == C, "identity residual requires inplanes == planes, stride 1"

    Wp = W + 2
    # Pad 1 row top / 2 rows bottom (extra bottom row keeps the flat tap reads
    # of the junk columns in-bounds), 1 column each side; cast to bf16 once
    # (halves input HBM traffic, removes the in-kernel cast pass); flatten the
    # padded spatial dims so every tap is a contiguous slice in the kernel.
    xp = jnp.pad(x, ((0, 0), (1, 2), (1, 1), (0, 0))).astype(jnp.bfloat16)
    xp = xp.reshape(N, (H + 3) * Wp, C)

    # In-kernel band height: bound the live f32 accumulator (register
    # accumulation) to ~acc_budget; whole image in one band at demo/ResNet
    # sizes.  Degenerates to TH=1 only for enormous W*C (still correct).
    TH = 1
    for cand in range(H, 0, -1):
        if H % cand == 0 and cand * Wp * C * 4 <= acc_budget_bytes:
            TH = cand
            break

    kernel = functools.partial(_basic_block_kernel, H=H, W=W, C=C, TH=TH)

    out_wide = pl.pallas_call(
        kernel,
        out_shape=jax.ShapeDtypeStruct((N, H * Wp, C), jnp.float32),
        grid=(N,),
        in_specs=[
            # Whole padded image per step; pipelining prefetches image n+1.
            pl.BlockSpec((None, (H + 3) * Wp, C), lambda n: (n, 0, 0)),
            pl.BlockSpec((3, 3 * C, C), lambda n: (0, 0, 0)),   # w1 (resident)
            pl.BlockSpec((3, 3 * C, C), lambda n: (0, 0, 0)),   # w2 (resident)
            pl.BlockSpec((1, C), lambda n: (0, 0)),             # bias1
            pl.BlockSpec((1, C), lambda n: (0, 0)),             # bias2
        ],
        out_specs=pl.BlockSpec((None, H * Wp, C), lambda n: (n, 0, 0)),
        scratch_shapes=[
            pltpu.VMEM(((H + 3) * Wp, C), jnp.bfloat16),        # mid (conv1 out)
        ],
        compiler_params=pltpu.CompilerParams(
            dimension_semantics=("parallel",),
            vmem_limit_bytes=_vmem_limit_bytes(),
        ),
    )(xp, w1, w2, b1, b2)

    # Drop the 2 junk pad columns of the wide layout, back to NCHW.
    out = out_wide.reshape(N, H, Wp, C)[:, :, :W, :]
    return jnp.transpose(out, (0, 3, 1, 2))


# ----------------------------------------------------------------------------
# Parameter construction (PyTorch-style raw params) + host-side folding.
# ----------------------------------------------------------------------------
def make_raw_params(key, planes, eps=1e-5):
    C = planes
    ks = jax.random.split(key, 10)
    return {
        "w1": 0.1 * jax.random.normal(ks[0], (C, C, 3, 3), jnp.float32),  # OIHW
        "w2": 0.1 * jax.random.normal(ks[1], (C, C, 3, 3), jnp.float32),
        "g1": 1.0 + 0.1 * jax.random.normal(ks[2], (C,), jnp.float32),
        "beta1": 0.1 * jax.random.normal(ks[3], (C,), jnp.float32),
        "m1": 0.05 * jax.random.normal(ks[4], (C,), jnp.float32),
        "v1": 1.0 + 0.1 * jax.random.uniform(ks[5], (C,), jnp.float32),
        "g2": 1.0 + 0.1 * jax.random.normal(ks[6], (C,), jnp.float32),
        "beta2": 0.1 * jax.random.normal(ks[7], (C,), jnp.float32),
        "m2": 0.05 * jax.random.normal(ks[8], (C,), jnp.float32),
        "v2": 1.0 + 0.1 * jax.random.uniform(ks[9], (C,), jnp.float32),
        "eps": eps,
    }


def fold_params(raw):
    """Fold eval-mode BN scale into bf16 conv weights packed (3, 3*C, C)."""
    def fold(w_oihw, gamma, beta, mean, var):
        scale = gamma / jnp.sqrt(var + raw["eps"])            # (Cout,)
        bias = beta - mean * scale
        w_hwio = jnp.transpose(w_oihw, (2, 3, 1, 0)) * scale  # (3,3,Cin,Cout)
        kh, kw, cin, cout = w_hwio.shape
        # (ky, kx*Cin, Cout): matches the kernel's kx-concatenated patches.
        w_packed = w_hwio.reshape(kh, kw * cin, cout).astype(jnp.bfloat16)
        return w_packed, bias.reshape(1, cout).astype(jnp.float32)

    w1, b1 = fold(raw["w1"], raw["g1"], raw["beta1"], raw["m1"], raw["v1"])
    w2, b2 = fold(raw["w2"], raw["g2"], raw["beta2"], raw["m2"], raw["v2"])
    return {"w1": w1, "b1": b1, "w2": w2, "b2": b2}


# ----------------------------------------------------------------------------
# Pure-JAX reference (f32 everywhere) for validation.
# ----------------------------------------------------------------------------
def reference_forward(x_nchw, raw):
    x = jnp.transpose(x_nchw, (0, 2, 3, 1))
    dn = ("NHWC", "HWIO", "NHWC")

    def conv_bn(v, w_oihw, gamma, beta, mean, var):
        w = jnp.transpose(w_oihw, (2, 3, 1, 0))
        y = lax.conv_general_dilated(v, w, (1, 1), "SAME",
                                     dimension_numbers=dn)
        scale = gamma / jnp.sqrt(var + raw["eps"])
        return y * scale + (beta - mean * scale)

    out = jnp.maximum(conv_bn(x, raw["w1"], raw["g1"], raw["beta1"],
                              raw["m1"], raw["v1"]), 0.0)
    out = conv_bn(out, raw["w2"], raw["g2"], raw["beta2"],
                  raw["m2"], raw["v2"])
    out = jnp.maximum(out + x, 0.0)
    return jnp.transpose(out, (0, 3, 1, 2))


if __name__ == "__main__":
    # downsample=None + residual add  =>  inplanes == planes, stride == 1.
    N, C, H, W = 2, 64, 16, 16
    key = jax.random.PRNGKey(0)
    kx_, kp = jax.random.split(key)

    x = jax.random.normal(kx_, (N, C, H, W), jnp.float32)   # NCHW like PyTorch
    raw = make_raw_params(kp, planes=C)
    params = fold_params(raw)

    out = jax.block_until_ready(basic_block_forward(x, params))
    ref = jax.block_until_ready(reference_forward(x, raw))

    # bf16 MXU feed + bf16 intermediate/residual => tolerant vs f32 reference.
    np.testing.assert_allclose(np.asarray(out), np.asarray(ref),
                               rtol=5e-2, atol=1e-1)
    print("KERNEL_OK")
</pallas_src>

<mosaic_0001>
module attributes {stable_mosaic.version = 11 : i64} {
  func.func @_basic_block_kernel(%arg0: i32, %arg1: memref<1x342x64xbf16, #tpu.memory_space<vmem>>, %arg2: memref<3x192x64xbf16, #tpu.memory_space<vmem>>, %arg3: memref<3x192x64xbf16, #tpu.memory_space<vmem>>, %arg4: memref<1x64xf32, #tpu.memory_space<vmem>>, %arg5: memref<1x64xf32, #tpu.memory_space<vmem>>, %arg6: memref<1x288x64xf32, #tpu.memory_space<vmem>>, %arg7: memref<342x64xbf16, #tpu.memory_space<vmem>>) attributes {dimension_semantics = [#tpu.dimension_semantics<parallel>], iteration_bounds = array<i64: 2>, scalar_prefetch = 0 : i64, scratch_operands = 1 : i64, tpu.core_type = #tpu.core_type<tc>, window_params = [{transform_indices = @transform_0, window_bounds = array<i64: 1, 342, 64>}, {pipeline_mode = #tpu.pipeline_mode<synchronous>, transform_indices = @transform_1, window_bounds = array<i64: 3, 192, 64>}, {pipeline_mode = #tpu.pipeline_mode<synchronous>, transform_indices = @transform_2, window_bounds = array<i64: 3, 192, 64>}, {pipeline_mode = #tpu.pipeline_mode<synchronous>, transform_indices = @transform_3, window_bounds = array<i64: 1, 64>}, {pipeline_mode = #tpu.pipeline_mode<synchronous>, transform_indices = @transform_4, window_bounds = array<i64: 1, 64>}, {transform_indices = @transform_5, window_bounds = array<i64: 1, 288, 64>}]} {
    %cst = arith.constant 0.000000e+00 : bf16
    %0 = vector.broadcast %cst : bf16 to vector<19x64xbf16>
    %c0 = arith.constant 0 : index
    %c0_0 = arith.constant 0 : index
    %1 = vector.load %arg7[%c0, %c0_0] : memref<342x64xbf16, #tpu.memory_space<vmem>>, vector<19x64xbf16>
    tpu.vector_store %arg7[%c0, %c0_0], %0 {strides = array<i32>} : memref<342x64xbf16, #tpu.memory_space<vmem>>, vector<19x64xbf16>,
    %cst_1 = arith.constant 0.000000e+00 : bf16
    %2 = vector.broadcast %cst_1 : bf16 to vector<35x64xbf16>
    %c307 = arith.constant 307 : index
    %c0_2 = arith.constant 0 : index
    %3 = vector.load %arg7[%c307, %c0_2] : memref<342x64xbf16, #tpu.memory_space<vmem>>, vector<35x64xbf16>
    tpu.vector_store %arg7[%c307, %c0_2], %2 {strides = array<i32>} : memref<342x64xbf16, #tpu.memory_space<vmem>>, vector<35x64xbf16>,
    %4 = tpu.iota {dimensions = array<i32: 0>} : vector<288x1xi32>
    %c18_i32 = arith.constant 18 : i32
    %c0_i32 = arith.constant 0 : i32
    %5 = arith.cmpi eq, %c18_i32, %c0_i32 : i32
    %c1_i32 = arith.constant 1 : i32
    %6 = arith.select %5, %c1_i32, %c18_i32 : i32
    %7 = vector.broadcast %6 : i32 to vector<288x1xi32>
    %8 = arith.remsi %4, %7 : vector<288x1xi32>
    %c0_i32_3 = arith.constant 0 : i32
    %9 = vector.broadcast %c0_i32_3 : i32 to vector<288x1xi32>
    %10 = arith.cmpi ne, %8, %9 : vector<288x1xi32>
    %c0_i32_4 = arith.constant 0 : i32
    %11 = vector.broadcast %c0_i32_4 : i32 to vector<288x1xi32>
    %12 = arith.cmpi slt, %8, %11 : vector<288x1xi32>
    %c0_i32_5 = arith.constant 0 : i32
    %13 = arith.cmpi slt, %6, %c0_i32_5 : i32
    %14 = vector.broadcast %13 : i1 to vector<288x1xi1>
    %15 = vector.broadcast %14 : vector<288x1xi1> to vector<288x1xi1>
    %16 = arith.xori %12, %15 : vector<288x1xi1>
    %17 = arith.andi %16, %10 : vector<288x1xi1>
    %18 = vector.broadcast %6 : i32 to vector<288x1xi32>
    %19 = arith.addi %8, %18 : vector<288x1xi32>
    %20 = arith.select %17, %19, %8 : vector<288x1xi1>, vector<288x1xi32>
    %c16_i32 = arith.constant 16 : i32
    %21 = vector.broadcast %c16_i32 : i32 to vector<288x1xi32>
    %22 = arith.cmpi slt, %20, %21 : vector<288x1xi32>
    %c0_6 = arith.constant 0 : index
    %c0_7 = arith.constant 0 : index
    %c0_8 = arith.constant 0 : index
    %23 = vector.load %arg1[%c0_6, %c0_7, %c0_8] : memref<1x342x64xbf16, #tpu.memory_space<vmem>>, vector<1x288x64xbf16>
    %24 = vector.shape_cast %23 : vector<1x288x64xbf16> to vector<288x64xbf16>
    %c0_9 = arith.constant 0 : index
    %c1 = arith.constant 1 : index
    %c0_10 = arith.constant 0 : index
    %25 = vector.load %arg1[%c0_9, %c1, %c0_10] : memref<1x342x64xbf16, #tpu.memory_space<vmem>>, vector<1x288x64xbf16>
    %26 = vector.shape_cast %25 : vector<1x288x64xbf16> to vector<288x64xbf16>
    %c0_11 = arith.constant 0 : index
    %c2 = arith.constant 2 : index
    %c0_12 = arith.constant 0 : index
    %27 = vector.load %arg1[%c0_11, %c2, %c0_12] : memref<1x342x64xbf16, #tpu.memory_space<vmem>>, vector<1x288x64xbf16>
    %28 = vector.shape_cast %27 : vector<1x288x64xbf16> to vector<288x64xbf16>
    %29 = tpu.concatenate %24, %26, %28 in 1 : vector<288x64xbf16>, vector<288x64xbf16>, vector<288x64xbf16> -> vector<288x192xbf16>
    %c0_13 = arith.constant 0 : index
    %c0_14 = arith.constant 0 : index
    %c0_15 = arith.constant 0 : index
    %30 = vector.load %arg2[%c0_13, %c0_14, %c0_15] : memref<3x192x64xbf16, #tpu.memory_space<vmem>>, vector<1x192x64xbf16>
    %31 = vector.shape_cast %30 : vector<1x192x64xbf16> to vector<192x64xbf16>
    %cst_16 = arith.constant dense<0.000000e+00> : vector<288x64xf32>
    %32 = tpu.matmul %29, %31, %cst_16 {dimension_numbers = #tpu.dot_dimension_numbers<[1], [0], [0], [1], [0, 0, 1, 1], [], []>} : vector<288x192xbf16>, vector<192x64xbf16>, vector<288x64xf32> -> vector<288x64xf32>
    %c0_17 = arith.constant 0 : index
    %c18 = arith.constant 18 : index
    %c0_18 = arith.constant 0 : index
    %33 = vector.load %arg1[%c0_17, %c18, %c0_18] : memref<1x342x64xbf16, #tpu.memory_space<vmem>>, vector<1x288x64xbf16>
    %34 = vector.shape_cast %33 : vector<1x288x64xbf16> to vector<288x64xbf16>
    %c0_19 = arith.constant 0 : index
    %c19 = arith.constant 19 : index
    %c0_20 = arith.constant 0 : index
    %35 = vector.load %arg1[%c0_19, %c19, %c0_20] : memref<1x342x64xbf16, #tpu.memory_space<vmem>>, vector<1x288x64xbf16>
    %36 = vector.shape_cast %35 : vector<1x288x64xbf16> to vector<288x64xbf16>
    %c0_21 = arith.constant 0 : index
    %c20 = arith.constant 20 : index
    %c0_22 = arith.constant 0 : index
    %37 = vector.load %arg1[%c0_21, %c20, %c0_22] : memref<1x342x64xbf16, #tpu.memory_space<vmem>>, vector<1x288x64xbf16>
    %38 = vector.shape_cast %37 : vector<1x288x64xbf16> to vector<288x64xbf16>
    %39 = tpu.concatenate %34, %36, %38 in 1 : vector<288x64xbf16>, vector<288x64xbf16>, vector<288x64xbf16> -> vector<288x192xbf16>
    %c1_23 = arith.constant 1 : index
    %c0_24 = arith.constant 0 : index
    %c0_25 = arith.constant 0 : index
    %40 = vector.load %arg2[%c1_23, %c0_24, %c0_25] : memref<3x192x64xbf16, #tpu.memory_space<vmem>>, vector<1x192x64xbf16>
    %41 = vector.shape_cast %40 : vector<1x192x64xbf16> to vector<192x64xbf16>
    %cst_26 = arith.constant dense<0.000000e+00> : vector<288x64xf32>
    %42 = tpu.matmul %39, %41, %cst_26 {dimension_numbers = #tpu.dot_dimension_numbers<[1], [0], [0], [1], [0, 0, 1, 1], [], []>} : vector<288x192xbf16>, vector<192x64xbf16>, vector<288x64xf32> -> vector<288x64xf32>
    %43 = arith.addf %32, %42 : vector<288x64xf32>
    %c0_27 = arith.constant 0 : index
    %c36 = arith.constant 36 : index
    %c0_28 = arith.constant 0 : index
    %44 = vector.load %arg1[%c0_27, %c36, %c0_28] : memref<1x342x64xbf16, #tpu.memory_space<vmem>>, vector<1x288x64xbf16>
    %45 = vector.shape_cast %44 : vector<1x288x64xbf16> to vector<288x64xbf16>
    %c0_29 = arith.constant 0 : index
    %c37 = arith.constant 37 : index
    %c0_30 = arith.constant 0 : index
    %46 = vector.load %arg1[%c0_29, %c37, %c0_30] : memref<1x342x64xbf16, #tpu.memory_space<vmem>>, vector<1x288x64xbf16>
    %47 = vector.shape_cast %46 : vector<1x288x64xbf16> to vector<288x64xbf16>
    %c0_31 = arith.constant 0 : index
    %c38 = arith.constant 38 : index
    %c0_32 = arith.constant 0 : index
    %48 = vector.load %arg1[%c0_31, %c38, %c0_32] : memref<1x342x64xbf16, #tpu.memory_space<vmem>>, vector<1x288x64xbf16>
    %49 = vector.shape_cast %48 : vector<1x288x64xbf16> to vector<288x64xbf16>
    %50 = tpu.concatenate %45, %47, %49 in 1 : vector<288x64xbf16>, vector<288x64xbf16>, vector<288x64xbf16> -> vector<288x192xbf16>
    %c2_33 = arith.constant 2 : index
    %c0_34 = arith.constant 0 : index
    %c0_35 = arith.constant 0 : index
    %51 = vector.load %arg2[%c2_33, %c0_34, %c0_35] : memref<3x192x64xbf16, #tpu.memory_space<vmem>>, vector<1x192x64xbf16>
    %52 = vector.shape_cast %51 : vector<1x192x64xbf16> to vector<192x64xbf16>
    %cst_36 = arith.constant dense<0.000000e+00> : vector<288x64xf32>
    %53 = tpu.matmul %50, %52, %cst_36 {dimension_numbers = #tpu.dot_dimension_numbers<[1], [0], [0], [1], [0, 0, 1, 1], [], []>} : vector<288x192xbf16>, vector<192x64xbf16>, vector<288x64xf32> -> vector<288x64xf32>
    %54 = arith.addf %43, %53 : vector<288x64xf32>
    %c0_37 = arith.constant 0 : index
    %c0_38 = arith.constant 0 : index
    %55 = vector.load %arg4[%c0_37, %c0_38] : memref<1x64xf32, #tpu.memory_space<vmem>>, vector<1x64xf32>
    %56 = vector.broadcast %55 : vector<1x64xf32> to vector<288x64xf32>
    %57 = arith.addf %54, %56 : vector<288x64xf32>
    %cst_39 = arith.constant 0.000000e+00 : f32
    %58 = vector.broadcast %cst_39 : f32 to vector<288x64xf32>
    %59 = arith.maximumf %57, %58 : vector<288x64xf32>
    %cst_40 = arith.constant 0.000000e+00 : f32
    %60 = vector.shape_cast %22 : vector<288x1xi1> to vector<288x1xi1>
    %61 = vector.broadcast %60 : vector<288x1xi1> to vector<288x64xi1>
    %62 = vector.broadcast %cst_40 : f32 to vector<288x64xf32>
    %63 = arith.select %61, %59, %62 : vector<288x64xi1>, vector<288x64xf32>
    %64 = arith.truncf %63 : vector<288x64xf32> to vector<288x64xbf16>
    %c19_41 = arith.constant 19 : index
    %c0_42 = arith.constant 0 : index
    %65 = vector.load %arg7[%c19_41, %c0_42] : memref<342x64xbf16, #tpu.memory_space<vmem>>, vector<288x64xbf16>
    tpu.vector_store %arg7[%c19_41, %c0_42], %64 {strides = array<i32>} : memref<342x64xbf16, #tpu.memory_space<vmem>>, vector<288x64xbf16>,
    %c0_43 = arith.constant 0 : index
    %c0_44 = arith.constant 0 : index
    %66 = vector.load %arg7[%c0_43, %c0_44] : memref<342x64xbf16, #tpu.memory_space<vmem>>, vector<288x64xbf16>
    %c1_45 = arith.constant 1 : index
    %c0_46 = arith.constant 0 : index
    %67 = vector.load %arg7[%c1_45, %c0_46] : memref<342x64xbf16, #tpu.memory_space<vmem>>, vector<288x64xbf16>
    %c2_47 = arith.constant 2 : index
    %c0_48 = arith.constant 0 : index
    %68 = vector.load %arg7[%c2_47, %c0_48] : memref<342x64xbf16, #tpu.memory_space<vmem>>, vector<288x64xbf16>
    %69 = tpu.concatenate %66, %67, %68 in 1 : vector<288x64xbf16>, vector<288x64xbf16>, vector<288x64xbf16> -> vector<288x192xbf16>
    %c0_49 = arith.constant 0 : index
    %c0_50 = arith.constant 0 : index
    %c0_51 = arith.constant 0 : index
    %70 = vector.load %arg3[%c0_49, %c0_50, %c0_51] : memref<3x192x64xbf16, #tpu.memory_space<vmem>>, vector<1x192x64xbf16>
    %71 = vector.shape_cast %70 : vector<1x192x64xbf16> to vector<192x64xbf16>
    %cst_52 = arith.constant dense<0.000000e+00> : vector<288x64xf32>
    %72 = tpu.matmul %69, %71, %cst_52 {dimension_numbers = #tpu.dot_dimension_numbers<[1], [0], [0], [1], [0, 0, 1, 1], [], []>} : vector<288x192xbf16>, vector<192x64xbf16>, vector<288x64xf32> -> vector<288x64xf32>
    %c18_53 = arith.constant 18 : index
    %c0_54 = arith.constant 0 : index
    %73 = vector.load %arg7[%c18_53, %c0_54] : memref<342x64xbf16, #tpu.memory_space<vmem>>, vector<288x64xbf16>
    %c19_55 = arith.constant 19 : index
    %c0_56 = arith.constant 0 : index
    %74 = vector.load %arg7[%c19_55, %c0_56] : memref<342x64xbf16, #tpu.memory_space<vmem>>, vector<288x64xbf16>
    %c20_57 = arith.constant 20 : index
    %c0_58 = arith.constant 0 : index
    %75 = vector.load %arg7[%c20_57, %c0_58] : memref<342x64xbf16, #tpu.memory_space<vmem>>, vector<288x64xbf16>
    %76 = tpu.concatenate %73, %74, %75 in 1 : vector<288x64xbf16>, vector<288x64xbf16>, vector<288x64xbf16> -> vector<288x192xbf16>
    %c1_59 = arith.constant 1 : index
    %c0_60 = arith.constant 0 : index
    %c0_61 = arith.constant 0 : index
    %77 = vector.load %arg3[%c1_59, %c0_60, %c0_61] : memref<3x192x64xbf16, #tpu.memory_space<vmem>>, vector<1x192x64xbf16>
    %78 = vector.shape_cast %77 : vector<1x192x64xbf16> to vector<192x64xbf16>
    %cst_62 = arith.constant dense<0.000000e+00> : vector<288x64xf32>
    %79 = tpu.matmul %76, %78, %cst_62 {dimension_numbers = #tpu.dot_dimension_numbers<[1], [0], [0], [1], [0, 0, 1, 1], [], []>} : vector<288x192xbf16>, vector<192x64xbf16>, vector<288x64xf32> -> vector<288x64xf32>
    %80 = arith.addf %72, %79 : vector<288x64xf32>
    %c36_63 = arith.constant 36 : index
    %c0_64 = arith.constant 0 : index
    %81 = vector.load %arg7[%c36_63, %c0_64] : memref<342x64xbf16, #tpu.memory_space<vmem>>, vector<288x64xbf16>
    %c37_65 = arith.constant 37 : index
    %c0_66 = arith.constant 0 : index
    %82 = vector.load %arg7[%c37_65, %c0_66] : memref<342x64xbf16, #tpu.memory_space<vmem>>, vector<288x64xbf16>
    %c38_67 = arith.constant 38 : index
    %c0_68 = arith.constant 0 : index
    %83 = vector.load %arg7[%c38_67, %c0_68] : memref<342x64xbf16, #tpu.memory_space<vmem>>, vector<288x64xbf16>
    %84 = tpu.concatenate %81, %82, %83 in 1 : vector<288x64xbf16>, vector<288x64xbf16>, vector<288x64xbf16> -> vector<288x192xbf16>
    %c2_69 = arith.constant 2 : index
    %c0_70 = arith.constant 0 : index
    %c0_71 = arith.constant 0 : index
    %85 = vector.load %arg3[%c2_69, %c0_70, %c0_71] : memref<3x192x64xbf16, #tpu.memory_space<vmem>>, vector<1x192x64xbf16>
    %86 = vector.shape_cast %85 : vector<1x192x64xbf16> to vector<192x64xbf16>
    %cst_72 = arith.constant dense<0.000000e+00> : vector<288x64xf32>
    %87 = tpu.matmul %84, %86, %cst_72 {dimension_numbers = #tpu.dot_dimension_numbers<[1], [0], [0], [1], [0, 0, 1, 1], [], []>} : vector<288x192xbf16>, vector<192x64xbf16>, vector<288x64xf32> -> vector<288x64xf32>
    %88 = arith.addf %80, %87 : vector<288x64xf32>
    %c0_73 = arith.constant 0 : index
    %c19_74 = arith.constant 19 : index
    %c0_75 = arith.constant 0 : index
    %89 = vector.load %arg1[%c0_73, %c19_74, %c0_75] : memref<1x342x64xbf16, #tpu.memory_space<vmem>>, vector<1x288x64xbf16>
    %90 = vector.shape_cast %89 : vector<1x288x64xbf16> to vector<288x64xbf16>
    %91 = arith.extf %90 : vector<288x64xbf16> to vector<288x64xf32>
    %c0_76 = arith.constant 0 : index
    %c0_77 = arith.constant 0 : index
    %92 = vector.load %arg5[%c0_76, %c0_77] : memref<1x64xf32, #tpu.memory_space<vmem>>, vector<1x64xf32>
    %93 = vector.broadcast %92 : vector<1x64xf32> to vector<288x64xf32>
    %94 = arith.addf %88, %93 : vector<288x64xf32>
    %95 = arith.addf %94, %91 : vector<288x64xf32>
    %cst_78 = arith.constant 0.000000e+00 : f32
    %96 = vector.broadcast %cst_78 : f32 to vector<288x64xf32>
    %97 = arith.maximumf %95, %96 : vector<288x64xf32>
    %c0_79 = arith.constant 0 : index
    %c0_80 = arith.constant 0 : index
    %c0_81 = arith.constant 0 : index
    %98 = vector.load %arg6[%c0_79, %c0_80, %c0_81] : memref<1x288x64xf32, #tpu.memory_space<vmem>>, vector<1x288x64xf32>
    %99 = vector.shape_cast %98 : vector<1x288x64xf32> to vector<288x64xf32>
    %100 = vector.shape_cast %97 : vector<288x64xf32> to vector<1x288x64xf32>
    tpu.vector_store %arg6[%c0_79, %c0_80, %c0_81], %100 {strides = array<i32>} : memref<1x288x64xf32, #tpu.memory_space<vmem>>, vector<1x288x64xf32>,
    return
  }
  func.func @transform_0(%arg0: i32) -> (i32, i32, i32) {
    %c0_i32 = arith.constant 0 : i32
    %c0_i32_0 = arith.constant 0 : i32
    %c0_i32_1 = arith.constant 0 : i32
    return %arg0, %c0_i32, %c0_i32_0 : i32, i32, i32
  }
  func.func @transform_1(%arg0: i32) -> (i32, i32, i32) {
    %c0_i32 = arith.constant 0 : i32
    %c0_i32_0 = arith.constant 0 : i32
    %c0_i32_1 = arith.constant 0 : i32
    %c0_i32_2 = arith.constant 0 : i32
    return %c0_i32, %c0_i32_0, %c0_i32_1 : i32, i32, i32
  }
  func.func @transform_2(%arg0: i32) -> (i32, i32, i32) {
    %c0_i32 = arith.constant 0 : i32
    %c0_i32_0 = arith.constant 0 : i32
    %c0_i32_1 = arith.constant 0 : i32
    %c0_i32_2 = arith.constant 0 : i32
    return %c0_i32, %c0_i32_0, %c0_i32_1 : i32, i32, i32
  }
  func.func @transform_3(%arg0: i32) -> (i32, i32) {
    %c0_i32 = arith.constant 0 : i32
    %c0_i32_0 = arith.constant 0 : i32
    %c0_i32_1 = arith.constant 0 : i32
    return %c0_i32, %c0_i32_0 : i32, i32
  }
  func.func @transform_4(%arg0: i32) -> (i32, i32) {
    %c0_i32 = arith.constant 0 : i32
    %c0_i32_0 = arith.constant 0 : i32
    %c0_i32_1 = arith.constant 0 : i32
    return %c0_i32, %c0_i32_0 : i32, i32
  }
  func.func @transform_5(%arg0: i32) -> (i32, i32, i32) {
    %c0_i32 = arith.constant 0 : i32
    %c0_i32_0 = arith.constant 0 : i32
    %c0_i32_1 = arith.constant 0 : i32
    return %arg0, %c0_i32, %c0_i32_0 : i32, i32, i32
  }
}

</mosaic_0001>

<llo_original>
// kernel: tpu_custom_call.1
$region0: #{tpu_custom_call.1}
  #allocation0 [shape = 'u32[]', space=smem, size = 0x4, offset = 0x4, fixed_abs, tag = 'smem constant byte address 0x4 - core index']
  #allocation1 [shape = 'u32[72,128]{1,0:T(1,128)}', space=vmem, size = 0x9000, scoped, tag = 'internal scratch']
  #allocation2 [shape = 'bf16[342,64]{1,0:T(8,128)(2,1)}', space=vmem, size = 0x15800, scoped, tag = 'scratch operand']
  %s0 = inlined_call_operand.vmem [shape: bf16[2,342,64], index: 0, kind: input, shape index: {}]
  %s1 = inlined_call_operand.vmem [shape: bf16[3,192,64], index: 1, kind: input, shape index: {}]
  %s2 = inlined_call_operand.vmem [shape: bf16[3,192,64], index: 2, kind: input, shape index: {}]
  %s3 = inlined_call_operand.vmem [shape: f32[1,64], index: 3, kind: input, shape index: {}]
  %s4 = inlined_call_operand.vmem [shape: f32[1,64], index: 4, kind: input, shape index: {}]
  %s5 = inlined_call_operand.vmem [shape: f32[2,288,64], index: 5, kind: output, shape index: {}]
  %s6 = sld [smem:[#allocation0]]
  $region53: #{tpu_custom_call.1} parent=0
    _
  %s8 = ssub.s32 1, %s6
  %s9 = scalar_select 0, %s8, %s6
  loop: start=0, step=1, limit=4
  $region2: #{tpu_custom_call.1} parent=0 // loop_pre_header
    _
  $region3: #{tpu_custom_call.1} parent=0 // loop_header
    %s11 = sphi 0, %s15
    %p12 = scmp.ge.s32.totalorder %s11, 4
    %s21 = sphi 0, %s23
    %s24 = sphi 0, %s21
    %s25 = sphi 0, %s24
    %s41 = sphi 0, %s25
    %s45 = sphi 0, %s45
    %s47 = sphi 0, %s45
    %s48 = sphi 0, %s47
    %s62 = sphi 0, %s48
    %s66 = sphi 0, %s66
    %s68 = sphi 0, %s66
    %s69 = sphi 0, %s68
    %s83 = sphi 0, %s69
    %s87 = sphi 0, %s87
    %s89 = sphi 0, %s87
    %s90 = sphi 0, %s89
    %s104 = sphi 0, %s90
    %s108 = sphi 0, %s108
    %s110 = sphi 0, %s108
    %s111 = sphi 0, %s110
    %s125 = sphi 0, %s111
    %s131 = sphi 0, %s133
    %s134 = sphi 0, %s131
    %s135 = sphi 0, %s134
    %s151 = sphi 0, %s135
  $region4: #{tpu_custom_call.1} parent=0 // loop_header_branch
    %14 = sbr.rel (%p12) target = $region8
  $region5: #{tpu_custom_call.1} parent=0 // loop_body
    %s16 = ssub.s32 %s11, 1
    %s17 = ssub.s32 %s11, 2
    %s18 = sadd.s32 %s11, 1
    %s19 = ssub.s32 %s11, %s18
    %p20 = scmp.eq.s32.totalorder %s19, 0
    %s22 = sadd.s32 %s21, 1
    %s23 = scalar_select %p20, %s21, %s22
    %p26 = pneg %p20
    %p27 = scmp.eq.s32.totalorder %s11, 1
    %p28 = por %p26, %p27
    %p29 = scmp.ne.s32.totalorder %s21, %s24
    %p30 = scmp.eq.s32.totalorder %s11, 0
    %p31 = por %p29, %p30
    %p32 = scmp.ne.s32.totalorder %s21, %s24
    %p33 = scmp.eq.s32.totalorder %s16, 1
    %p34 = por %p32, %p33
    %p35 = scmp.ne.s32.totalorder %s24, %s25
    %p36 = scmp.eq.s32.totalorder %s16, 0
    %p37 = por %p35, %p36
    %p38 = scmp.ne.s32.totalorder %s24, %s25
    %p39 = scmp.eq.s32.totalorder %s17, 1
    %p40 = por %p38, %p39
    %p42 = scmp.ne.s32.totalorder %s25, %s41
    %p43 = scmp.eq.s32.totalorder %s17, 0
    %p44 = por %p42, %p43
    %s46 = sadd.s32 %s45, 1
    %p49 = scmp.eq.s32.totalorder %s11, 1
    %p50 = scmp.ne.s32.totalorder %s45, %s47
    %p51 = scmp.eq.s32.totalorder %s11, 0
    %p52 = por %p50, %p51
    %p53 = scmp.ne.s32.totalorder %s45, %s47
    %p54 = scmp.eq.s32.totalorder %s16, 1
    %p55 = por %p53, %p54
    %p56 = scmp.ne.s32.totalorder %s47, %s48
    %p57 = scmp.eq.s32.totalorder %s16, 0
    %p58 = por %p56, %p57
    %p59 = scmp.ne.s32.totalorder %s47, %s48
    %p60 = scmp.eq.s32.totalorder %s17, 1
    %p61 = por %p59, %p60
    %p63 = scmp.ne.s32.totalorder %s48, %s62
    %p64 = scmp.eq.s32.totalorder %s17, 0
    %p65 = por %p63, %p64
    %s67 = sadd.s32 %s66, 1
    %p70 = scmp.eq.s32.totalorder %s11, 1
    %p71 = scmp.ne.s32.totalorder %s66, %s68
    %p72 = scmp.eq.s32.totalorder %s11, 0
    %p73 = por %p71, %p72
    %p74 = scmp.ne.s32.totalorder %s66, %s68
    %p75 = scmp.eq.s32.totalorder %s16, 1
    %p76 = por %p74, %p75
    %p77 = scmp.ne.s32.totalorder %s68, %s69
    %p78 = scmp.eq.s32.totalorder %s16, 0
    %p79 = por %p77, %p78
    %p80 = scmp.ne.s32.totalorder %s68, %s69
    %p81 = scmp.eq.s32.totalorder %s17, 1
    %p82 = por %p80, %p81
    %p84 = scmp.ne.s32.totalorder %s69, %s83
    %p85 = scmp.eq.s32.totalorder %s17, 0
    %p86 = por %p84, %p85
    %s88 = sadd.s32 %s87, 1
    %p91 = scmp.eq.s32.totalorder %s11, 1
    %p92 = scmp.ne.s32.totalorder %s87, %s89
    %p93 = scmp.eq.s32.totalorder %s11, 0
    %p94 = por %p92, %p93
    %p95 = scmp.ne.s32.totalorder %s87, %s89
    %p96 = scmp.eq.s32.totalorder %s16, 1
    %p97 = por %p95, %p96
    %p98 = scmp.ne.s32.totalorder %s89, %s90
    %p99 = scmp.eq.s32.totalorder %s16, 0
    %p100 = por %p98, %p99
    %p101 = scmp.ne.s32.totalorder %s89, %s90
    %p102 = scmp.eq.s32.totalorder %s17, 1
    %p103 = por %p101, %p102
    %p105 = scmp.ne.s32.totalorder %s90, %s104
    %p106 = scmp.eq.s32.totalorder %s17, 0
    %p107 = por %p105, %p106
    %s109 = sadd.s32 %s108, 1
    %p112 = scmp.eq.s32.totalorder %s11, 1
    %p113 = scmp.ne.s32.totalorder %s108, %s110
    %p114 = scmp.eq.s32.totalorder %s11, 0
    %p115 = por %p113, %p114
    %p116 = scmp.ne.s32.totalorder %s108, %s110
    %p117 = scmp.eq.s32.totalorder %s16, 1
    %p118 = por %p116, %p117
    %p119 = scmp.ne.s32.totalorder %s110, %s111
    %p120 = scmp.eq.s32.totalorder %s16, 0
    %p121 = por %p119, %p120
    %p122 = scmp.ne.s32.totalorder %s110, %s111
    %p123 = scmp.eq.s32.totalorder %s17, 1
    %p124 = por %p122, %p123
    %p126 = scmp.ne.s32.totalorder %s111, %s125
    %p127 = scmp.eq.s32.totalorder %s17, 0
    %p128 = por %p126, %p127
    %s129 = ssub.s32 %s11, %s18
    %p130 = scmp.eq.s32.totalorder %s129, 0
    %s132 = sadd.s32 %s131, 1
    %s133 = scalar_select %p130, %s131, %s132
    %p136 = pneg %p130
    %p137 = scmp.eq.s32.totalorder %s11, 1
    %p138 = por %p136, %p137
    %p139 = scmp.ne.s32.totalorder %s131, %s134
    %p140 = scmp.eq.s32.totalorder %s11, 0
    %p141 = por %p139, %p140
    %p142 = scmp.ne.s32.totalorder %s131, %s134
    %p143 = scmp.eq.s32.totalorder %s16, 1
    %p144 = por %p142, %p143
    %p145 = scmp.ne.s32.totalorder %s134, %s135
    %p146 = scmp.eq.s32.totalorder %s16, 0
    %p147 = por %p145, %p146
    %p148 = scmp.ne.s32.totalorder %s134, %s135
    %p149 = scmp.eq.s32.totalorder %s17, 1
    %p150 = por %p148, %p149
    %p152 = scmp.ne.s32.totalorder %s135, %s151
    %p153 = scmp.eq.s32.totalorder %s17, 0
    %p154 = por %p152, %p153
    %p155 = scmp.le.s32.totalorder 1, %s11
    %p156 = scmp.lt.s32.totalorder %s11, 3
    %p157 = pnand %p155, %p156
    %p158 = pneg %p157
    // Predicated region
    $region9: #{tpu_custom_call.1} parent=5 // pred_check
      _
    $region10: #{tpu_custom_call.1} parent=5 // pred_check_branch
      %160 = sbr.rel (%p157) target = $region12
    $region11: #{tpu_custom_call.1} parent=5 // pred_region
      %s161 = ssub.s32 %s11, 1
      // Predicated region
      $region13: #{tpu_custom_call.1} parent=11 // pred_check
        %p162 = pneg %p58
      $region14: #{tpu_custom_call.1} parent=11 // pred_check_branch
        %164 = sbr.rel (%p162) target = $region16
      $region15: #{tpu_custom_call.1} parent=11 // pred_region
        _
      $region16: #{tpu_custom_call.1} parent=11 // pred_fallthru
        _
      // Predicated region
      $region17: #{tpu_custom_call.1} parent=11 // pred_check
        %p165 = pneg %p79
      $region18: #{tpu_custom_call.1} parent=11 // pred_check_branch
        %167 = sbr.rel (%p165) target = $region20
      $region19: #{tpu_custom_call.1} parent=11 // pred_region
        _
      $region20: #{tpu_custom_call.1} parent=11 // pred_fallthru
        _
      // Predicated region
      $region21: #{tpu_custom_call.1} parent=11 // pred_check
        %p168 = pneg %p100
      $region22: #{tpu_custom_call.1} parent=11 // pred_check_branch
        %170 = sbr.rel (%p168) target = $region24
      $region23: #{tpu_custom_call.1} parent=11 // pred_region
        _
      $region24: #{tpu_custom_call.1} parent=11 // pred_fallthru
        _
      // Predicated region
      $region25: #{tpu_custom_call.1} parent=11 // pred_check
        %p171 = pneg %p121
      $region26: #{tpu_custom_call.1} parent=11 // pred_check_branch
        %173 = sbr.rel (%p171) target = $region28
      $region27: #{tpu_custom_call.1} parent=11 // pred_region
        _
      $region28: #{tpu_custom_call.1} parent=11 // pred_fallthru
        _
    $region12: #{tpu_custom_call.1} parent=5 // pred_fallthru
      _
    %p174 = scmp.lt.s32.totalorder %s11, 2
    // Predicated region
    $region29: #{tpu_custom_call.1} parent=5 // pred_check
      %p175 = pneg %p174
    $region30: #{tpu_custom_call.1} parent=5 // pred_check_branch
      %177 = sbr.rel (%p175) target = $region32
    $region31: #{tpu_custom_call.1} parent=5 // pred_region
      // Predicated region
      $region33: #{tpu_custom_call.1} parent=31 // pred_check
        %p178 = pneg %p31
      $region34: #{tpu_custom_call.1} parent=31 // pred_check_branch
        %180 = sbr.rel (%p178) target = $region36
      $region35: #{tpu_custom_call.1} parent=31 // pred_region
        %p181 = scmp.lt.s32.totalorder %s11, 1
        %s182 = scalar_select %p181, %s11, 1
        %s183 = smul.addr %s182, 43
        %s184 = smul.addr %s183, 4
        %s185 = scalar_lea.vmem %s0, %s184
      $region36: #{tpu_custom_call.1} parent=31 // pred_fallthru
        _
    $region32: #{tpu_custom_call.1} parent=5 // pred_fallthru
      _
    %p186 = scmp.le.s32.totalorder 1, %s11
    %p187 = scmp.lt.s32.totalorder %s11, 3
    %p188 = pnand %p186, %p187
    %p189 = pneg %p188
    // Predicated region
    $region37: #{tpu_custom_call.1} parent=5 // pred_check
      _
    $region38: #{tpu_custom_call.1} parent=5 // pred_check_branch
      %191 = sbr.rel (%p188) target = $region40
    $region39: #{tpu_custom_call.1} parent=5 // pred_region
      %s192 = ssub.s32 %s11, 1
      %p193 = scmp.lt.s32.totalorder %s16, 1
      %s194 = scalar_select %p193, %s16, 1
      %s195 = smul.addr %s194, 43
      %s196 = smul.addr %s195, 4
      %s197 = scalar_lea.vmem %s0, %s196
      %p198 = pneg %p37
      %p199 = pneg %p34
      %p200 = pneg %p58
      %p201 = pneg %p55
      %p202 = pneg %p79
      %p203 = pneg %p76
      %p204 = pneg %p100
      %p205 = pneg %p97
      %p206 = pneg %p121
      %p207 = pneg %p118
      %p208 = pneg %p147
      %p209 = pneg %p144
      %p210 = scmp.lt.s32.totalorder %s16, 1
      %s211 = scalar_select %p210, %s16, 1
      %s212 = smul.addr %s211, 36
      %s213 = smul.addr %s212, 8
      %s214 = scalar_lea.vmem %s5, %s213
      %p215 = scmp.lt.s32.totalorder %s16, 1
      %s216 = scalar_select %p215, %s16, 1
      %s217 = smul.addr %s216, 43
      %s218 = smul.addr %s217, 4
      %s219 = scalar_lea.vmem %s0, %s218
      %p220 = scmp.lt.s32.totalorder %s16, 1
      %s221 = scalar_select %p220, %s16, 1
      %s222 = smul.addr %s221, 36
      %s223 = smul.addr %s222, 8
      %s224 = scalar_lea.vmem %s5, %s223
      %vm226 = vcmask 519168
      %227 = vst.msk [vmem:[#allocation2] sm:$0xf] %vm226, 0
      %228 = vst.msk [vmem:[#allocation2 + $0x4] sm:$0xf] %vm226, 0
      %vm229 = vcmask 517120
      %vm230 = vsmask.f32 1280
      %vm231 = vmand %vm229, %vm230
      %v232 = vld [vmem:[#allocation2 + $0x8] sm:$0x3]
      %v233 = vsel %vm231, 0, %v232
      %234 = vst [vmem:[#allocation2 + $0x8] sm:$0x3] %v233
      %vm235 = vcmask 519169
      %vm236 = vsmask.f32 7942
      %vm237 = vmand %vm235, %vm236
      %v238 = vld [vmem:[#allocation2 + $0x98] sm:$0xe]
      %v239 = vsel %vm237, 0, %v238
      %240 = vst [vmem:[#allocation2 + $0x98] sm:$0xe] %v239
      %241 = vst.msk [vmem:[#allocation2 + $0x9c] sm:$0xf] %vm226, 0
      %242 = vst.msk [vmem:[#allocation2 + $0xa0] sm:$0xf] %vm226, 0
      %243 = vst.msk [vmem:[#allocation2 + $0xa4] sm:$0xf] %vm226, 0
      %vm244 = vcmask 518144
      %245 = vst.msk [vmem:[#allocation2 + $0xa8] sm:$0x7] %vm244, 0
      %v246 = vlaneseq
      %v247 = vshrl.u32 %v246, 7
      %v248 = vadd.s32 %v247, 8
      %v249 = vadd.s32 %v247, 16
      %v250 = vadd.s32 %v247, 24
      %v251 = vadd.s32 %v247, 32
      %v252 = vadd.s32 %v247, 40
      %v253 = vadd.s32 %v247, 48
      %v254 = vadd.s32 %v247, 56
      %v255 = vadd.s32 %v247, 64
      %v256 = vadd.s32 %v247, 72
      %v257 = vadd.s32 %v247, 80
      %v258 = vadd.s32 %v247, 88
      %v259 = vadd.s32 %v247, 96
      %v260 = vadd.s32 %v247, 104
      %v261 = vadd.s32 %v247, 112
      %v262 = vadd.s32 %v247, 120
      %v263 = vadd.s32 %v247, 128
      %v264 = vadd.s32 %v247, 136
      %v265 = vadd.s32 %v247, 144
      %v266 = vadd.s32 %v247, 152
      %v267 = vadd.s32 %v247, 160
      %v268 = vadd.s32 %v247, 168
      %v269 = vadd.s32 %v247, 176
      %v270 = vadd.s32 %v247, 184
      %v271 = vadd.s32 %v247, 192
      %v272 = vadd.s32 %v247, 200
      %v273 = vadd.s32 %v247, 208
      %v274 = vadd.s32 %v247, 216
      %v275 = vadd.s32 %v247, 224
      %v276 = vadd.s32 %v247, 232
      %v277 = vadd.s32 %v247, 240
      %v278 = vadd.s32 %v247, 248
      %v279 = vadd.s32 %v247, 256
      %v280 = vadd.s32 %v247, 264
      %v281 = vadd.s32 %v247, 272
      %v282 = vadd.s32 %v247, 280
      %vm283 = vcmp.lt.s32.totalorder %v247, 0
      %v284 = vsub.s32 0, %v247
      %v285 = vsel %vm283, %v284, %v247
      %v286 = vand.u32 %v285, 65535
      %v287 = vshrl.u32 %v285, 16
      %v289 = vmul.u32 %v286, 14564
      %v290 = vmul.u32 %v286, 58254
      %v291 = vmul.u32 %v287, 14564
      %v292 = vmul.u32 %v287, 58254
      %v293 = vshll.u32 %v290, 16
      %v294 = vshrl.u32 %v290, 16
      %v295 = vshll.u32 %v291, 16
      %v296 = vshrl.u32 %v291, 16
      %vm297 = vc.u32 %v289, %v293
      %v298 = vsel %vm297, 1, 0
      %v299 = vadd.s32 %v289, %v293
      %v300 = vadd.s32 %v292, %v298
      %vm301 = vc.u32 %v299, %v295
      %v302 = vsel %vm301, 1, 0
      %v303 = vadd.s32 %v299, %v295
      %v304 = vadd.s32 %v300, %v302
      %v305 = vadd.s32 %v304, %v294
      %v306 = vadd.s32 %v305, %v296
      %v307 = vshrl.u32 %v306, 4
      %v308 = vmul.u32 %v307, 18
      %v309 = vsub.s32 %v285, %v308
      %v310 = vsub.s32 0, %v309
      %v311 = vsel %vm283, %v310, %v309
      %vm312 = vcmp.lt.s32.totalorder %v248, 0
      %v313 = vsub.s32 0, %v248
      %v314 = vsel %vm312, %v313, %v248
      %v315 = vand.u32 %v314, 65535
      %v316 = vshrl.u32 %v314, 16
      %v318 = vmul.u32 %v315, 14564
      %v319 = vmul.u32 %v315, 58254
      %v320 = vmul.u32 %v316, 14564
      %v321 = vmul.u32 %v316, 58254
      %v322 = vshll.u32 %v319, 16
      %v323 = vshrl.u32 %v319, 16
      %v324 = vshll.u32 %v320, 16
      %v325 = vshrl.u32 %v320, 16
      %vm326 = vc.u32 %v318, %v322
      %v327 = vsel %vm326, 1, 0
      %v328 = vadd.s32 %v318, %v322
      %v329 = vadd.s32 %v321, %v327
      %vm330 = vc.u32 %v328, %v324
      %v331 = vsel %vm330, 1, 0
      %v332 = vadd.s32 %v328, %v324
      %v333 = vadd.s32 %v329, %v331
      %v334 = vadd.s32 %v333, %v323
      %v335 = vadd.s32 %v334, %v325
      %v336 = vshrl.u32 %v335, 4
      %v337 = vmul.u32 %v336, 18
      %v338 = vsub.s32 %v314, %v337
      %v339 = vsub.s32 0, %v338
      %v340 = vsel %vm312, %v339, %v338
      %vm341 = vcmp.lt.s32.totalorder %v249, 0
      %v342 = vsub.s32 0, %v249
      %v343 = vsel %vm341, %v342, %v249
      %v344 = vand.u32 %v343, 65535
      %v345 = vshrl.u32 %v343, 16
      %v347 = vmul.u32 %v344, 14564
      %v348 = vmul.u32 %v344, 58254
      %v349 = vmul.u32 %v345, 14564
      %v350 = vmul.u32 %v345, 58254
      %v351 = vshll.u32 %v348, 16
      %v352 = vshrl.u32 %v348, 16
      %v353 = vshll.u32 %v349, 16
      %v354 = vshrl.u32 %v349, 16
      %vm355 = vc.u32 %v347, %v351
      %v356 = vsel %vm355, 1, 0
      %v357 = vadd.s32 %v347, %v351
      %v358 = vadd.s32 %v350, %v356
      %vm359 = vc.u32 %v357, %v353
      %v360 = vsel %vm359, 1, 0
      %v361 = vadd.s32 %v357, %v353
      %v362 = vadd.s32 %v358, %v360
      %v363 = vadd.s32 %v362, %v352
      %v364 = vadd.s32 %v363, %v354
      %v365 = vshrl.u32 %v364, 4
      %v366 = vmul.u32 %v365, 18
      %v367 = vsub.s32 %v343, %v366
      %v368 = vsub.s32 0, %v367
      %v369 = vsel %vm341, %v368, %v367
      %vm370 = vcmp.lt.s32.totalorder %v250, 0
      %v371 = vsub.s32 0, %v250
      %v372 = vsel %vm370, %v371, %v250
      %v373 = vand.u32 %v372, 65535
      %v374 = vshrl.u32 %v372, 16
      %v376 = vmul.u32 %v373, 14564
      %v377 = vmul.u32 %v373, 58254
      %v378 = vmul.u32 %v374, 14564
      %v379 = vmul.u32 %v374, 58254
      %v380 = vshll.u32 %v377, 16
      %v381 = vshrl.u32 %v377, 16
      %v382 = vshll.u32 %v378, 16
      %v383 = vshrl.u32 %v378, 16
      %vm384 = vc.u32 %v376, %v380
      %v385 = vsel %vm384, 1, 0
      %v386 = vadd.s32 %v376, %v380
      %v387 = vadd.s32 %v379, %v385
      %vm388 = vc.u32 %v386, %v382
      %v389 = vsel %vm388, 1, 0
      %v390 = vadd.s32 %v386, %v382
      %v391 = vadd.s32 %v387, %v389
      %v392 = vadd.s32 %v391, %v381
      %v393 = vadd.s32 %v392, %v383
      %v394 = vshrl.u32 %v393, 4
      %v395 = vmul.u32 %v394, 18
      %v396 = vsub.s32 %v372, %v395
      %v397 = vsub.s32 0, %v396
      %v398 = vsel %vm370, %v397, %v396
      %vm399 = vcmp.lt.s32.totalorder %v251, 0
      %v400 = vsub.s32 0, %v251
      %v401 = vsel %vm399, %v400, %v251
      %v402 = vand.u32 %v401, 65535
      %v403 = vshrl.u32 %v401, 16
      %v405 = vmul.u32 %v402, 14564
      %v406 = vmul.u32 %v402, 58254
      %v407 = vmul.u32 %v403, 14564
      %v408 = vmul.u32 %v403, 58254
      %v409 = vshll.u32 %v406, 16
      %v410 = vshrl.u32 %v406, 16
      %v411 = vshll.u32 %v407, 16
      %v412 = vshrl.u32 %v407, 16
      %vm413 = vc.u32 %v405, %v409
      %v414 = vsel %vm413, 1, 0
      %v415 = vadd.s32 %v405, %v409
      %v416 = vadd.s32 %v408, %v414
      %vm417 = vc.u32 %v415, %v411
      %v418 = vsel %vm417, 1, 0
      %v419 = vadd.s32 %v415, %v411
      %v420 = vadd.s32 %v416, %v418
      %v421 = vadd.s32 %v420, %v410
      %v422 = vadd.s32 %v421, %v412
      %v423 = vshrl.u32 %v422, 4
      %v424 = vmul.u32 %v423, 18
      %v425 = vsub.s32 %v401, %v424
      %v426 = vsub.s32 0, %v425
      %v427 = vsel %vm399, %v426, %v425
      %vm428 = vcmp.lt.s32.totalorder %v252, 0
      %v429 = vsub.s32 0, %v252
      %v430 = vsel %vm428, %v429, %v252
      %v431 = vand.u32 %v430, 65535
      %v432 = vshrl.u32 %v430, 16
      %v434 = vmul.u32 %v431, 14564
      %v435 = vmul.u32 %v431, 58254
      %v436 = vmul.u32 %v432, 14564
      %v437 = vmul.u32 %v432, 58254
      %v438 = vshll.u32 %v435, 16
      %v439 = vshrl.u32 %v435, 16
      %v440 = vshll.u32 %v436, 16
      %v441 = vshrl.u32 %v436, 16
      %vm442 = vc.u32 %v434, %v438
      %v443 = vsel %vm442, 1, 0
      %v444 = vadd.s32 %v434, %v438
      %v445 = vadd.s32 %v437, %v443
      %vm446 = vc.u32 %v444, %v440
      %v447 = vsel %vm446, 1, 0
      %v448 = vadd.s32 %v444, %v440
      %v449 = vadd.s32 %v445, %v447
      %v450 = vadd.s32 %v449, %v439
      %v451 = vadd.s32 %v450, %v441
      %v452 = vshrl.u32 %v451, 4
      %v453 = vmul.u32 %v452, 18
      %v454 = vsub.s32 %v430, %v453
      %v455 = vsub.s32 0, %v454
      %v456 = vsel %vm428, %v455, %v454
      %vm457 = vcmp.lt.s32.totalorder %v253, 0
      %v458 = vsub.s32 0, %v253
      %v459 = vsel %vm457, %v458, %v253
      %v460 = vand.u32 %v459, 65535
      %v461 = vshrl.u32 %v459, 16
      %v463 = vmul.u32 %v460, 14564
      %v464 = vmul.u32 %v460, 58254
      %v465 = vmul.u32 %v461, 14564
      %v466 = vmul.u32 %v461, 58254
      %v467 = vshll.u32 %v464, 16
      %v468 = vshrl.u32 %v464, 16
      %v469 = vshll.u32 %v465, 16
      %v470 = vshrl.u32 %v465, 16
      %vm471 = vc.u32 %v463, %v467
      %v472 = vsel %vm471, 1, 0
      %v473 = vadd.s32 %v463, %v467
      %v474 = vadd.s32 %v466, %v472
      %vm475 = vc.u32 %v473, %v469
      %v476 = vsel %vm475, 1, 0
      %v477 = vadd.s32 %v473, %v469
      %v478 = vadd.s32 %v474, %v476
      %v479 = vadd.s32 %v478, %v468
      %v480 = vadd.s32 %v479, %v470
      %v481 = vshrl.u32 %v480, 4
      %v482 = vmul.u32 %v481, 18
      %v483 = vsub.s32 %v459, %v482
      %v484 = vsub.s32 0, %v483
      %v485 = vsel %vm457, %v484, %v483
      %vm486 = vcmp.lt.s32.totalorder %v254, 0
      %v487 = vsub.s32 0, %v254
      %v488 = vsel %vm486, %v487, %v254
      %v489 = vand.u32 %v488, 65535
      %v490 = vshrl.u32 %v488, 16
      %v492 = vmul.u32 %v489, 14564
      %v493 = vmul.u32 %v489, 58254
      %v494 = vmul.u32 %v490, 14564
      %v495 = vmul.u32 %v490, 58254
      %v496 = vshll.u32 %v493, 16
      %v497 = vshrl.u32 %v493, 16
      %v498 = vshll.u32 %v494, 16
      %v499 = vshrl.u32 %v494, 16
      %vm500 = vc.u32 %v492, %v496
      %v501 = vsel %vm500, 1, 0
      %v502 = vadd.s32 %v492, %v496
      %v503 = vadd.s32 %v495, %v501
      %vm504 = vc.u32 %v502, %v498
      %v505 = vsel %vm504, 1, 0
      %v506 = vadd.s32 %v502, %v498
      %v507 = vadd.s32 %v503, %v505
      %v508 = vadd.s32 %v507, %v497
      %v509 = vadd.s32 %v508, %v499
      %v510 = vshrl.u32 %v509, 4
      %v511 = vmul.u32 %v510, 18
      %v512 = vsub.s32 %v488, %v511
      %v513 = vsub.s32 0, %v512
      %v514 = vsel %vm486, %v513, %v512
      %vm515 = vcmp.lt.s32.totalorder %v255, 0
      %v516 = vsub.s32 0, %v255
      %v517 = vsel %vm515, %v516, %v255
      %v518 = vand.u32 %v517, 65535
      %v519 = vshrl.u32 %v517, 16
      %v521 = vmul.u32 %v518, 14564
      %v522 = vmul.u32 %v518, 58254
      %v523 = vmul.u32 %v519, 14564
      %v524 = vmul.u32 %v519, 58254
      %v525 = vshll.u32 %v522, 16
      %v526 = vshrl.u32 %v522, 16
      %v527 = vshll.u32 %v523, 16
      %v528 = vshrl.u32 %v523, 16
      %vm529 = vc.u32 %v521, %v525
      %v530 = vsel %vm529, 1, 0
      %v531 = vadd.s32 %v521, %v525
      %v532 = vadd.s32 %v524, %v530
      %vm533 = vc.u32 %v531, %v527
      %v534 = vsel %vm533, 1, 0
      %v535 = vadd.s32 %v531, %v527
      %v536 = vadd.s32 %v532, %v534
      %v537 = vadd.s32 %v536, %v526
      %v538 = vadd.s32 %v537, %v528
      %v539 = vshrl.u32 %v538, 4
      %v540 = vmul.u32 %v539, 18
      %v541 = vsub.s32 %v517, %v540
      %v542 = vsub.s32 0, %v541
      %v543 = vsel %vm515, %v542, %v541
      %vm544 = vcmp.lt.s32.totalorder %v256, 0
      %v545 = vsub.s32 0, %v256
      %v546 = vsel %vm544, %v545, %v256
      %v547 = vand.u32 %v546, 65535
      %v548 = vshrl.u32 %v546, 16
      %v550 = vmul.u32 %v547, 14564
      %v551 = vmul.u32 %v547, 58254
      %v552 = vmul.u32 %v548, 14564
      %v553 = vmul.u32 %v548, 58254
      %v554 = vshll.u32 %v551, 16
      %v555 = vshrl.u32 %v551, 16
      %v556 = vshll.u32 %v552, 16
      %v557 = vshrl.u32 %v552, 16
      %vm558 = vc.u32 %v550, %v554
      %v559 = vsel %vm558, 1, 0
      %v560 = vadd.s32 %v550, %v554
      %v561 = vadd.s32 %v553, %v559
      %vm562 = vc.u32 %v560, %v556
      %v563 = vsel %vm562, 1, 0
      %v564 = vadd.s32 %v560, %v556
      %v565 = vadd.s32 %v561, %v563
      %v566 = vadd.s32 %v565, %v555
      %v567 = vadd.s32 %v566, %v557
      %v568 = vshrl.u32 %v567, 4
      %v569 = vmul.u32 %v568, 18
      %v570 = vsub.s32 %v546, %v569
      %v571 = vsub.s32 0, %v570
      %v572 = vsel %vm544, %v571, %v570
      %vm573 = vcmp.lt.s32.totalorder %v257, 0
      %v574 = vsub.s32 0, %v257
      %v575 = vsel %vm573, %v574, %v257
      %v576 = vand.u32 %v575, 65535
      %v577 = vshrl.u32 %v575, 16
      %v579 = vmul.u32 %v576, 14564
      %v580 = vmul.u32 %v576, 58254
      %v581 = vmul.u32 %v577, 14564
      %v582 = vmul.u32 %v577, 58254
      %v583 = vshll.u32 %v580, 16
      %v584 = vshrl.u32 %v580, 16
      %v585 = vshll.u32 %v581, 16
      %v586 = vshrl.u32 %v581, 16
      %vm587 = vc.u32 %v579, %v583
      %v588 = vsel %vm587, 1, 0
      %v589 = vadd.s32 %v579, %v583
      %v590 = vadd.s32 %v582, %v588
      %vm591 = vc.u32 %v589, %v585
      %v592 = vsel %vm591, 1, 0
      %v593 = vadd.s32 %v589, %v585
      %v594 = vadd.s32 %v590, %v592
      %v595 = vadd.s32 %v594, %v584
      %v596 = vadd.s32 %v595, %v586
      %v597 = vshrl.u32 %v596, 4
      %v598 = vmul.u32 %v597, 18
      %v599 = vsub.s32 %v575, %v598
      %v600 = vsub.s32 0, %v599
      %v601 = vsel %vm573, %v600, %v599
      %vm602 = vcmp.lt.s32.totalorder %v258, 0
      %v603 = vsub.s32 0, %v258
      %v604 = vsel %vm602, %v603, %v258
      %v605 = vand.u32 %v604, 65535
      %v606 = vshrl.u32 %v604, 16
      %v608 = vmul.u32 %v605, 14564
      %v609 = vmul.u32 %v605, 58254
      %v610 = vmul.u32 %v606, 14564
      %v611 = vmul.u32 %v606, 58254
      %v612 = vshll.u32 %v609, 16
      %v613 = vshrl.u32 %v609, 16
      %v614 = vshll.u32 %v610, 16
      %v615 = vshrl.u32 %v610, 16
      %vm616 = vc.u32 %v608, %v612
      %v617 = vsel %vm616, 1, 0
      %v618 = vadd.s32 %v608, %v612
      %v619 = vadd.s32 %v611, %v617
      %vm620 = vc.u32 %v618, %v614
      %v621 = vsel %vm620, 1, 0
      %v622 = vadd.s32 %v618, %v614
      %v623 = vadd.s32 %v619, %v621
      %v624 = vadd.s32 %v623, %v613
      %v625 = vadd.s32 %v624, %v615
      %v626 = vshrl.u32 %v625, 4
      %v627 = vmul.u32 %v626, 18
      %v628 = vsub.s32 %v604, %v627
      %v629 = vsub.s32 0, %v628
      %v630 = vsel %vm602, %v629, %v628
      %vm631 = vcmp.lt.s32.totalorder %v259, 0
      %v632 = vsub.s32 0, %v259
      %v633 = vsel %vm631, %v632, %v259
      %v634 = vand.u32 %v633, 65535
      %v635 = vshrl.u32 %v633, 16
      %v637 = vmul.u32 %v634, 14564
      %v638 = vmul.u32 %v634, 58254
      %v639 = vmul.u32 %v635, 14564
      %v640 = vmul.u32 %v635, 58254
      %v641 = vshll.u32 %v638, 16
      %v642 = vshrl.u32 %v638, 16
      %v643 = vshll.u32 %v639, 16
      %v644 = vshrl.u32 %v639, 16
      %vm645 = vc.u32 %v637, %v641
      %v646 = vsel %vm645, 1, 0
      %v647 = vadd.s32 %v637, %v641
      %v648 = vadd.s32 %v640, %v646
      %vm649 = vc.u32 %v647, %v643
      %v650 = vsel %vm649, 1, 0
      %v651 = vadd.s32 %v647, %v643
      %v652 = vadd.s32 %v648, %v650
      %v653 = vadd.s32 %v652, %v642
      %v654 = vadd.s32 %v653, %v644
      %v655 = vshrl.u32 %v654, 4
      %v656 = vmul.u32 %v655, 18
      %v657 = vsub.s32 %v633, %v656
      %v658 = vsub.s32 0, %v657
      %v659 = vsel %vm631, %v658, %v657
      %vm660 = vcmp.lt.s32.totalorder %v260, 0
      %v661 = vsub.s32 0, %v260
      %v662 = vsel %vm660, %v661, %v260
      %v663 = vand.u32 %v662, 65535
      %v664 = vshrl.u32 %v662, 16
      %v666 = vmul.u32 %v663, 14564
      %v667 = vmul.u32 %v663, 58254
      %v668 = vmul.u32 %v664, 14564
      %v669 = vmul.u32 %v664, 58254
      %v670 = vshll.u32 %v667, 16
      %v671 = vshrl.u32 %v667, 16
      %v672 = vshll.u32 %v668, 16
      %v673 = vshrl.u32 %v668, 16
      %vm674 = vc.u32 %v666, %v670
      %v675 = vsel %vm674, 1, 0
      %v676 = vadd.s32 %v666, %v670
      %v677 = vadd.s32 %v669, %v675
      %vm678 = vc.u32 %v676, %v672
      %v679 = vsel %vm678, 1, 0
      %v680 = vadd.s32 %v676, %v672
      %v681 = vadd.s32 %v677, %v679
      %v682 = vadd.s32 %v681, %v671
      %v683 = vadd.s32 %v682, %v673
      %v684 = vshrl.u32 %v683, 4
      %v685 = vmul.u32 %v684, 18
      %v686 = vsub.s32 %v662, %v685
      %v687 = vsub.s32 0, %v686
      %v688 = vsel %vm660, %v687, %v686
      %vm689 = vcmp.lt.s32.totalorder %v261, 0
      %v690 = vsub.s32 0, %v261
      %v691 = vsel %vm689, %v690, %v261
      %v692 = vand.u32 %v691, 65535
      %v693 = vshrl.u32 %v691, 16
      %v695 = vmul.u32 %v692, 14564
      %v696 = vmul.u32 %v692, 58254
      %v697 = vmul.u32 %v693, 14564
      %v698 = vmul.u32 %v693, 58254
      %v699 = vshll.u32 %v696, 16
      %v700 = vshrl.u32 %v696, 16
      %v701 = vshll.u32 %v697, 16
      %v702 = vshrl.u32 %v697, 16
      %vm703 = vc.u32 %v695, %v699
      %v704 = vsel %vm703, 1, 0
      %v705 = vadd.s32 %v695, %v699
      %v706 = vadd.s32 %v698, %v704
      %vm707 = vc.u32 %v705, %v701
      %v708 = vsel %vm707, 1, 0
      %v709 = vadd.s32 %v705, %v701
      %v710 = vadd.s32 %v706, %v708
      %v711 = vadd.s32 %v710, %v700
      %v712 = vadd.s32 %v711, %v702
      %v713 = vshrl.u32 %v712, 4
      %v714 = vmul.u32 %v713, 18
      %v715 = vsub.s32 %v691, %v714
      %v716 = vsub.s32 0, %v715
      %v717 = vsel %vm689, %v716, %v715
      %vm718 = vcmp.lt.s32.totalorder %v262, 0
      %v719 = vsub.s32 0, %v262
      %v720 = vsel %vm718, %v719, %v262
      %v721 = vand.u32 %v720, 65535
      %v722 = vshrl.u32 %v720, 16
      %v724 = vmul.u32 %v721, 14564
      %v725 = vmul.u32 %v721, 58254
      %v726 = vmul.u32 %v722, 14564
      %v727 = vmul.u32 %v722, 58254
      %v728 = vshll.u32 %v725, 16
      %v729 = vshrl.u32 %v725, 16
      %v730 = vshll.u32 %v726, 16
      %v731 = vshrl.u32 %v726, 16
      %vm732 = vc.u32 %v724, %v728
      %v733 = vsel %vm732, 1, 0
      %v734 = vadd.s32 %v724, %v728
      %v735 = vadd.s32 %v727, %v733
      %vm736 = vc.u32 %v734, %v730
      %v737 = vsel %vm736, 1, 0
      %v738 = vadd.s32 %v734, %v730
      %v739 = vadd.s32 %v735, %v737
      %v740 = vadd.s32 %v739, %v729
      %v741 = vadd.s32 %v740, %v731
      %v742 = vshrl.u32 %v741, 4
      %v743 = vmul.u32 %v742, 18
      %v744 = vsub.s32 %v720, %v743
      %v745 = vsub.s32 0, %v744
      %v746 = vsel %vm718, %v745, %v744
      %vm747 = vcmp.lt.s32.totalorder %v263, 0
      %v748 = vsub.s32 0, %v263
      %v749 = vsel %vm747, %v748, %v263
      %v750 = vand.u32 %v749, 65535
      %v751 = vshrl.u32 %v749, 16
      %v753 = vmul.u32 %v750, 14564
      %v754 = vmul.u32 %v750, 58254
      %v755 = vmul.u32 %v751, 14564
      %v756 = vmul.u32 %v751, 58254
      %v757 = vshll.u32 %v754, 16
      %v758 = vshrl.u32 %v754, 16
      %v759 = vshll.u32 %v755, 16
      %v760 = vshrl.u32 %v755, 16
      %vm761 = vc.u32 %v753, %v757
      %v762 = vsel %vm761, 1, 0
      %v763 = vadd.s32 %v753, %v757
      %v764 = vadd.s32 %v756, %v762
      %vm765 = vc.u32 %v763, %v759
      %v766 = vsel %vm765, 1, 0
      %v767 = vadd.s32 %v763, %v759
      %v768 = vadd.s32 %v764, %v766
      %v769 = vadd.s32 %v768, %v758
      %v770 = vadd.s32 %v769, %v760
      %v771 = vshrl.u32 %v770, 4
      %v772 = vmul.u32 %v771, 18
      %v773 = vsub.s32 %v749, %v772
      %v774 = vsub.s32 0, %v773
      %v775 = vsel %vm747, %v774, %v773
      %vm776 = vcmp.lt.s32.totalorder %v264, 0
      %v777 = vsub.s32 0, %v264
      %v778 = vsel %vm776, %v777, %v264
      %v779 = vand.u32 %v778, 65535
      %v780 = vshrl.u32 %v778, 16
      %v782 = vmul.u32 %v779, 14564
      %v783 = vmul.u32 %v779, 58254
      %v784 = vmul.u32 %v780, 14564
      %v785 = vmul.u32 %v780, 58254
      %v786 = vshll.u32 %v783, 16
      %v787 = vshrl.u32 %v783, 16
      %v788 = vshll.u32 %v784, 16
      %v789 = vshrl.u32 %v784, 16
      %vm790 = vc.u32 %v782, %v786
      %v791 = vsel %vm790, 1, 0
      %v792 = vadd.s32 %v782, %v786
      %v793 = vadd.s32 %v785, %v791
      %vm794 = vc.u32 %v792, %v788
      %v795 = vsel %vm794, 1, 0
      %v796 = vadd.s32 %v792, %v788
      %v797 = vadd.s32 %v793, %v795
      %v798 = vadd.s32 %v797, %v787
      %v799 = vadd.s32 %v798, %v789
      %v800 = vshrl.u32 %v799, 4
      %v801 = vmul.u32 %v800, 18
      %v802 = vsub.s32 %v778, %v801
      %v803 = vsub.s32 0, %v802
      %v804 = vsel %vm776, %v803, %v802
      %vm805 = vcmp.lt.s32.totalorder %v265, 0
      %v806 = vsub.s32 0, %v265
      %v807 = vsel %vm805, %v806, %v265
      %v808 = vand.u32 %v807, 65535
      %v809 = vshrl.u32 %v807, 16
      %v811 = vmul.u32 %v808, 14564
      %v812 = vmul.u32 %v808, 58254
      %v813 = vmul.u32 %v809, 14564
      %v814 = vmul.u32 %v809, 58254
      %v815 = vshll.u32 %v812, 16
      %v816 = vshrl.u32 %v812, 16
      %v817 = vshll.u32 %v813, 16
      %v818 = vshrl.u32 %v813, 16
      %vm819 = vc.u32 %v811, %v815
      %v820 = vsel %vm819, 1, 0
      %v821 = vadd.s32 %v811, %v815
      %v822 = vadd.s32 %v814, %v820
      %vm823 = vc.u32 %v821, %v817
      %v824 = vsel %vm823, 1, 0
      %v825 = vadd.s32 %v821, %v817
      %v826 = vadd.s32 %v822, %v824
      %v827 = vadd.s32 %v826, %v816
      %v828 = vadd.s32 %v827, %v818
      %v829 = vshrl.u32 %v828, 4
      %v830 = vmul.u32 %v829, 18
      %v831 = vsub.s32 %v807, %v830
      %v832 = vsub.s32 0, %v831
      %v833 = vsel %vm805, %v832, %v831
      %vm834 = vcmp.lt.s32.totalorder %v266, 0
      %v835 = vsub.s32 0, %v266
      %v836 = vsel %vm834, %v835, %v266
      %v837 = vand.u32 %v836, 65535
      %v838 = vshrl.u32 %v836, 16
      %v840 = vmul.u32 %v837, 14564
      %v841 = vmul.u32 %v837, 58254
      %v842 = vmul.u32 %v838, 14564
      %v843 = vmul.u32 %v838, 58254
      %v844 = vshll.u32 %v841, 16
      %v845 = vshrl.u32 %v841, 16
      %v846 = vshll.u32 %v842, 16
      %v847 = vshrl.u32 %v842, 16
      %vm848 = vc.u32 %v840, %v844
      %v849 = vsel %vm848, 1, 0
      %v850 = vadd.s32 %v840, %v844
      %v851 = vadd.s32 %v843, %v849
      %vm852 = vc.u32 %v850, %v846
      %v853 = vsel %vm852, 1, 0
      %v854 = vadd.s32 %v850, %v846
      %v855 = vadd.s32 %v851, %v853
      %v856 = vadd.s32 %v855, %v845
      %v857 = vadd.s32 %v856, %v847
      %v858 = vshrl.u32 %v857, 4
      %v859 = vmul.u32 %v858, 18
      %v860 = vsub.s32 %v836, %v859
      %v861 = vsub.s32 0, %v860
      %v862 = vsel %vm834, %v861, %v860
      %vm863 = vcmp.lt.s32.totalorder %v267, 0
      %v864 = vsub.s32 0, %v267
      %v865 = vsel %vm863, %v864, %v267
      %v866 = vand.u32 %v865, 65535
      %v867 = vshrl.u32 %v865, 16
      %v869 = vmul.u32 %v866, 14564
      %v870 = vmul.u32 %v866, 58254
      %v871 = vmul.u32 %v867, 14564
      %v872 = vmul.u32 %v867, 58254
      %v873 = vshll.u32 %v870, 16
      %v874 = vshrl.u32 %v870, 16
      %v875 = vshll.u32 %v871, 16
      %v876 = vshrl.u32 %v871, 16
      %vm877 = vc.u32 %v869, %v873
      %v878 = vsel %vm877, 1, 0
      %v879 = vadd.s32 %v869, %v873
      %v880 = vadd.s32 %v872, %v878
      %vm881 = vc.u32 %v879, %v875
      %v882 = vsel %vm881, 1, 0
      %v883 = vadd.s32 %v879, %v875
      %v884 = vadd.s32 %v880, %v882
      %v885 = vadd.s32 %v884, %v874
      %v886 = vadd.s32 %v885, %v876
      %v887 = vshrl.u32 %v886, 4
      %v888 = vmul.u32 %v887, 18
      %v889 = vsub.s32 %v865, %v888
      %v890 = vsub.s32 0, %v889
      %v891 = vsel %vm863, %v890, %v889
      %vm892 = vcmp.lt.s32.totalorder %v268, 0
      %v893 = vsub.s32 0, %v268
      %v894 = vsel %vm892, %v893, %v268
      %v895 = vand.u32 %v894, 65535
      %v896 = vshrl.u32 %v894, 16
      %v898 = vmul.u32 %v895, 14564
      %v899 = vmul.u32 %v895, 58254
      %v900 = vmul.u32 %v896, 14564
      %v901 = vmul.u32 %v896, 58254
      %v902 = vshll.u32 %v899, 16
      %v903 = vshrl.u32 %v899, 16
      %v904 = vshll.u32 %v900, 16
      %v905 = vshrl.u32 %v900, 16
      %vm906 = vc.u32 %v898, %v902
      %v907 = vsel %vm906, 1, 0
      %v908 = vadd.s32 %v898, %v902
      %v909 = vadd.s32 %v901, %v907
      %vm910 = vc.u32 %v908, %v904
      %v911 = vsel %vm910, 1, 0
      %v912 = vadd.s32 %v908, %v904
      %v913 = vadd.s32 %v909, %v911
      %v914 = vadd.s32 %v913, %v903
      %v915 = vadd.s32 %v914, %v905
      %v916 = vshrl.u32 %v915, 4
      %v917 = vmul.u32 %v916, 18
      %v918 = vsub.s32 %v894, %v917
      %v919 = vsub.s32 0, %v918
      %v920 = vsel %vm892, %v919, %v918
      %vm921 = vcmp.lt.s32.totalorder %v269, 0
      %v922 = vsub.s32 0, %v269
      %v923 = vsel %vm921, %v922, %v269
      %v924 = vand.u32 %v923, 65535
      %v925 = vshrl.u32 %v923, 16
      %v927 = vmul.u32 %v924, 14564
      %v928 = vmul.u32 %v924, 58254
      %v929 = vmul.u32 %v925, 14564
      %v930 = vmul.u32 %v925, 58254
      %v931 = vshll.u32 %v928, 16
      %v932 = vshrl.u32 %v928, 16
      %v933 = vshll.u32 %v929, 16
      %v934 = vshrl.u32 %v929, 16
      %vm935 = vc.u32 %v927, %v931
      %v936 = vsel %vm935, 1, 0
      %v937 = vadd.s32 %v927, %v931
      %v938 = vadd.s32 %v930, %v936
      %vm939 = vc.u32 %v937, %v933
      %v940 = vsel %vm939, 1, 0
      %v941 = vadd.s32 %v937, %v933
      %v942 = vadd.s32 %v938, %v940
      %v943 = vadd.s32 %v942, %v932
      %v944 = vadd.s32 %v943, %v934
      %v945 = vshrl.u32 %v944, 4
      %v946 = vmul.u32 %v945, 18
      %v947 = vsub.s32 %v923, %v946
      %v948 = vsub.s32 0, %v947
      %v949 = vsel %vm921, %v948, %v947
      %vm950 = vcmp.lt.s32.totalorder %v270, 0
      %v951 = vsub.s32 0, %v270
      %v952 = vsel %vm950, %v951, %v270
      %v953 = vand.u32 %v952, 65535
      %v954 = vshrl.u32 %v952, 16
      %v956 = vmul.u32 %v953, 14564
      %v957 = vmul.u32 %v953, 58254
      %v958 = vmul.u32 %v954, 14564
      %v959 = vmul.u32 %v954, 58254
      %v960 = vshll.u32 %v957, 16
      %v961 = vshrl.u32 %v957, 16
      %v962 = vshll.u32 %v958, 16
      %v963 = vshrl.u32 %v958, 16
      %vm964 = vc.u32 %v956, %v960
      %v965 = vsel %vm964, 1, 0
      %v966 = vadd.s32 %v956, %v960
      %v967 = vadd.s32 %v959, %v965
      %vm968 = vc.u32 %v966, %v962
      %v969 = vsel %vm968, 1, 0
      %v970 = vadd.s32 %v966, %v962
      %v971 = vadd.s32 %v967, %v969
      %v972 = vadd.s32 %v971, %v961
      %v973 = vadd.s32 %v972, %v963
      %v974 = vshrl.u32 %v973, 4
      %v975 = vmul.u32 %v974, 18
      %v976 = vsub.s32 %v952, %v975
      %v977 = vsub.s32 0, %v976
      %v978 = vsel %vm950, %v977, %v976
      %vm979 = vcmp.lt.s32.totalorder %v271, 0
      %v980 = vsub.s32 0, %v271
      %v981 = vsel %vm979, %v980, %v271
      %v982 = vand.u32 %v981, 65535
      %v983 = vshrl.u32 %v981, 16
      %v985 = vmul.u32 %v982, 14564
      %v986 = vmul.u32 %v982, 58254
      %v987 = vmul.u32 %v983, 14564
      %v988 = vmul.u32 %v983, 58254
      %v989 = vshll.u32 %v986, 16
      %v990 = vshrl.u32 %v986, 16
      %v991 = vshll.u32 %v987, 16
      %v992 = vshrl.u32 %v987, 16
      %vm993 = vc.u32 %v985, %v989
      %v994 = vsel %vm993, 1, 0
      %v995 = vadd.s32 %v985, %v989
      %v996 = vadd.s32 %v988, %v994
      %vm997 = vc.u32 %v995, %v991
      %v998 = vsel %vm997, 1, 0
      %v999 = vadd.s32 %v995, %v991
      %v1000 = vadd.s32 %v996, %v998
      %v1001 = vadd.s32 %v1000, %v990
      %v1002 = vadd.s32 %v1001, %v992
      %v1003 = vshrl.u32 %v1002, 4
      %v1004 = vmul.u32 %v1003, 18
      %v1005 = vsub.s32 %v981, %v1004
      %v1006 = vsub.s32 0, %v1005
      %v1007 = vsel %vm979, %v1006, %v1005
      %vm1008 = vcmp.lt.s32.totalorder %v272, 0
      %v1009 = vsub.s32 0, %v272
      %v1010 = vsel %vm1008, %v1009, %v272
      %v1011 = vand.u32 %v1010, 65535
      %v1012 = vshrl.u32 %v1010, 16
      %v1014 = vmul.u32 %v1011, 14564
      %v1015 = vmul.u32 %v1011, 58254
      %v1016 = vmul.u32 %v1012, 14564
      %v1017 = vmul.u32 %v1012, 58254
      %v1018 = vshll.u32 %v1015, 16
      %v1019 = vshrl.u32 %v1015, 16
      %v1020 = vshll.u32 %v1016, 16
      %v1021 = vshrl.u32 %v1016, 16
      %vm1022 = vc.u32 %v1014, %v1018
      %v1023 = vsel %vm1022, 1, 0
      %v1024 = vadd.s32 %v1014, %v1018
      %v1025 = vadd.s32 %v1017, %v1023
      %vm1026 = vc.u32 %v1024, %v1020
      %v1027 = vsel %vm1026, 1, 0
      %v1028 = vadd.s32 %v1024, %v1020
      %v1029 = vadd.s32 %v1025, %v1027
      %v1030 = vadd.s32 %v1029, %v1019
      %v1031 = vadd.s32 %v1030, %v1021
      %v1032 = vshrl.u32 %v1031, 4
      %v1033 = vmul.u32 %v1032, 18
      %v1034 = vsub.s32 %v1010, %v1033
      %v1035 = vsub.s32 0, %v1034
      %v1036 = vsel %vm1008, %v1035, %v1034
      %vm1037 = vcmp.lt.s32.totalorder %v273, 0
      %v1038 = vsub.s32 0, %v273
      %v1039 = vsel %vm1037, %v1038, %v273
      %v1040 = vand.u32 %v1039, 65535
      %v1041 = vshrl.u32 %v1039, 16
      %v1043 = vmul.u32 %v1040, 14564
      %v1044 = vmul.u32 %v1040, 58254
      %v1045 = vmul.u32 %v1041, 14564
      %v1046 = vmul.u32 %v1041, 58254
      %v1047 = vshll.u32 %v1044, 16
      %v1048 = vshrl.u32 %v1044, 16
      %v1049 = vshll.u32 %v1045, 16
      %v1050 = vshrl.u32 %v1045, 16
      %vm1051 = vc.u32 %v1043, %v1047
      %v1052 = vsel %vm1051, 1, 0
      %v1053 = vadd.s32 %v1043, %v1047
      %v1054 = vadd.s32 %v1046, %v1052
      %vm1055 = vc.u32 %v1053, %v1049
      %v1056 = vsel %vm1055, 1, 0
      %v1057 = vadd.s32 %v1053, %v1049
      %v1058 = vadd.s32 %v1054, %v1056
      %v1059 = vadd.s32 %v1058, %v1048
      %v1060 = vadd.s32 %v1059, %v1050
      %v1061 = vshrl.u32 %v1060, 4
      %v1062 = vmul.u32 %v1061, 18
      %v1063 = vsub.s32 %v1039, %v1062
      %v1064 = vsub.s32 0, %v1063
      %v1065 = vsel %vm1037, %v1064, %v1063
      %vm1066 = vcmp.lt.s32.totalorder %v274, 0
      %v1067 = vsub.s32 0, %v274
      %v1068 = vsel %vm1066, %v1067, %v274
      %v1069 = vand.u32 %v1068, 65535
      %v1070 = vshrl.u32 %v1068, 16
      %v1072 = vmul.u32 %v1069, 14564
      %v1073 = vmul.u32 %v1069, 58254
      %v1074 = vmul.u32 %v1070, 14564
      %v1075 = vmul.u32 %v1070, 58254
      %v1076 = vshll.u32 %v1073, 16
      %v1077 = vshrl.u32 %v1073, 16
      %v1078 = vshll.u32 %v1074, 16
      %v1079 = vshrl.u32 %v1074, 16
      %vm1080 = vc.u32 %v1072, %v1076
      %v1081 = vsel %vm1080, 1, 0
      %v1082 = vadd.s32 %v1072, %v1076
      %v1083 = vadd.s32 %v1075, %v1081
      %vm1084 = vc.u32 %v1082, %v1078
      %v1085 = vsel %vm1084, 1, 0
      %v1086 = vadd.s32 %v1082, %v1078
      %v1087 = vadd.s32 %v1083, %v1085
      %v1088 = vadd.s32 %v1087, %v1077
      %v1089 = vadd.s32 %v1088, %v1079
      %v1090 = vshrl.u32 %v1089, 4
      %v1091 = vmul.u32 %v1090, 18
      %v1092 = vsub.s32 %v1068, %v1091
      %v1093 = vsub.s32 0, %v1092
      %v1094 = vsel %vm1066, %v1093, %v1092
      %vm1095 = vcmp.lt.s32.totalorder %v275, 0
      %v1096 = vsub.s32 0, %v275
      %v1097 = vsel %vm1095, %v1096, %v275
      %v1098 = vand.u32 %v1097, 65535
      %v1099 = vshrl.u32 %v1097, 16
      %v1101 = vmul.u32 %v1098, 14564
      %v1102 = vmul.u32 %v1098, 58254
      %v1103 = vmul.u32 %v1099, 14564
      %v1104 = vmul.u32 %v1099, 58254
      %v1105 = vshll.u32 %v1102, 16
      %v1106 = vshrl.u32 %v1102, 16
      %v1107 = vshll.u32 %v1103, 16
      %v1108 = vshrl.u32 %v1103, 16
      %vm1109 = vc.u32 %v1101, %v1105
      %v1110 = vsel %vm1109, 1, 0
      %v1111 = vadd.s32 %v1101, %v1105
      %v1112 = vadd.s32 %v1104, %v1110
      %vm1113 = vc.u32 %v1111, %v1107
      %v1114 = vsel %vm1113, 1, 0
      %v1115 = vadd.s32 %v1111, %v1107
      %v1116 = vadd.s32 %v1112, %v1114
      %v1117 = vadd.s32 %v1116, %v1106
      %v1118 = vadd.s32 %v1117, %v1108
      %v1119 = vshrl.u32 %v1118, 4
      %v1120 = vmul.u32 %v1119, 18
      %v1121 = vsub.s32 %v1097, %v1120
      %v1122 = vsub.s32 0, %v1121
      %v1123 = vsel %vm1095, %v1122, %v1121
      %vm1124 = vcmp.lt.s32.totalorder %v276, 0
      %v1125 = vsub.s32 0, %v276
      %v1126 = vsel %vm1124, %v1125, %v276
      %v1127 = vand.u32 %v1126, 65535
      %v1128 = vshrl.u32 %v1126, 16
      %v1130 = vmul.u32 %v1127, 14564
      %v1131 = vmul.u32 %v1127, 58254
      %v1132 = vmul.u32 %v1128, 14564
      %v1133 = vmul.u32 %v1128, 58254
      %v1134 = vshll.u32 %v1131, 16
      %v1135 = vshrl.u32 %v1131, 16
      %v1136 = vshll.u32 %v1132, 16
      %v1137 = vshrl.u32 %v1132, 16
      %vm1138 = vc.u32 %v1130, %v1134
      %v1139 = vsel %vm1138, 1, 0
      %v1140 = vadd.s32 %v1130, %v1134
      %v1141 = vadd.s32 %v1133, %v1139
      %vm1142 = vc.u32 %v1140, %v1136
      %v1143 = vsel %vm1142, 1, 0
      %v1144 = vadd.s32 %v1140, %v1136
      %v1145 = vadd.s32 %v1141, %v1143
      %v1146 = vadd.s32 %v1145, %v1135
      %v1147 = vadd.s32 %v1146, %v1137
      %v1148 = vshrl.u32 %v1147, 4
      %v1149 = vmul.u32 %v1148, 18
      %v1150 = vsub.s32 %v1126, %v1149
      %v1151 = vsub.s32 0, %v1150
      %v1152 = vsel %vm1124, %v1151, %v1150
      %vm1153 = vcmp.lt.s32.totalorder %v277, 0
      %v1154 = vsub.s32 0, %v277
      %v1155 = vsel %vm1153, %v1154, %v277
      %v1156 = vand.u32 %v1155, 65535
      %v1157 = vshrl.u32 %v1155, 16
      %v1159 = vmul.u32 %v1156, 14564
      %v1160 = vmul.u32 %v1156, 58254
      %v1161 = vmul.u32 %v1157, 14564
      %v1162 = vmul.u32 %v1157, 58254
      %v1163 = vshll.u32 %v1160, 16
      %v1164 = vshrl.u32 %v1160, 16
      %v1165 = vshll.u32 %v1161, 16
      %v1166 = vshrl.u32 %v1161, 16
      %vm1167 = vc.u32 %v1159, %v1163
      %v1168 = vsel %vm1167, 1, 0
      %v1169 = vadd.s32 %v1159, %v1163
      %v1170 = vadd.s32 %v1162, %v1168
      %vm1171 = vc.u32 %v1169, %v1165
      %v1172 = vsel %vm1171, 1, 0
      %v1173 = vadd.s32 %v1169, %v1165
      %v1174 = vadd.s32 %v1170, %v1172
      %v1175 = vadd.s32 %v1174, %v1164
      %v1176 = vadd.s32 %v1175, %v1166
      %v1177 = vshrl.u32 %v1176, 4
      %v1178 = vmul.u32 %v1177, 18
      %v1179 = vsub.s32 %v1155, %v1178
      %v1180 = vsub.s32 0, %v1179
      %v1181 = vsel %vm1153, %v1180, %v1179
      %vm1182 = vcmp.lt.s32.totalorder %v278, 0
      %v1183 = vsub.s32 0, %v278
      %v1184 = vsel %vm1182, %v1183, %v278
      %v1185 = vand.u32 %v1184, 65535
      %v1186 = vshrl.u32 %v1184, 16
      %v1188 = vmul.u32 %v1185, 14564
      %v1189 = vmul.u32 %v1185, 58254
      %v1190 = vmul.u32 %v1186, 14564
      %v1191 = vmul.u32 %v1186, 58254
      %v1192 = vshll.u32 %v1189, 16
      %v1193 = vshrl.u32 %v1189, 16
      %v1194 = vshll.u32 %v1190, 16
      %v1195 = vshrl.u32 %v1190, 16
      %vm1196 = vc.u32 %v1188, %v1192
      %v1197 = vsel %vm1196, 1, 0
      %v1198 = vadd.s32 %v1188, %v1192
      %v1199 = vadd.s32 %v1191, %v1197
      %vm1200 = vc.u32 %v1198, %v1194
      %v1201 = vsel %vm1200, 1, 0
      %v1202 = vadd.s32 %v1198, %v1194
      %v1203 = vadd.s32 %v1199, %v1201
      %v1204 = vadd.s32 %v1203, %v1193
      %v1205 = vadd.s32 %v1204, %v1195
      %v1206 = vshrl.u32 %v1205, 4
      %v1207 = vmul.u32 %v1206, 18
      %v1208 = vsub.s32 %v1184, %v1207
      %v1209 = vsub.s32 0, %v1208
      %v1210 = vsel %vm1182, %v1209, %v1208
      %vm1211 = vcmp.lt.s32.totalorder %v279, 0
      %v1212 = vsub.s32 0, %v279
      %v1213 = vsel %vm1211, %v1212, %v279
      %v1214 = vand.u32 %v1213, 65535
      %v1215 = vshrl.u32 %v1213, 16
      %v1217 = vmul.u32 %v1214, 14564
      %v1218 = vmul.u32 %v1214, 58254
      %v1219 = vmul.u32 %v1215, 14564
      %v1220 = vmul.u32 %v1215, 58254
      %v1221 = vshll.u32 %v1218, 16
      %v1222 = vshrl.u32 %v1218, 16
      %v1223 = vshll.u32 %v1219, 16
      %v1224 = vshrl.u32 %v1219, 16
      %vm1225 = vc.u32 %v1217, %v1221
      %v1226 = vsel %vm1225, 1, 0
      %v1227 = vadd.s32 %v1217, %v1221
      %v1228 = vadd.s32 %v1220, %v1226
      %vm1229 = vc.u32 %v1227, %v1223
      %v1230 = vsel %vm1229, 1, 0
      %v1231 = vadd.s32 %v1227, %v1223
      %v1232 = vadd.s32 %v1228, %v1230
      %v1233 = vadd.s32 %v1232, %v1222
      %v1234 = vadd.s32 %v1233, %v1224
      %v1235 = vshrl.u32 %v1234, 4
      %v1236 = vmul.u32 %v1235, 18
      %v1237 = vsub.s32 %v1213, %v1236
      %v1238 = vsub.s32 0, %v1237
      %v1239 = vsel %vm1211, %v1238, %v1237
      %vm1240 = vcmp.lt.s32.totalorder %v280, 0
      %v1241 = vsub.s32 0, %v280
      %v1242 = vsel %vm1240, %v1241, %v280
      %v1243 = vand.u32 %v1242, 65535
      %v1244 = vshrl.u32 %v1242, 16
      %v1246 = vmul.u32 %v1243, 14564
      %v1247 = vmul.u32 %v1243, 58254
      %v1248 = vmul.u32 %v1244, 14564
      %v1249 = vmul.u32 %v1244, 58254
      %v1250 = vshll.u32 %v1247, 16
      %v1251 = vshrl.u32 %v1247, 16
      %v1252 = vshll.u32 %v1248, 16
      %v1253 = vshrl.u32 %v1248, 16
      %vm1254 = vc.u32 %v1246, %v1250
      %v1255 = vsel %vm1254, 1, 0
      %v1256 = vadd.s32 %v1246, %v1250
      %v1257 = vadd.s32 %v1249, %v1255
      %vm1258 = vc.u32 %v1256, %v1252
      %v1259 = vsel %vm1258, 1, 0
      %v1260 = vadd.s32 %v1256, %v1252
      %v1261 = vadd.s32 %v1257, %v1259
      %v1262 = vadd.s32 %v1261, %v1251
      %v1263 = vadd.s32 %v1262, %v1253
      %v1264 = vshrl.u32 %v1263, 4
      %v1265 = vmul.u32 %v1264, 18
      %v1266 = vsub.s32 %v1242, %v1265
      %v1267 = vsub.s32 0, %v1266
      %v1268 = vsel %vm1240, %v1267, %v1266
      %vm1269 = vcmp.lt.s32.totalorder %v281, 0
      %v1270 = vsub.s32 0, %v281
      %v1271 = vsel %vm1269, %v1270, %v281
      %v1272 = vand.u32 %v1271, 65535
      %v1273 = vshrl.u32 %v1271, 16
      %v1275 = vmul.u32 %v1272, 14564
      %v1276 = vmul.u32 %v1272, 58254
      %v1277 = vmul.u32 %v1273, 14564
      %v1278 = vmul.u32 %v1273, 58254
      %v1279 = vshll.u32 %v1276, 16
      %v1280 = vshrl.u32 %v1276, 16
      %v1281 = vshll.u32 %v1277, 16
      %v1282 = vshrl.u32 %v1277, 16
      %vm1283 = vc.u32 %v1275, %v1279
      %v1284 = vsel %vm1283, 1, 0
      %v1285 = vadd.s32 %v1275, %v1279
      %v1286 = vadd.s32 %v1278, %v1284
      %vm1287 = vc.u32 %v1285, %v1281
      %v1288 = vsel %vm1287, 1, 0
      %v1289 = vadd.s32 %v1285, %v1281
      %v1290 = vadd.s32 %v1286, %v1288
      %v1291 = vadd.s32 %v1290, %v1280
      %v1292 = vadd.s32 %v1291, %v1282
      %v1293 = vshrl.u32 %v1292, 4
      %v1294 = vmul.u32 %v1293, 18
      %v1295 = vsub.s32 %v1271, %v1294
      %v1296 = vsub.s32 0, %v1295
      %v1297 = vsel %vm1269, %v1296, %v1295
      %vm1298 = vcmp.lt.s32.totalorder %v282, 0
      %v1299 = vsub.s32 0, %v282
      %v1300 = vsel %vm1298, %v1299, %v282
      %v1301 = vand.u32 %v1300, 65535
      %v1302 = vshrl.u32 %v1300, 16
      %v1304 = vmul.u32 %v1301, 14564
      %v1305 = vmul.u32 %v1301, 58254
      %v1306 = vmul.u32 %v1302, 14564
      %v1307 = vmul.u32 %v1302, 58254
      %v1308 = vshll.u32 %v1305, 16
      %v1309 = vshrl.u32 %v1305, 16
      %v1310 = vshll.u32 %v1306, 16
      %v1311 = vshrl.u32 %v1306, 16
      %vm1312 = vc.u32 %v1304, %v1308
      %v1313 = vsel %vm1312, 1, 0
      %v1314 = vadd.s32 %v1304, %v1308
      %v1315 = vadd.s32 %v1307, %v1313
      %vm1316 = vc.u32 %v1314, %v1310
      %v1317 = vsel %vm1316, 1, 0
      %v1318 = vadd.s32 %v1314, %v1310
      %v1319 = vadd.s32 %v1315, %v1317
      %v1320 = vadd.s32 %v1319, %v1309
      %v1321 = vadd.s32 %v1320, %v1311
      %v1322 = vshrl.u32 %v1321, 4
      %v1323 = vmul.u32 %v1322, 18
      %v1324 = vsub.s32 %v1300, %v1323
      %v1325 = vsub.s32 0, %v1324
      %v1326 = vsel %vm1298, %v1325, %v1324
      %vm1327 = vcmp.ne.s32.totalorder %v311, 0
      %vm1328 = vcmp.ne.s32.totalorder %v340, 0
      %vm1329 = vcmp.ne.s32.totalorder %v369, 0
      %vm1330 = vcmp.ne.s32.totalorder %v398, 0
      %vm1331 = vcmp.ne.s32.totalorder %v427, 0
      %vm1332 = vcmp.ne.s32.totalorder %v456, 0
      %vm1333 = vcmp.ne.s32.totalorder %v485, 0
      %vm1334 = vcmp.ne.s32.totalorder %v514, 0
      %vm1335 = vcmp.ne.s32.totalorder %v543, 0
      %vm1336 = vcmp.ne.s32.totalorder %v572, 0
      %vm1337 = vcmp.ne.s32.totalorder %v601, 0
      %vm1338 = vcmp.ne.s32.totalorder %v630, 0
      %vm1339 = vcmp.ne.s32.totalorder %v659, 0
      %vm1340 = vcmp.ne.s32.totalorder %v688, 0
      %vm1341 = vcmp.ne.s32.totalorder %v717, 0
      %vm1342 = vcmp.ne.s32.totalorder %v746, 0
      %vm1343 = vcmp.ne.s32.totalorder %v775, 0
      %vm1344 = vcmp.ne.s32.totalorder %v804, 0
      %vm1345 = vcmp.ne.s32.totalorder %v833, 0
      %vm1346 = vcmp.ne.s32.totalorder %v862, 0
      %vm1347 = vcmp.ne.s32.totalorder %v891, 0
      %vm1348 = vcmp.ne.s32.totalorder %v920, 0
      %vm1349 = vcmp.ne.s32.totalorder %v949, 0
      %vm1350 = vcmp.ne.s32.totalorder %v978, 0
      %vm1351 = vcmp.ne.s32.totalorder %v1007, 0
      %vm1352 = vcmp.ne.s32.totalorder %v1036, 0
      %vm1353 = vcmp.ne.s32.totalorder %v1065, 0
      %vm1354 = vcmp.ne.s32.totalorder %v1094, 0
      %vm1355 = vcmp.ne.s32.totalorder %v1123, 0
      %vm1356 = vcmp.ne.s32.totalorder %v1152, 0
      %vm1357 = vcmp.ne.s32.totalorder %v1181, 0
      %vm1358 = vcmp.ne.s32.totalorder %v1210, 0
      %vm1359 = vcmp.ne.s32.totalorder %v1239, 0
      %vm1360 = vcmp.ne.s32.totalorder %v1268, 0
      %vm1361 = vcmp.ne.s32.totalorder %v1297, 0
      %vm1362 = vcmp.ne.s32.totalorder %v1326, 0
      %vm1363 = vcmp.lt.s32.totalorder %v311, 0
      %vm1364 = vcmp.lt.s32.totalorder %v340, 0
      %vm1365 = vcmp.lt.s32.totalorder %v369, 0
      %vm1366 = vcmp.lt.s32.totalorder %v398, 0
      %vm1367 = vcmp.lt.s32.totalorder %v427, 0
      %vm1368 = vcmp.lt.s32.totalorder %v456, 0
      %vm1369 = vcmp.lt.s32.totalorder %v485, 0
      %vm1370 = vcmp.lt.s32.totalorder %v514, 0
      %vm1371 = vcmp.lt.s32.totalorder %v543, 0
      %vm1372 = vcmp.lt.s32.totalorder %v572, 0
      %vm1373 = vcmp.lt.s32.totalorder %v601, 0
      %vm1374 = vcmp.lt.s32.totalorder %v630, 0
      %vm1375 = vcmp.lt.s32.totalorder %v659, 0
      %vm1376 = vcmp.lt.s32.totalorder %v688, 0
      %vm1377 = vcmp.lt.s32.totalorder %v717, 0
      %vm1378 = vcmp.lt.s32.totalorder %v746, 0
      %vm1379 = vcmp.lt.s32.totalorder %v775, 0
      %vm1380 = vcmp.lt.s32.totalorder %v804, 0
      %vm1381 = vcmp.lt.s32.totalorder %v833, 0
      %vm1382 = vcmp.lt.s32.totalorder %v862, 0
      %vm1383 = vcmp.lt.s32.totalorder %v891, 0
      %vm1384 = vcmp.lt.s32.totalorder %v920, 0
      %vm1385 = vcmp.lt.s32.totalorder %v949, 0
      %vm1386 = vcmp.lt.s32.totalorder %v978, 0
      %vm1387 = vcmp.lt.s32.totalorder %v1007, 0
      %vm1388 = vcmp.lt.s32.totalorder %v1036, 0
      %vm1389 = vcmp.lt.s32.totalorder %v1065, 0
      %vm1390 = vcmp.lt.s32.totalorder %v1094, 0
      %vm1391 = vcmp.lt.s32.totalorder %v1123, 0
      %vm1392 = vcmp.lt.s32.totalorder %v1152, 0
      %vm1393 = vcmp.lt.s32.totalorder %v1181, 0
      %vm1394 = vcmp.lt.s32.totalorder %v1210, 0
      %vm1395 = vcmp.lt.s32.totalorder %v1239, 0
      %vm1396 = vcmp.lt.s32.totalorder %v1268, 0
      %vm1397 = vcmp.lt.s32.totalorder %v1297, 0
      %vm1398 = vcmp.lt.s32.totalorder %v1326, 0
      %vm1399 = vmand %vm1363, %vm1327
      %vm1400 = vmand %vm1364, %vm1328
      %vm1401 = vmand %vm1365, %vm1329
      %vm1402 = vmand %vm1366, %vm1330
      %vm1403 = vmand %vm1367, %vm1331
      %vm1404 = vmand %vm1368, %vm1332
      %vm1405 = vmand %vm1369, %vm1333
      %vm1406 = vmand %vm1370, %vm1334
      %vm1407 = vmand %vm1371, %vm1335
      %vm1408 = vmand %vm1372, %vm1336
      %vm1409 = vmand %vm1373, %vm1337
      %vm1410 = vmand %vm1374, %vm1338
      %vm1411 = vmand %vm1375, %vm1339
      %vm1412 = vmand %vm1376, %vm1340
      %vm1413 = vmand %vm1377, %vm1341
      %vm1414 = vmand %vm1378, %vm1342
      %vm1415 = vmand %vm1379, %vm1343
      %vm1416 = vmand %vm1380, %vm1344
      %vm1417 = vmand %vm1381, %vm1345
      %vm1418 = vmand %vm1382, %vm1346
      %vm1419 = vmand %vm1383, %vm1347
      %vm1420 = vmand %vm1384, %vm1348
      %vm1421 = vmand %vm1385, %vm1349
      %vm1422 = vmand %vm1386, %vm1350
      %vm1423 = vmand %vm1387, %vm1351
      %vm1424 = vmand %vm1388, %vm1352
      %vm1425 = vmand %vm1389, %vm1353
      %vm1426 = vmand %vm1390, %vm1354
      %vm1427 = vmand %vm1391, %vm1355
      %vm1428 = vmand %vm1392, %vm1356
      %vm1429 = vmand %vm1393, %vm1357
      %vm1430 = vmand %vm1394, %vm1358
      %vm1431 = vmand %vm1395, %vm1359
      %vm1432 = vmand %vm1396, %vm1360
      %vm1433 = vmand %vm1397, %vm1361
      %vm1434 = vmand %vm1398, %vm1362
      %v1435 = vadd.s32 %v311, 18
      %v1436 = vadd.s32 %v340, 18
      %v1437 = vadd.s32 %v369, 18
      %v1438 = vadd.s32 %v398, 18
      %v1439 = vadd.s32 %v427, 18
      %v1440 = vadd.s32 %v456, 18
      %v1441 = vadd.s32 %v485, 18
      %v1442 = vadd.s32 %v514, 18
      %v1443 = vadd.s32 %v543, 18
      %v1444 = vadd.s32 %v572, 18
      %v1445 = vadd.s32 %v601, 18
      %v1446 = vadd.s32 %v630, 18
      %v1447 = vadd.s32 %v659, 18
      %v1448 = vadd.s32 %v688, 18
      %v1449 = vadd.s32 %v717, 18
      %v1450 = vadd.s32 %v746, 18
      %v1451 = vadd.s32 %v775, 18
      %v1452 = vadd.s32 %v804, 18
      %v1453 = vadd.s32 %v833, 18
      %v1454 = vadd.s32 %v862, 18
      %v1455 = vadd.s32 %v891, 18
      %v1456 = vadd.s32 %v920, 18
      %v1457 = vadd.s32 %v949, 18
      %v1458 = vadd.s32 %v978, 18
      %v1459 = vadd.s32 %v1007, 18
      %v1460 = vadd.s32 %v1036, 18
      %v1461 = vadd.s32 %v1065, 18
      %v1462 = vadd.s32 %v1094, 18
      %v1463 = vadd.s32 %v1123, 18
      %v1464 = vadd.s32 %v1152, 18
      %v1465 = vadd.s32 %v1181, 18
      %v1466 = vadd.s32 %v1210, 18
      %v1467 = vadd.s32 %v1239, 18
      %v1468 = vadd.s32 %v1268, 18
      %v1469 = vadd.s32 %v1297, 18
      %v1470 = vadd.s32 %v1326, 18
      %v1471 = vsel %vm1399, %v1435, %v311
      %v1472 = vsel %vm1400, %v1436, %v340
      %v1473 = vsel %vm1401, %v1437, %v369
      %v1474 = vsel %vm1402, %v1438, %v398
      %v1475 = vsel %vm1403, %v1439, %v427
      %v1476 = vsel %vm1404, %v1440, %v456
      %v1477 = vsel %vm1405, %v1441, %v485
      %v1478 = vsel %vm1406, %v1442, %v514
      %v1479 = vsel %vm1407, %v1443, %v543
      %v1480 = vsel %vm1408, %v1444, %v572
      %v1481 = vsel %vm1409, %v1445, %v601
      %v1482 = vsel %vm1410, %v1446, %v630
      %v1483 = vsel %vm1411, %v1447, %v659
      %v1484 = vsel %vm1412, %v1448, %v688
      %v1485 = vsel %vm1413, %v1449, %v717
      %v1486 = vsel %vm1414, %v1450, %v746
      %v1487 = vsel %vm1415, %v1451, %v775
      %v1488 = vsel %vm1416, %v1452, %v804
      %v1489 = vsel %vm1417, %v1453, %v833
      %v1490 = vsel %vm1418, %v1454, %v862
      %v1491 = vsel %vm1419, %v1455, %v891
      %v1492 = vsel %vm1420, %v1456, %v920
      %v1493 = vsel %vm1421, %v1457, %v949
      %v1494 = vsel %vm1422, %v1458, %v978
      %v1495 = vsel %vm1423, %v1459, %v1007
      %v1496 = vsel %vm1424, %v1460, %v1036
      %v1497 = vsel %vm1425, %v1461, %v1065
      %v1498 = vsel %vm1426, %v1462, %v1094
      %v1499 = vsel %vm1427, %v1463, %v1123
      %v1500 = vsel %vm1428, %v1464, %v1152
      %v1501 = vsel %vm1429, %v1465, %v1181
      %v1502 = vsel %vm1430, %v1466, %v1210
      %v1503 = vsel %vm1431, %v1467, %v1239
      %v1504 = vsel %vm1432, %v1468, %v1268
      %v1505 = vsel %vm1433, %v1469, %v1297
      %v1506 = vsel %vm1434, %v1470, %v1326
      %vm1507 = vcmp.lt.s32.totalorder %v1471, 16
      %vm1508 = vcmp.lt.s32.totalorder %v1472, 16
      %vm1509 = vcmp.lt.s32.totalorder %v1473, 16
      %vm1510 = vcmp.lt.s32.totalorder %v1474, 16
      %vm1511 = vcmp.lt.s32.totalorder %v1475, 16
      %vm1512 = vcmp.lt.s32.totalorder %v1476, 16
      %vm1513 = vcmp.lt.s32.totalorder %v1477, 16
      %vm1514 = vcmp.lt.s32.totalorder %v1478, 16
      %vm1515 = vcmp.lt.s32.totalorder %v1479, 16
      %vm1516 = vcmp.lt.s32.totalorder %v1480, 16
      %vm1517 = vcmp.lt.s32.totalorder %v1481, 16
      %vm1518 = vcmp.lt.s32.totalorder %v1482, 16
      %vm1519 = vcmp.lt.s32.totalorder %v1483, 16
      %vm1520 = vcmp.lt.s32.totalorder %v1484, 16
      %vm1521 = vcmp.lt.s32.totalorder %v1485, 16
      %vm1522 = vcmp.lt.s32.totalorder %v1486, 16
      %vm1523 = vcmp.lt.s32.totalorder %v1487, 16
      %vm1524 = vcmp.lt.s32.totalorder %v1488, 16
      %vm1525 = vcmp.lt.s32.totalorder %v1489, 16
      %vm1526 = vcmp.lt.s32.totalorder %v1490, 16
      %vm1527 = vcmp.lt.s32.totalorder %v1491, 16
      %vm1528 = vcmp.lt.s32.totalorder %v1492, 16
      %vm1529 = vcmp.lt.s32.totalorder %v1493, 16
      %vm1530 = vcmp.lt.s32.totalorder %v1494, 16
      %vm1531 = vcmp.lt.s32.totalorder %v1495, 16
      %vm1532 = vcmp.lt.s32.totalorder %v1496, 16
      %vm1533 = vcmp.lt.s32.totalorder %v1497, 16
      %vm1534 = vcmp.lt.s32.totalorder %v1498, 16
      %vm1535 = vcmp.lt.s32.totalorder %v1499, 16
      %vm1536 = vcmp.lt.s32.totalorder %v1500, 16
      %vm1537 = vcmp.lt.s32.totalorder %v1501, 16
      %vm1538 = vcmp.lt.s32.totalorder %v1502, 16
      %vm1539 = vcmp.lt.s32.totalorder %v1503, 16
      %vm1540 = vcmp.lt.s32.totalorder %v1504, 16
      %vm1541 = vcmp.lt.s32.totalorder %v1505, 16
      %vm1542 = vcmp.lt.s32.totalorder %v1506, 16
      %v1543 = vld [vmem:[%s219] sm:$0xf]
      %v1544 = vld [vmem:[%s219 + $0x4] sm:$0xf]
      %v1545 = vld [vmem:[%s219 + $0x8] sm:$0xf]
      %v1546 = vld [vmem:[%s219 + $0xc] sm:$0xf]
      %v1547 = vld [vmem:[%s219 + $0x10] sm:$0xf]
      %v1548 = vld [vmem:[%s219 + $0x14] sm:$0xf]
      %v1549 = vld [vmem:[%s219 + $0x18] sm:$0xf]
      %v1550 = vld [vmem:[%s219 + $0x1c] sm:$0xf]
      %v1551 = vld [vmem:[%s219 + $0x20] sm:$0xf]
      %v1552 = vld [vmem:[%s219 + $0x24] sm:$0xf]
      %v1553 = vld [vmem:[%s219 + $0x28] sm:$0xf]
      %v1554 = vld [vmem:[%s219 + $0x2c] sm:$0xf]
      %v1555 = vld [vmem:[%s219 + $0x30] sm:$0xf]
      %v1556 = vld [vmem:[%s219 + $0x34] sm:$0xf]
      %v1557 = vld [vmem:[%s219 + $0x38] sm:$0xf]
      %v1558 = vld [vmem:[%s219 + $0x3c] sm:$0xf]
      %v1559 = vld [vmem:[%s219 + $0x40] sm:$0xf]
      %v1560 = vld [vmem:[%s219 + $0x44] sm:$0xf]
      %v1561 = vld [vmem:[%s219 + $0x48] sm:$0xf]
      %v1562 = vld [vmem:[%s219 + $0x4c] sm:$0xf]
      %v1563 = vld [vmem:[%s219 + $0x50] sm:$0xf]
      %v1564 = vld [vmem:[%s219 + $0x54] sm:$0xf]
      %v1565 = vld [vmem:[%s219 + $0x58] sm:$0xf]
      %v1566 = vld [vmem:[%s219 + $0x5c] sm:$0xf]
      %v1567 = vld [vmem:[%s219 + $0x60] sm:$0xf]
      %v1568 = vld [vmem:[%s219 + $0x64] sm:$0xf]
      %v1569 = vld [vmem:[%s219 + $0x68] sm:$0xf]
      %v1570 = vld [vmem:[%s219 + $0x6c] sm:$0xf]
      %v1571 = vld [vmem:[%s219 + $0x70] sm:$0xf]
      %v1572 = vld [vmem:[%s219 + $0x74] sm:$0xf]
      %v1573 = vld [vmem:[%s219 + $0x78] sm:$0xf]
      %v1574 = vld [vmem:[%s219 + $0x7c] sm:$0xf]
      %v1575 = vld [vmem:[%s219 + $0x80] sm:$0xf]
      %v1576 = vld [vmem:[%s219 + $0x84] sm:$0xf]
      %v1577 = vld [vmem:[%s219 + $0x88] sm:$0xf]
      %v1578 = vld [vmem:[%s219 + $0x8c] sm:$0xf]
      %v1579 = vld [vmem:[%s219 + $0x90] sm:$0x1]
      %v1580 = vld [vmem:[%s219] sm:$0xe]
      %v1617 = vunpack.c.l.b16 %v1543
      %v1618 = vunpack.c.l.b16 %v1544
      %v1619 = vunpack.c.l.b16 %v1545
      %v1620 = vunpack.c.l.b16 %v1546
      %v1621 = vunpack.c.l.b16 %v1547
      %v1622 = vunpack.c.l.b16 %v1548
      %v1623 = vunpack.c.l.b16 %v1549
      %v1624 = vunpack.c.l.b16 %v1550
      %v1625 = vunpack.c.l.b16 %v1551
      %v1626 = vunpack.c.l.b16 %v1552
      %v1627 = vunpack.c.l.b16 %v1553
      %v1628 = vunpack.c.l.b16 %v1554
      %v1629 = vunpack.c.l.b16 %v1555
      %v1630 = vunpack.c.l.b16 %v1556
      %v1631 = vunpack.c.l.b16 %v1557
      %v1632 = vunpack.c.l.b16 %v1558
      %v1633 = vunpack.c.l.b16 %v1559
      %v1634 = vunpack.c.l.b16 %v1560
      %v1635 = vunpack.c.l.b16 %v1561
      %v1636 = vunpack.c.l.b16 %v1562
      %v1637 = vunpack.c.l.b16 %v1563
      %v1638 = vunpack.c.l.b16 %v1564
      %v1639 = vunpack.c.l.b16 %v1565
      %v1640 = vunpack.c.l.b16 %v1566
      %v1641 = vunpack.c.l.b16 %v1567
      %v1642 = vunpack.c.l.b16 %v1568
      %v1643 = vunpack.c.l.b16 %v1569
      %v1644 = vunpack.c.l.b16 %v1570
      %v1645 = vunpack.c.l.b16 %v1571
      %v1646 = vunpack.c.l.b16 %v1572
      %v1647 = vunpack.c.l.b16 %v1573
      %v1648 = vunpack.c.l.b16 %v1574
      %v1649 = vunpack.c.l.b16 %v1575
      %v1650 = vunpack.c.l.b16 %v1576
      %v1651 = vunpack.c.l.b16 %v1577
      %v1652 = vunpack.c.l.b16 %v1578
      %v1653 = vpack.c.b16 %v1618, %v1617
      %v1654 = vpack.c.b16 %v1620, %v1619
      %v1655 = vpack.c.b16 %v1622, %v1621
      %v1656 = vpack.c.b16 %v1624, %v1623
      %v1657 = vpack.c.b16 %v1626, %v1625
      %v1658 = vpack.c.b16 %v1628, %v1627
      %v1659 = vpack.c.b16 %v1630, %v1629
      %v1660 = vpack.c.b16 %v1632, %v1631
      %v1661 = vpack.c.b16 %v1634, %v1633
      %v1662 = vpack.c.b16 %v1636, %v1635
      %v1663 = vpack.c.b16 %v1638, %v1637
      %v1664 = vpack.c.b16 %v1640, %v1639
      %v1665 = vpack.c.b16 %v1642, %v1641
      %v1666 = vpack.c.b16 %v1644, %v1643
      %v1667 = vpack.c.b16 %v1646, %v1645
      %v1668 = vpack.c.b16 %v1648, %v1647
      %v1669 = vpack.c.b16 %v1650, %v1649
      %v1670 = vpack.c.b16 %v1652, %v1651
      %v1672 = vunpack.c.l.b16 %v1579
      %v1673 = vpack.c.b16 %v1672, %v1672
      %vm1674 = vsmask.f32 7424
      %v1676 = vshrl.u32 %v1653, 16
      %v1678 = vshll.u32 %v1653, 16
      %v1680 = vrot.slane %v1678, 1
      %v1681 = vor.u32 %v1676, %v1680
      %v1683 = vshll.u32 %v1654, 16
      %v1685 = vrot.slane %v1683, 1
      %v1686 = vsel %vm1674, %v1681, %v1685
      %v1687 = vshrl.u32 %v1654, 16
      %v1689 = vor.u32 %v1687, %v1685
      %v1691 = vshll.u32 %v1655, 16
      %v1693 = vrot.slane %v1691, 1
      %v1694 = vsel %vm1674, %v1689, %v1693
      %v1695 = vshrl.u32 %v1655, 16
      %v1697 = vor.u32 %v1695, %v1693
      %v1699 = vshll.u32 %v1656, 16
      %v1701 = vrot.slane %v1699, 1
      %v1702 = vsel %vm1674, %v1697, %v1701
      %v1703 = vshrl.u32 %v1656, 16
      %v1705 = vor.u32 %v1703, %v1701
      %v1707 = vshll.u32 %v1657, 16
      %v1709 = vrot.slane %v1707, 1
      %v1710 = vsel %vm1674, %v1705, %v1709
      %v1711 = vshrl.u32 %v1657, 16
      %v1713 = vor.u32 %v1711, %v1709
      %v1715 = vshll.u32 %v1658, 16
      %v1717 = vrot.slane %v1715, 1
      %v1718 = vsel %vm1674, %v1713, %v1717
      %v1719 = vshrl.u32 %v1658, 16
      %v1721 = vor.u32 %v1719, %v1717
      %v1723 = vshll.u32 %v1659, 16
      %v1725 = vrot.slane %v1723, 1
      %v1726 = vsel %vm1674, %v1721, %v1725
      %v1727 = vshrl.u32 %v1659, 16
      %v1729 = vor.u32 %v1727, %v1725
      %v1731 = vshll.u32 %v1660, 16
      %v1733 = vrot.slane %v1731, 1
      %v1734 = vsel %vm1674, %v1729, %v1733
      %v1735 = vshrl.u32 %v1660, 16
      %v1737 = vor.u32 %v1735, %v1733
      %v1739 = vshll.u32 %v1661, 16
      %v1741 = vrot.slane %v1739, 1
      %v1742 = vsel %vm1674, %v1737, %v1741
      %v1743 = vshrl.u32 %v1661, 16
      %v1745 = vor.u32 %v1743, %v1741
      %v1747 = vshll.u32 %v1662, 16
      %v1749 = vrot.slane %v1747, 1
      %v1750 = vsel %vm1674, %v1745, %v1749
      %v1751 = vshrl.u32 %v1662, 16
      %v1753 = vor.u32 %v1751, %v1749
      %v1755 = vshll.u32 %v1663, 16
      %v1757 = vrot.slane %v1755, 1
      %v1758 = vsel %vm1674, %v1753, %v1757
      %v1759 = vshrl.u32 %v1663, 16
      %v1761 = vor.u32 %v1759, %v1757
      %v1763 = vshll.u32 %v1664, 16
      %v1765 = vrot.slane %v1763, 1
      %v1766 = vsel %vm1674, %v1761, %v1765
      %v1767 = vshrl.u32 %v1664, 16
      %v1769 = vor.u32 %v1767, %v1765
      %v1771 = vshll.u32 %v1665, 16
      %v1773 = vrot.slane %v1771, 1
      %v1774 = vsel %vm1674, %v1769, %v1773
      %v1775 = vshrl.u32 %v1665, 16
      %v1777 = vor.u32 %v1775, %v1773
      %v1779 = vshll.u32 %v1666, 16
      %v1781 = vrot.slane %v1779, 1
      %v1782 = vsel %vm1674, %v1777, %v1781
      %v1783 = vshrl.u32 %v1666, 16
      %v1785 = vor.u32 %v1783, %v1781
      %v1787 = vshll.u32 %v1667, 16
      %v1789 = vrot.slane %v1787, 1
      %v1790 = vsel %vm1674, %v1785, %v1789
      %v1791 = vshrl.u32 %v1667, 16
      %v1793 = vor.u32 %v1791, %v1789
      %v1795 = vshll.u32 %v1668, 16
      %v1797 = vrot.slane %v1795, 1
      %v1798 = vsel %vm1674, %v1793, %v1797
      %v1799 = vshrl.u32 %v1668, 16
      %v1801 = vor.u32 %v1799, %v1797
      %v1803 = vshll.u32 %v1669, 16
      %v1805 = vrot.slane %v1803, 1
      %v1806 = vsel %vm1674, %v1801, %v1805
      %v1807 = vshrl.u32 %v1669, 16
      %v1809 = vor.u32 %v1807, %v1805
      %v1811 = vshll.u32 %v1670, 16
      %v1813 = vrot.slane %v1811, 1
      %v1814 = vsel %vm1674, %v1809, %v1813
      %v1815 = vshrl.u32 %v1670, 16
      %v1817 = vor.u32 %v1815, %v1813
      %v1819 = vshll.u32 %v1673, 16
      %v1821 = vrot.slane %v1819, 1
      %v1822 = vsel %vm1674, %v1817, %v1821
      %1823 = vrot.lane.b32.xlu0 %v1686, 64
      %v1824 = vpop.permute.xlu0 %1823
      %1825 = vrot.lane.b32.xlu0 %v1694, 64
      %v1826 = vpop.permute.xlu0 %1825
      %1827 = vrot.lane.b32.xlu0 %v1702, 64
      %v1828 = vpop.permute.xlu0 %1827
      %1829 = vrot.lane.b32.xlu0 %v1710, 64
      %v1830 = vpop.permute.xlu0 %1829
      %1831 = vrot.lane.b32.xlu0 %v1718, 64
      %v1832 = vpop.permute.xlu0 %1831
      %1833 = vrot.lane.b32.xlu0 %v1726, 64
      %v1834 = vpop.permute.xlu0 %1833
      %1835 = vrot.lane.b32.xlu0 %v1734, 64
      %v1836 = vpop.permute.xlu0 %1835
      %1837 = vrot.lane.b32.xlu0 %v1742, 64
      %v1838 = vpop.permute.xlu0 %1837
      %1839 = vrot.lane.b32.xlu0 %v1750, 64
      %v1840 = vpop.permute.xlu0 %1839
      %1841 = vrot.lane.b32.xlu0 %v1758, 64
      %v1842 = vpop.permute.xlu0 %1841
      %1843 = vrot.lane.b32.xlu0 %v1766, 64
      %v1844 = vpop.permute.xlu0 %1843
      %1845 = vrot.lane.b32.xlu0 %v1774, 64
      %v1846 = vpop.permute.xlu0 %1845
      %1847 = vrot.lane.b32.xlu0 %v1782, 64
      %v1848 = vpop.permute.xlu0 %1847
      %1849 = vrot.lane.b32.xlu0 %v1790, 64
      %v1850 = vpop.permute.xlu0 %1849
      %1851 = vrot.lane.b32.xlu0 %v1798, 64
      %v1852 = vpop.permute.xlu0 %1851
      %1853 = vrot.lane.b32.xlu0 %v1806, 64
      %v1854 = vpop.permute.xlu0 %1853
      %1855 = vrot.lane.b32.xlu0 %v1814, 64
      %v1856 = vpop.permute.xlu0 %1855
      %1857 = vrot.lane.b32.xlu0 %v1822, 64
      %v1858 = vpop.permute.xlu0 %1857
      %v1860 = vunpack.c.l.b16 %v1580
      %v1861 = vpack.c.b16 %v1618, %v1860
      %vm1862 = vcmask 1046528
      %v1863 = vrot.slane %v1861, 1
      %v1864 = vrot.slane %v1654, 1
      %v1865 = vsel %vm1862, %v1863, %v1864
      %v1866 = vrot.slane %v1655, 1
      %v1867 = vsel %vm1862, %v1864, %v1866
      %v1868 = vrot.slane %v1656, 1
      %v1869 = vsel %vm1862, %v1866, %v1868
      %v1870 = vrot.slane %v1657, 1
      %v1871 = vsel %vm1862, %v1868, %v1870
      %v1872 = vrot.slane %v1658, 1
      %v1873 = vsel %vm1862, %v1870, %v1872
      %v1874 = vrot.slane %v1659, 1
      %v1875 = vsel %vm1862, %v1872, %v1874
      %v1876 = vrot.slane %v1660, 1
      %v1877 = vsel %vm1862, %v1874, %v1876
      %v1878 = vrot.slane %v1661, 1
      %v1879 = vsel %vm1862, %v1876, %v1878
      %v1880 = vrot.slane %v1662, 1
      %v1881 = vsel %vm1862, %v1878, %v1880
      %v1882 = vrot.slane %v1663, 1
      %v1883 = vsel %vm1862, %v1880, %v1882
      %v1884 = vrot.slane %v1664, 1
      %v1885 = vsel %vm1862, %v1882, %v1884
      %v1886 = vrot.slane %v1665, 1
      %v1887 = vsel %vm1862, %v1884, %v1886
      %v1888 = vrot.slane %v1666, 1
      %v1889 = vsel %vm1862, %v1886, %v1888
      %v1890 = vrot.slane %v1667, 1
      %v1891 = vsel %vm1862, %v1888, %v1890
      %v1892 = vrot.slane %v1668, 1
      %v1893 = vsel %vm1862, %v1890, %v1892
      %v1894 = vrot.slane %v1669, 1
      %v1895 = vsel %vm1862, %v1892, %v1894
      %v1896 = vrot.slane %v1670, 1
      %v1897 = vsel %vm1862, %v1894, %v1896
      %v1898 = vrot.slane %v1673, 1
      %v1899 = vsel %vm1862, %v1896, %v1898
      %vm1900 = vcmask 523264
      %v1902 = vsel %vm1900, %v1653, %v1824
      %v1905 = vsel %vm1900, %v1654, %v1826
      %v1908 = vsel %vm1900, %v1655, %v1828
      %v1911 = vsel %vm1900, %v1656, %v1830
      %v1914 = vsel %vm1900, %v1657, %v1832
      %v1917 = vsel %vm1900, %v1658, %v1834
      %v1920 = vsel %vm1900, %v1659, %v1836
      %v1923 = vsel %vm1900, %v1660, %v1838
      %v1926 = vsel %vm1900, %v1661, %v1840
      %v1929 = vsel %vm1900, %v1662, %v1842
      %v1932 = vsel %vm1900, %v1663, %v1844
      %v1935 = vsel %vm1900, %v1664, %v1846
      %v1938 = vsel %vm1900, %v1665, %v1848
      %v1941 = vsel %vm1900, %v1666, %v1850
      %v1944 = vsel %vm1900, %v1667, %v1852
      %v1947 = vsel %vm1900, %v1668, %v1854
      %v1950 = vsel %vm1900, %v1669, %v1856
      %v1953 = vsel %vm1900, %v1670, %v1858
      %v1955 = vld [vmem:[%s1] sm:$0xf]
      %v1956 = vld [vmem:[%s1 + $0x4] sm:$0xf]
      %v1957 = vld [vmem:[%s1 + $0x8] sm:$0xf]
      %v1958 = vld [vmem:[%s1 + $0xc] sm:$0xf]
      %v1959 = vld [vmem:[%s1 + $0x10] sm:$0xf]
      %v1960 = vld [vmem:[%s1 + $0x14] sm:$0xf]
      %v1961 = vld [vmem:[%s1 + $0x18] sm:$0xf]
      %v1962 = vld [vmem:[%s1 + $0x1c] sm:$0xf]
      %v1963 = vld [vmem:[%s1 + $0x20] sm:$0xf]
      %v1964 = vld [vmem:[%s1 + $0x24] sm:$0xf]
      %v1965 = vld [vmem:[%s1 + $0x28] sm:$0xf]
      %v1966 = vld [vmem:[%s1 + $0x2c] sm:$0xf]
      %v1967 = vld [vmem:[%s1 + $0x30] sm:$0xf]
      %v1968 = vld [vmem:[%s1 + $0x34] sm:$0xf]
      %v1969 = vld [vmem:[%s1 + $0x38] sm:$0xf]
      %v1970 = vld [vmem:[%s1 + $0x3c] sm:$0xf]
      %v1971 = vld [vmem:[%s1 + $0x40] sm:$0xf]
      %v1972 = vld [vmem:[%s1 + $0x44] sm:$0xf]
      %v1973 = vld [vmem:[%s1 + $0x48] sm:$0xf]
      %v1974 = vld [vmem:[%s1 + $0x4c] sm:$0xf]
      %v1975 = vld [vmem:[%s1 + $0x50] sm:$0xf]
      %v1976 = vld [vmem:[%s1 + $0x54] sm:$0xf]
      %v1977 = vld [vmem:[%s1 + $0x58] sm:$0xf]
      %v1978 = vld [vmem:[%s1 + $0x5c] sm:$0xf]
      %v1979 = vld [vmem:[%s219 + $0x8] sm:$0xe]
      %v1980 = vld [vmem:[%s219 + $0x90] sm:$0xf]
      %v1981 = vld [vmem:[%s219 + $0x94] sm:$0xf]
      %v1982 = vld [vmem:[%s219 + $0x98] sm:$0x1]
      %v1983 = vld [vmem:[%s219 + $0x98] sm:$0x3]
      %v1984 = vld [vmem:[%s219 + $0x8] sm:$0xc]
      %v1989 = vunpack.c.l.b16 %v1979
      %v1990 = vunpack.c.l.b16 %v1980
      %v1991 = vunpack.c.l.b16 %v1981
      %v1992 = vunpack.c.l.b16 %v1982
      %v1993 = vpack.c.b16 %v1620, %v1989
      %v1994 = vpack.c.b16 %v1991, %v1990
      %v1995 = vpack.c.b16 %v1992, %v1992
      %v1997 = vunpack.c.l.b16 %v1983
      %v1998 = vpack.c.b16 %v1997, %v1997
      %v2000 = vshrl.u32 %v1993, 16
      %v2002 = vshll.u32 %v1993, 16
      %v2004 = vrot.slane %v2002, 1
      %v2005 = vor.u32 %v2000, %v2004
      %v2006 = vsel %vm1674, %v2005, %v1693
      %v2008 = vshll.u32 %v1994, 16
      %v2010 = vrot.slane %v2008, 1
      %v2011 = vsel %vm1674, %v1817, %v2010
      %v2012 = vshrl.u32 %v1994, 16
      %v2014 = vor.u32 %v2012, %v2010
      %v2016 = vshll.u32 %v1998, 16
      %v2018 = vrot.slane %v2016, 1
      %v2019 = vsel %vm1674, %v2014, %v2018
      %v2020 = vshrl.u32 %v1998, 16
      %v2022 = vor.u32 %v2020, %v2018
      %2023 = vrot.lane.b32.xlu0 %v2006, 64
      %v2024 = vpop.permute.xlu0 %2023
      %2025 = vrot.lane.b32.xlu0 %v2011, 64
      %v2026 = vpop.permute.xlu0 %2025
      %2027 = vrot.lane.b32.xlu0 %v2019, 64
      %v2028 = vpop.permute.xlu0 %2027
      %2029 = vrot.lane.b32.xlu0 %v2022, 64
      %v2030 = vpop.permute.xlu0 %2029
      %v2032 = vunpack.c.l.b16 %v1984
      %v2033 = vpack.c.b16 %v1620, %v2032
      %v2034 = vrot.slane %v2033, 1
      %v2035 = vsel %vm1862, %v2034, %v1866
      %v2036 = vrot.slane %v1994, 1
      %v2037 = vsel %vm1862, %v1896, %v2036
      %v2038 = vrot.slane %v1998, 1
      %v2039 = vsel %vm1862, %v2036, %v2038
      %v2041 = vsel %vm1900, %v1993, %v2024
      %v2043 = vsel %vm1900, %v1670, %v2026
      %v2045 = vsel %vm1900, %v1994, %v2028
      %v2048 = vsel %vm1900, %v1995, %v2030
      %s2049 = scalar_lea.vmem %s1, 96
      %v2050 = vld [vmem:[%s2049] sm:$0xf]
      %v2051 = vld [vmem:[%s2049 + $0x4] sm:$0xf]
      %v2052 = vld [vmem:[%s2049 + $0x8] sm:$0xf]
      %v2053 = vld [vmem:[%s2049 + $0xc] sm:$0xf]
      %v2054 = vld [vmem:[%s2049 + $0x10] sm:$0xf]
      %v2055 = vld [vmem:[%s2049 + $0x14] sm:$0xf]
      %v2056 = vld [vmem:[%s2049 + $0x18] sm:$0xf]
      %v2057 = vld [vmem:[%s2049 + $0x1c] sm:$0xf]
      %v2058 = vld [vmem:[%s2049 + $0x20] sm:$0xf]
      %v2059 = vld [vmem:[%s2049 + $0x24] sm:$0xf]
      %v2060 = vld [vmem:[%s2049 + $0x28] sm:$0xf]
      %v2061 = vld [vmem:[%s2049 + $0x2c] sm:$0xf]
      %v2062 = vld [vmem:[%s2049 + $0x30] sm:$0xf]
      %v2063 = vld [vmem:[%s2049 + $0x34] sm:$0xf]
      %v2064 = vld [vmem:[%s2049 + $0x38] sm:$0xf]
      %v2065 = vld [vmem:[%s2049 + $0x3c] sm:$0xf]
      %v2066 = vld [vmem:[%s2049 + $0x40] sm:$0xf]
      %v2067 = vld [vmem:[%s2049 + $0x44] sm:$0xf]
      %v2068 = vld [vmem:[%s2049 + $0x48] sm:$0xf]
      %v2069 = vld [vmem:[%s2049 + $0x4c] sm:$0xf]
      %v2070 = vld [vmem:[%s2049 + $0x50] sm:$0xf]
      %v2071 = vld [vmem:[%s2049 + $0x54] sm:$0xf]
      %v2072 = vld [vmem:[%s2049 + $0x58] sm:$0xf]
      %v2073 = vld [vmem:[%s2049 + $0x5c] sm:$0xf]
      %v2093 = vrot.slane %v2041, 1
      %v2094 = vrot.slane %v1908, 1
      %v2095 = vsel %vm1862, %v2093, %v2094
      %v2096 = vrot.slane %v2035, 1
      %v2097 = vrot.slane %v1869, 1
      %v2098 = vsel %vm1862, %v2096, %v2097
      %v2099 = vrot.slane %v1911, 1
      %v2100 = vsel %vm1862, %v2094, %v2099
      %v2101 = vrot.slane %v1871, 1
      %v2102 = vsel %vm1862, %v2097, %v2101
      %v2103 = vrot.slane %v1914, 1
      %v2104 = vsel %vm1862, %v2099, %v2103
      %v2105 = vrot.slane %v1873, 1
      %v2106 = vsel %vm1862, %v2101, %v2105
      %v2107 = vrot.slane %v1917, 1
      %v2108 = vsel %vm1862, %v2103, %v2107
      %v2109 = vrot.slane %v1875, 1
      %v2110 = vsel %vm1862, %v2105, %v2109
      %v2111 = vrot.slane %v1920, 1
      %v2112 = vsel %vm1862, %v2107, %v2111
      %v2113 = vrot.slane %v1877, 1
      %v2114 = vsel %vm1862, %v2109, %v2113
      %v2115 = vrot.slane %v1923, 1
      %v2116 = vsel %vm1862, %v2111, %v2115
      %v2117 = vrot.slane %v1879, 1
      %v2118 = vsel %vm1862, %v2113, %v2117
      %v2119 = vrot.slane %v1926, 1
      %v2120 = vsel %vm1862, %v2115, %v2119
      %v2121 = vrot.slane %v1881, 1
      %v2122 = vsel %vm1862, %v2117, %v2121
      %v2123 = vrot.slane %v1929, 1
      %v2124 = vsel %vm1862, %v2119, %v2123
      %v2125 = vrot.slane %v1883, 1
      %v2126 = vsel %vm1862, %v2121, %v2125
      %v2127 = vrot.slane %v1932, 1
      %v2128 = vsel %vm1862, %v2123, %v2127
      %v2129 = vrot.slane %v1885, 1
      %v2130 = vsel %vm1862, %v2125, %v2129
      %v2131 = vrot.slane %v1935, 1
      %v2132 = vsel %vm1862, %v2127, %v2131
      %v2133 = vrot.slane %v1887, 1
      %v2134 = vsel %vm1862, %v2129, %v2133
      %v2135 = vrot.slane %v1938, 1
      %v2136 = vsel %vm1862, %v2131, %v2135
      %v2137 = vrot.slane %v1889, 1
      %v2138 = vsel %vm1862, %v2133, %v2137
      %v2139 = vrot.slane %v1941, 1
      %v2140 = vsel %vm1862, %v2135, %v2139
      %v2141 = vrot.slane %v1891, 1
      %v2142 = vsel %vm1862, %v2137, %v2141
      %v2143 = vrot.slane %v1944, 1
      %v2144 = vsel %vm1862, %v2139, %v2143
      %v2145 = vrot.slane %v1893, 1
      %v2146 = vsel %vm1862, %v2141, %v2145
      %v2147 = vrot.slane %v1947, 1
      %v2148 = vsel %vm1862, %v2143, %v2147
      %v2149 = vrot.slane %v1895, 1
      %v2150 = vsel %vm1862, %v2145, %v2149
      %v2151 = vrot.slane %v1950, 1
      %v2152 = vsel %vm1862, %v2147, %v2151
      %v2153 = vrot.slane %v1897, 1
      %v2154 = vsel %vm1862, %v2149, %v2153
      %v2155 = vrot.slane %v2043, 1
      %v2156 = vsel %vm1862, %v2151, %v2155
      %v2157 = vrot.slane %v2037, 1
      %v2158 = vsel %vm1862, %v2153, %v2157
      %v2159 = vrot.slane %v2045, 1
      %v2160 = vsel %vm1862, %v2155, %v2159
      %v2161 = vrot.slane %v2039, 1
      %v2162 = vsel %vm1862, %v2157, %v2161
      %v2163 = vrot.slane %v2048, 1
      %v2164 = vsel %vm1862, %v2159, %v2163
      %v2165 = vrot.slane %v2038, 1
      %v2166 = vsel %vm1862, %v2161, %v2165
      %v2209 = vunpack.c.l.b16 %v2050
      %v2210 = vunpack.c.l.b16 %v2051
      %v2211 = vunpack.c.l.b16 %v2052
      %v2212 = vunpack.c.l.b16 %v2053
      %v2213 = vunpack.c.l.b16 %v2054
      %v2214 = vunpack.c.l.b16 %v2055
      %v2215 = vunpack.c.l.b16 %v2056
      %v2216 = vunpack.c.l.b16 %v2057
      %v2217 = vunpack.c.l.b16 %v2058
      %v2218 = vunpack.c.l.b16 %v2059
      %v2219 = vunpack.c.l.b16 %v2060
      %v2220 = vunpack.c.l.b16 %v2061
      %v2221 = vunpack.c.l.b16 %v2062
      %v2222 = vunpack.c.l.b16 %v2063
      %v2223 = vunpack.c.l.b16 %v2064
      %v2224 = vunpack.c.l.b16 %v2065
      %v2225 = vunpack.c.l.b16 %v2066
      %v2226 = vunpack.c.l.b16 %v2067
      %v2227 = vunpack.c.l.b16 %v2068
      %v2228 = vunpack.c.l.b16 %v2069
      %v2229 = vunpack.c.l.b16 %v2070
      %v2230 = vunpack.c.l.b16 %v2071
      %v2231 = vunpack.c.l.b16 %v2072
      %v2232 = vunpack.c.l.b16 %v2073
      %v2233 = vpack.c.b16 %v2210, %v2209
      %v2234 = vpack.c.b16 %v2212, %v2211
      %v2235 = vpack.c.b16 %v2214, %v2213
      %v2236 = vpack.c.b16 %v2216, %v2215
      %v2237 = vpack.c.b16 %v2218, %v2217
      %v2238 = vpack.c.b16 %v2220, %v2219
      %v2239 = vpack.c.b16 %v2222, %v2221
      %v2240 = vpack.c.b16 %v2224, %v2223
      %v2241 = vpack.c.b16 %v2226, %v2225
      %v2242 = vpack.c.b16 %v2228, %v2227
      %v2243 = vpack.c.b16 %v2230, %v2229
      %v2244 = vpack.c.b16 %v2232, %v2231
      %v2258 = vsel %vm1900, %v2098, 0
      %v2261 = vsel %vm1900, %v2102, 0
      %v2264 = vsel %vm1900, %v2106, 0
      %v2267 = vsel %vm1900, %v2110, 0
      %v2270 = vsel %vm1900, %v2114, 0
      %v2273 = vsel %vm1900, %v2118, 0
      %v2276 = vsel %vm1900, %v2122, 0
      %v2279 = vsel %vm1900, %v2126, 0
      %v2282 = vsel %vm1900, %v2130, 0
      %v2285 = vsel %vm1900, %v2134, 0
      %v2288 = vsel %vm1900, %v2138, 0
      %v2291 = vsel %vm1900, %v2142, 0
      %v2294 = vsel %vm1900, %v2146, 0
      %v2297 = vsel %vm1900, %v2150, 0
      %v2300 = vsel %vm1900, %v2154, 0
      %v2303 = vsel %vm1900, %v2158, 0
      %v2306 = vsel %vm1900, %v2162, 0
      %v2309 = vsel %vm1900, %v2166, 0
      %2311 = vmatpush.bf16.msra.mxu0 %v2240
      %2312 = vmatpush.bf16.msra.mxu0 %v2239
      %2313 = vmatpush.bf16.msra.mxu0 %v2238
      %2314 = vmatpush.bf16.msra.mxu0 %v2237
      %2315 = vmatpush.bf16.msra.mxu0 %v2236
      %2316 = vmatpush.bf16.msra.mxu0 %v2235
      %2317 = vmatpush.bf16.msra.mxu0 %v2234
      %2318 = vmatpush.bf16.msra.mxu0 %v2233
      %2319 = vmatmul.bf16.gmra.mxu0 %v2095
      %v2320 = vpop.f32.mrf.mxu0
      %v2321 = vadd.f32 0.0, %v2320
      %v2322 = vpop.f32.mrf.mxu0
      %v2323 = vadd.f32 0.0, %v2322
      %2324 = vmatmul.bf16.gmra.mxu0 %v2100
      %v2325 = vpop.f32.mrf.mxu0
      %v2326 = vadd.f32 0.0, %v2325
      %v2327 = vpop.f32.mrf.mxu0
      %v2328 = vadd.f32 0.0, %v2327
      %2329 = vmatmul.bf16.gmra.mxu0 %v2104
      %v2330 = vpop.f32.mrf.mxu0
      %v2331 = vadd.f32 0.0, %v2330
      %v2332 = vpop.f32.mrf.mxu0
      %v2333 = vadd.f32 0.0, %v2332
      %2334 = vmatmul.bf16.gmra.mxu0 %v2108
      %v2335 = vpop.f32.mrf.mxu0
      %v2336 = vadd.f32 0.0, %v2335
      %v2337 = vpop.f32.mrf.mxu0
      %v2338 = vadd.f32 0.0, %v2337
      %2339 = vmatmul.bf16.gmra.mxu0 %v2112
      %v2340 = vpop.f32.mrf.mxu0
      %v2341 = vadd.f32 0.0, %v2340
      %v2342 = vpop.f32.mrf.mxu0
      %v2343 = vadd.f32 0.0, %v2342
      %2344 = vmatmul.bf16.gmra.mxu0 %v2116
      %v2345 = vpop.f32.mrf.mxu0
      %v2346 = vadd.f32 0.0, %v2345
      %v2347 = vpop.f32.mrf.mxu0
      %v2348 = vadd.f32 0.0, %v2347
      %2349 = vmatmul.bf16.gmra.mxu0 %v2120
      %v2350 = vpop.f32.mrf.mxu0
      %v2351 = vadd.f32 0.0, %v2350
      %v2352 = vpop.f32.mrf.mxu0
      %v2353 = vadd.f32 0.0, %v2352
      %2354 = vmatmul.bf16.gmra.mxu0 %v2124
      %v2355 = vpop.f32.mrf.mxu0
      %v2356 = vadd.f32 0.0, %v2355
      %v2357 = vpop.f32.mrf.mxu0
      %v2358 = vadd.f32 0.0, %v2357
      %2359 = vmatmul.bf16.gmra.mxu0 %v2128
      %v2360 = vpop.f32.mrf.mxu0
      %v2361 = vadd.f32 0.0, %v2360
      %v2362 = vpop.f32.mrf.mxu0
      %v2363 = vadd.f32 0.0, %v2362
      %2364 = vmatmul.bf16.gmra.mxu0 %v2132
      %v2365 = vpop.f32.mrf.mxu0
      %v2366 = vadd.f32 0.0, %v2365
      %v2367 = vpop.f32.mrf.mxu0
      %v2368 = vadd.f32 0.0, %v2367
      %2369 = vmatmul.bf16.gmra.mxu0 %v2136
      %v2370 = vpop.f32.mrf.mxu0
      %v2371 = vadd.f32 0.0, %v2370
      %v2372 = vpop.f32.mrf.mxu0
      %v2373 = vadd.f32 0.0, %v2372
      %2374 = vmatmul.bf16.gmra.mxu0 %v2140
      %v2375 = vpop.f32.mrf.mxu0
      %v2376 = vadd.f32 0.0, %v2375
      %v2377 = vpop.f32.mrf.mxu0
      %v2378 = vadd.f32 0.0, %v2377
      %2379 = vmatmul.bf16.gmra.mxu0 %v2144
      %v2380 = vpop.f32.mrf.mxu0
      %v2381 = vadd.f32 0.0, %v2380
      %v2382 = vpop.f32.mrf.mxu0
      %v2383 = vadd.f32 0.0, %v2382
      %2384 = vmatmul.bf16.gmra.mxu0 %v2148
      %v2385 = vpop.f32.mrf.mxu0
      %v2386 = vadd.f32 0.0, %v2385
      %v2387 = vpop.f32.mrf.mxu0
      %v2388 = vadd.f32 0.0, %v2387
      %2389 = vmatmul.bf16.gmra.mxu0 %v2152
      %v2390 = vpop.f32.mrf.mxu0
      %v2391 = vadd.f32 0.0, %v2390
      %v2392 = vpop.f32.mrf.mxu0
      %v2393 = vadd.f32 0.0, %v2392
      %2394 = vmatmul.bf16.gmra.mxu0 %v2156
      %v2395 = vpop.f32.mrf.mxu0
      %v2396 = vadd.f32 0.0, %v2395
      %v2397 = vpop.f32.mrf.mxu0
      %v2398 = vadd.f32 0.0, %v2397
      %2399 = vmatmul.bf16.gmra.mxu0 %v2160
      %v2400 = vpop.f32.mrf.mxu0
      %v2401 = vadd.f32 0.0, %v2400
      %v2402 = vpop.f32.mrf.mxu0
      %v2403 = vadd.f32 0.0, %v2402
      %2404 = vmatmul.bf16.gmra.mxu0 %v2164
      %v2405 = vpop.f32.mrf.mxu0
      %v2406 = vadd.f32 0.0, %v2405
      %v2407 = vpop.f32.mrf.mxu0
      %v2408 = vadd.f32 0.0, %v2407
      %2409 = vdwg.mxu0
      %2410 = vmatpush.bf16.msra.mxu0 0
      %2411 = vmatpush.bf16.msra.mxu0 0
      %2412 = vmatpush.bf16.msra.mxu0 0
      %2413 = vmatpush.bf16.msra.mxu0 0
      %2414 = vmatpush.bf16.msra.mxu0 %v2244
      %2415 = vmatpush.bf16.msra.mxu0 %v2243
      %2416 = vmatpush.bf16.msra.mxu0 %v2242
      %2417 = vmatpush.bf16.msra.mxu0 %v2241
      %2418 = vmatmul.bf16.gmra.mxu0 %v2258
      %v2419 = vpop.f32.mrf.mxu0
      %v2420 = vadd.f32 %v2321, %v2419
      %v2421 = vpop.f32.mrf.mxu0
      %v2422 = vadd.f32 %v2323, %v2421
      %2423 = vmatmul.bf16.gmra.mxu0 %v2261
      %v2424 = vpop.f32.mrf.mxu0
      %v2425 = vadd.f32 %v2326, %v2424
      %v2426 = vpop.f32.mrf.mxu0
      %v2427 = vadd.f32 %v2328, %v2426
      %2428 = vmatmul.bf16.gmra.mxu0 %v2264
      %v2429 = vpop.f32.mrf.mxu0
      %v2430 = vadd.f32 %v2331, %v2429
      %v2431 = vpop.f32.mrf.mxu0
      %v2432 = vadd.f32 %v2333, %v2431
      %2433 = vmatmul.bf16.gmra.mxu0 %v2267
      %v2434 = vpop.f32.mrf.mxu0
      %v2435 = vadd.f32 %v2336, %v2434
      %v2436 = vpop.f32.mrf.mxu0
      %v2437 = vadd.f32 %v2338, %v2436
      %2438 = vmatmul.bf16.gmra.mxu0 %v2270
      %v2439 = vpop.f32.mrf.mxu0
      %v2440 = vadd.f32 %v2341, %v2439
      %v2441 = vpop.f32.mrf.mxu0
      %v2442 = vadd.f32 %v2343, %v2441
      %2443 = vmatmul.bf16.gmra.mxu0 %v2273
      %v2444 = vpop.f32.mrf.mxu0
      %v2445 = vadd.f32 %v2346, %v2444
      %v2446 = vpop.f32.mrf.mxu0
      %v2447 = vadd.f32 %v2348, %v2446
      %2448 = vmatmul.bf16.gmra.mxu0 %v2276
      %v2449 = vpop.f32.mrf.mxu0
      %v2450 = vadd.f32 %v2351, %v2449
      %v2451 = vpop.f32.mrf.mxu0
      %v2452 = vadd.f32 %v2353, %v2451
      %2453 = vmatmul.bf16.gmra.mxu0 %v2279
      %v2454 = vpop.f32.mrf.mxu0
      %v2455 = vadd.f32 %v2356, %v2454
      %v2456 = vpop.f32.mrf.mxu0
      %v2457 = vadd.f32 %v2358, %v2456
      %2458 = vmatmul.bf16.gmra.mxu0 %v2282
      %v2459 = vpop.f32.mrf.mxu0
      %v2460 = vadd.f32 %v2361, %v2459
      %v2461 = vpop.f32.mrf.mxu0
      %v2462 = vadd.f32 %v2363, %v2461
      %2463 = vmatmul.bf16.gmra.mxu0 %v2285
      %v2464 = vpop.f32.mrf.mxu0
      %v2465 = vadd.f32 %v2366, %v2464
      %v2466 = vpop.f32.mrf.mxu0
      %v2467 = vadd.f32 %v2368, %v2466
      %2468 = vmatmul.bf16.gmra.mxu0 %v2288
      %v2469 = vpop.f32.mrf.mxu0
      %v2470 = vadd.f32 %v2371, %v2469
      %v2471 = vpop.f32.mrf.mxu0
      %v2472 = vadd.f32 %v2373, %v2471
      %2473 = vmatmul.bf16.gmra.mxu0 %v2291
      %v2474 = vpop.f32.mrf.mxu0
      %v2475 = vadd.f32 %v2376, %v2474
      %v2476 = vpop.f32.mrf.mxu0
      %v2477 = vadd.f32 %v2378, %v2476
      %2478 = vmatmul.bf16.gmra.mxu0 %v2294
      %v2479 = vpop.f32.mrf.mxu0
      %v2480 = vadd.f32 %v2381, %v2479
      %v2481 = vpop.f32.mrf.mxu0
      %v2482 = vadd.f32 %v2383, %v2481
      %2483 = vmatmul.bf16.gmra.mxu0 %v2297
      %v2484 = vpop.f32.mrf.mxu0
      %v2485 = vadd.f32 %v2386, %v2484
      %v2486 = vpop.f32.mrf.mxu0
      %v2487 = vadd.f32 %v2388, %v2486
      %2488 = vmatmul.bf16.gmra.mxu0 %v2300
      %v2489 = vpop.f32.mrf.mxu0
      %v2490 = vadd.f32 %v2391, %v2489
      %v2491 = vpop.f32.mrf.mxu0
      %v2492 = vadd.f32 %v2393, %v2491
      %2493 = vmatmul.bf16.gmra.mxu0 %v2303
      %v2494 = vpop.f32.mrf.mxu0
      %v2495 = vadd.f32 %v2396, %v2494
      %v2496 = vpop.f32.mrf.mxu0
      %v2497 = vadd.f32 %v2398, %v2496
      %2498 = vmatmul.bf16.gmra.mxu0 %v2306
      %v2499 = vpop.f32.mrf.mxu0
      %v2500 = vadd.f32 %v2401, %v2499
      %v2501 = vpop.f32.mrf.mxu0
      %v2502 = vadd.f32 %v2403, %v2501
      %2503 = vmatmul.bf16.gmra.mxu0 %v2309
      %v2504 = vpop.f32.mrf.mxu0
      %v2505 = vadd.f32 %v2406, %v2504
      %v2506 = vpop.f32.mrf.mxu0
      %v2507 = vadd.f32 %v2408, %v2506
      %2508 = vdwg.mxu0
      %v2533 = vunpack.c.l.b16 %v1955
      %v2534 = vunpack.c.l.b16 %v1956
      %v2535 = vunpack.c.l.b16 %v1957
      %v2536 = vunpack.c.l.b16 %v1958
      %v2537 = vunpack.c.l.b16 %v1959
      %v2538 = vunpack.c.l.b16 %v1960
      %v2539 = vunpack.c.l.b16 %v1961
      %v2540 = vunpack.c.l.b16 %v1962
      %v2541 = vunpack.c.l.b16 %v1963
      %v2542 = vunpack.c.l.b16 %v1964
      %v2543 = vunpack.c.l.b16 %v1965
      %v2544 = vunpack.c.l.b16 %v1966
      %v2545 = vunpack.c.l.b16 %v1967
      %v2546 = vunpack.c.l.b16 %v1968
      %v2547 = vunpack.c.l.b16 %v1969
      %v2548 = vunpack.c.l.b16 %v1970
      %v2549 = vunpack.c.l.b16 %v1971
      %v2550 = vunpack.c.l.b16 %v1972
      %v2551 = vunpack.c.l.b16 %v1973
      %v2552 = vunpack.c.l.b16 %v1974
      %v2553 = vunpack.c.l.b16 %v1975
      %v2554 = vunpack.c.l.b16 %v1976
      %v2555 = vunpack.c.l.b16 %v1977
      %v2556 = vunpack.c.l.b16 %v1978
      %v2557 = vpack.c.b16 %v2534, %v2533
      %v2558 = vpack.c.b16 %v2536, %v2535
      %v2559 = vpack.c.b16 %v2538, %v2537
      %v2560 = vpack.c.b16 %v2540, %v2539
      %v2561 = vpack.c.b16 %v2542, %v2541
      %v2562 = vpack.c.b16 %v2544, %v2543
      %v2563 = vpack.c.b16 %v2546, %v2545
      %v2564 = vpack.c.b16 %v2548, %v2547
      %v2565 = vpack.c.b16 %v2550, %v2549
      %v2566 = vpack.c.b16 %v2552, %v2551
      %v2567 = vpack.c.b16 %v2554, %v2553
      %v2568 = vpack.c.b16 %v2556, %v2555
      %v2582 = vsel %vm1900, %v1865, 0
      %v2585 = vsel %vm1900, %v1867, 0
      %v2588 = vsel %vm1900, %v1869, 0
      %v2591 = vsel %vm1900, %v1871, 0
      %v2594 = vsel %vm1900, %v1873, 0
      %v2597 = vsel %vm1900, %v1875, 0
      %v2600 = vsel %vm1900, %v1877, 0
      %v2603 = vsel %vm1900, %v1879, 0
      %v2606 = vsel %vm1900, %v1881, 0
      %v2609 = vsel %vm1900, %v1883, 0
      %v2612 = vsel %vm1900, %v1885, 0
      %v2615 = vsel %vm1900, %v1887, 0
      %v2618 = vsel %vm1900, %v1889, 0
      %v2621 = vsel %vm1900, %v1891, 0
      %v2624 = vsel %vm1900, %v1893, 0
      %v2627 = vsel %vm1900, %v1895, 0
      %v2630 = vsel %vm1900, %v1897, 0
      %v2633 = vsel %vm1900, %v1899, 0
      %2635 = vmatpush.bf16.msra.mxu0 %v2564
      %2636 = vmatpush.bf16.msra.mxu0 %v2563
      %2637 = vmatpush.bf16.msra.mxu0 %v2562
      %2638 = vmatpush.bf16.msra.mxu0 %v2561
      %2639 = vmatpush.bf16.msra.mxu0 %v2560
      %2640 = vmatpush.bf16.msra.mxu0 %v2559
      %2641 = vmatpush.bf16.msra.mxu0 %v2558
      %2642 = vmatpush.bf16.msra.mxu0 %v2557
      %2643 = vmatmul.bf16.gmra.mxu0 %v1902
      %v2644 = vpop.f32.mrf.mxu0
      %v2645 = vadd.f32 %v2420, %v2644
      %v2646 = vpop.f32.mrf.mxu0
      %v2647 = vadd.f32 %v2422, %v2646
      %2648 = vmatmul.bf16.gmra.mxu0 %v1905
      %v2649 = vpop.f32.mrf.mxu0
      %v2650 = vadd.f32 %v2425, %v2649
      %v2651 = vpop.f32.mrf.mxu0
      %v2652 = vadd.f32 %v2427, %v2651
      %2653 = vmatmul.bf16.gmra.mxu0 %v1908
      %v2654 = vpop.f32.mrf.mxu0
      %v2655 = vadd.f32 %v2430, %v2654
      %v2656 = vpop.f32.mrf.mxu0
      %v2657 = vadd.f32 %v2432, %v2656
      %2658 = vmatmul.bf16.gmra.mxu0 %v1911
      %v2659 = vpop.f32.mrf.mxu0
      %v2660 = vadd.f32 %v2435, %v2659
      %v2661 = vpop.f32.mrf.mxu0
      %v2662 = vadd.f32 %v2437, %v2661
      %2663 = vmatmul.bf16.gmra.mxu0 %v1914
      %v2664 = vpop.f32.mrf.mxu0
      %v2665 = vadd.f32 %v2440, %v2664
      %v2666 = vpop.f32.mrf.mxu0
      %v2667 = vadd.f32 %v2442, %v2666
      %2668 = vmatmul.bf16.gmra.mxu0 %v1917
      %v2669 = vpop.f32.mrf.mxu0
      %v2670 = vadd.f32 %v2445, %v2669
      %v2671 = vpop.f32.mrf.mxu0
      %v2672 = vadd.f32 %v2447, %v2671
      %2673 = vmatmul.bf16.gmra.mxu0 %v1920
      %v2674 = vpop.f32.mrf.mxu0
      %v2675 = vadd.f32 %v2450, %v2674
      %v2676 = vpop.f32.mrf.mxu0
      %v2677 = vadd.f32 %v2452, %v2676
      %2678 = vmatmul.bf16.gmra.mxu0 %v1923
      %v2679 = vpop.f32.mrf.mxu0
      %v2680 = vadd.f32 %v2455, %v2679
      %v2681 = vpop.f32.mrf.mxu0
      %v2682 = vadd.f32 %v2457, %v2681
      %2683 = vmatmul.bf16.gmra.mxu0 %v1926
      %v2684 = vpop.f32.mrf.mxu0
      %v2685 = vadd.f32 %v2460, %v2684
      %v2686 = vpop.f32.mrf.mxu0
      %v2687 = vadd.f32 %v2462, %v2686
      %2688 = vmatmul.bf16.gmra.mxu0 %v1929
      %v2689 = vpop.f32.mrf.mxu0
      %v2690 = vadd.f32 %v2465, %v2689
      %v2691 = vpop.f32.mrf.mxu0
      %v2692 = vadd.f32 %v2467, %v2691
      %2693 = vmatmul.bf16.gmra.mxu0 %v1932
      %v2694 = vpop.f32.mrf.mxu0
      %v2695 = vadd.f32 %v2470, %v2694
      %v2696 = vpop.f32.mrf.mxu0
      %v2697 = vadd.f32 %v2472, %v2696
      %2698 = vmatmul.bf16.gmra.mxu0 %v1935
      %v2699 = vpop.f32.mrf.mxu0
      %v2700 = vadd.f32 %v2475, %v2699
      %v2701 = vpop.f32.mrf.mxu0
      %v2702 = vadd.f32 %v2477, %v2701
      %2703 = vmatmul.bf16.gmra.mxu0 %v1938
      %v2704 = vpop.f32.mrf.mxu0
      %v2705 = vadd.f32 %v2480, %v2704
      %v2706 = vpop.f32.mrf.mxu0
      %v2707 = vadd.f32 %v2482, %v2706
      %2708 = vmatmul.bf16.gmra.mxu0 %v1941
      %v2709 = vpop.f32.mrf.mxu0
      %v2710 = vadd.f32 %v2485, %v2709
      %v2711 = vpop.f32.mrf.mxu0
      %v2712 = vadd.f32 %v2487, %v2711
      %2713 = vmatmul.bf16.gmra.mxu0 %v1944
      %v2714 = vpop.f32.mrf.mxu0
      %v2715 = vadd.f32 %v2490, %v2714
      %v2716 = vpop.f32.mrf.mxu0
      %v2717 = vadd.f32 %v2492, %v2716
      %2718 = vmatmul.bf16.gmra.mxu0 %v1947
      %v2719 = vpop.f32.mrf.mxu0
      %v2720 = vadd.f32 %v2495, %v2719
      %v2721 = vpop.f32.mrf.mxu0
      %v2722 = vadd.f32 %v2497, %v2721
      %2723 = vmatmul.bf16.gmra.mxu0 %v1950
      %v2724 = vpop.f32.mrf.mxu0
      %v2725 = vadd.f32 %v2500, %v2724
      %v2726 = vpop.f32.mrf.mxu0
      %v2727 = vadd.f32 %v2502, %v2726
      %2728 = vmatmul.bf16.gmra.mxu0 %v1953
      %v2729 = vpop.f32.mrf.mxu0
      %v2730 = vadd.f32 %v2505, %v2729
      %v2731 = vpop.f32.mrf.mxu0
      %v2732 = vadd.f32 %v2507, %v2731
      %2733 = vdwg.mxu0
      %2734 = vmatpush.bf16.msra.mxu0 0
      %2735 = vmatpush.bf16.msra.mxu0 0
      %2736 = vmatpush.bf16.msra.mxu0 0
      %2737 = vmatpush.bf16.msra.mxu0 0
      %2738 = vmatpush.bf16.msra.mxu0 %v2568
      %2739 = vmatpush.bf16.msra.mxu0 %v2567
      %2740 = vmatpush.bf16.msra.mxu0 %v2566
      %2741 = vmatpush.bf16.msra.mxu0 %v2565
      %2742 = vmatmul.bf16.gmra.mxu0 %v2582
      %v2743 = vpop.f32.mrf.mxu0
      %v2744 = vadd.f32 %v2645, %v2743
      %v2745 = vpop.f32.mrf.mxu0
      %v2746 = vadd.f32 %v2647, %v2745
      %2747 = vmatmul.bf16.gmra.mxu0 %v2585
      %v2748 = vpop.f32.mrf.mxu0
      %v2749 = vadd.f32 %v2650, %v2748
      %v2750 = vpop.f32.mrf.mxu0
      %v2751 = vadd.f32 %v2652, %v2750
      %2752 = vmatmul.bf16.gmra.mxu0 %v2588
      %v2753 = vpop.f32.mrf.mxu0
      %v2754 = vadd.f32 %v2655, %v2753
      %v2755 = vpop.f32.mrf.mxu0
      %v2756 = vadd.f32 %v2657, %v2755
      %2757 = vmatmul.bf16.gmra.mxu0 %v2591
      %v2758 = vpop.f32.mrf.mxu0
      %v2759 = vadd.f32 %v2660, %v2758
      %v2760 = vpop.f32.mrf.mxu0
      %v2761 = vadd.f32 %v2662, %v2760
      %2762 = vmatmul.bf16.gmra.mxu0 %v2594
      %v2763 = vpop.f32.mrf.mxu0
      %v2764 = vadd.f32 %v2665, %v2763
      %v2765 = vpop.f32.mrf.mxu0
      %v2766 = vadd.f32 %v2667, %v2765
      %2767 = vmatmul.bf16.gmra.mxu0 %v2597
      %v2768 = vpop.f32.mrf.mxu0
      %v2769 = vadd.f32 %v2670, %v2768
      %v2770 = vpop.f32.mrf.mxu0
      %v2771 = vadd.f32 %v2672, %v2770
      %2772 = vmatmul.bf16.gmra.mxu0 %v2600
      %v2773 = vpop.f32.mrf.mxu0
      %v2774 = vadd.f32 %v2675, %v2773
      %v2775 = vpop.f32.mrf.mxu0
      %v2776 = vadd.f32 %v2677, %v2775
      %2777 = vmatmul.bf16.gmra.mxu0 %v2603
      %v2778 = vpop.f32.mrf.mxu0
      %v2779 = vadd.f32 %v2680, %v2778
      %v2780 = vpop.f32.mrf.mxu0
      %v2781 = vadd.f32 %v2682, %v2780
      %2782 = vmatmul.bf16.gmra.mxu0 %v2606
      %v2783 = vpop.f32.mrf.mxu0
      %v2784 = vadd.f32 %v2685, %v2783
      %v2785 = vpop.f32.mrf.mxu0
      %v2786 = vadd.f32 %v2687, %v2785
      %2787 = vmatmul.bf16.gmra.mxu0 %v2609
      %v2788 = vpop.f32.mrf.mxu0
      %v2789 = vadd.f32 %v2690, %v2788
      %v2790 = vpop.f32.mrf.mxu0
      %v2791 = vadd.f32 %v2692, %v2790
      %2792 = vmatmul.bf16.gmra.mxu0 %v2612
      %v2793 = vpop.f32.mrf.mxu0
      %v2794 = vadd.f32 %v2695, %v2793
      %v2795 = vpop.f32.mrf.mxu0
      %v2796 = vadd.f32 %v2697, %v2795
      %2797 = vmatmul.bf16.gmra.mxu0 %v2615
      %v2798 = vpop.f32.mrf.mxu0
      %v2799 = vadd.f32 %v2700, %v2798
      %v2800 = vpop.f32.mrf.mxu0
      %v2801 = vadd.f32 %v2702, %v2800
      %2802 = vmatmul.bf16.gmra.mxu0 %v2618
      %v2803 = vpop.f32.mrf.mxu0
      %v2804 = vadd.f32 %v2705, %v2803
      %v2805 = vpop.f32.mrf.mxu0
      %v2806 = vadd.f32 %v2707, %v2805
      %2807 = vmatmul.bf16.gmra.mxu0 %v2621
      %v2808 = vpop.f32.mrf.mxu0
      %v2809 = vadd.f32 %v2710, %v2808
      %v2810 = vpop.f32.mrf.mxu0
      %v2811 = vadd.f32 %v2712, %v2810
      %2812 = vmatmul.bf16.gmra.mxu0 %v2624
      %v2813 = vpop.f32.mrf.mxu0
      %v2814 = vadd.f32 %v2715, %v2813
      %v2815 = vpop.f32.mrf.mxu0
      %v2816 = vadd.f32 %v2717, %v2815
      %2817 = vmatmul.bf16.gmra.mxu0 %v2627
      %v2818 = vpop.f32.mrf.mxu0
      %v2819 = vadd.f32 %v2720, %v2818
      %v2820 = vpop.f32.mrf.mxu0
      %v2821 = vadd.f32 %v2722, %v2820
      %2822 = vmatmul.bf16.gmra.mxu0 %v2630
      %v2823 = vpop.f32.mrf.mxu0
      %v2824 = vadd.f32 %v2725, %v2823
      %v2825 = vpop.f32.mrf.mxu0
      %v2826 = vadd.f32 %v2727, %v2825
      %2827 = vmatmul.bf16.gmra.mxu0 %v2633
      %v2828 = vpop.f32.mrf.mxu0
      %v2829 = vadd.f32 %v2730, %v2828
      %v2830 = vpop.f32.mrf.mxu0
      %v2831 = vadd.f32 %v2732, %v2830
      %2832 = vdwg.mxu0
      %v2833 = vld [vmem:[%s219 + $0x10] sm:$0xc]
      %v2834 = vld [vmem:[%s219 + $0x14] sm:$0xf]
      %v2835 = vld [vmem:[%s219 + $0x18] sm:$0xf]
      %v2836 = vld [vmem:[%s219 + $0x1c] sm:$0xf]
      %v2837 = vld [vmem:[%s219 + $0x20] sm:$0xf]
      %v2838 = vld [vmem:[%s219 + $0x24] sm:$0xf]
      %v2839 = vld [vmem:[%s219 + $0x28] sm:$0xf]
      %v2840 = vld [vmem:[%s219 + $0x2c] sm:$0xf]
      %v2841 = vld [vmem:[%s219 + $0x30] sm:$0xf]
      %v2842 = vld [vmem:[%s219 + $0x34] sm:$0xf]
      %v2843 = vld [vmem:[%s219 + $0x38] sm:$0xf]
      %v2844 = vld [vmem:[%s219 + $0x3c] sm:$0xf]
      %v2845 = vld [vmem:[%s219 + $0x40] sm:$0xf]
      %v2846 = vld [vmem:[%s219 + $0x44] sm:$0xf]
      %v2847 = vld [vmem:[%s219 + $0x48] sm:$0xf]
      %v2848 = vld [vmem:[%s219 + $0x4c] sm:$0xf]
      %v2849 = vld [vmem:[%s219 + $0x50] sm:$0xf]
      %v2850 = vld [vmem:[%s219 + $0x54] sm:$0xf]
      %v2851 = vld [vmem:[%s219 + $0x58] sm:$0xf]
      %v2852 = vld [vmem:[%s219 + $0x5c] sm:$0xf]
      %v2853 = vld [vmem:[%s219 + $0x60] sm:$0xf]
      %v2854 = vld [vmem:[%s219 + $0x64] sm:$0xf]
      %v2855 = vld [vmem:[%s219 + $0x68] sm:$0xf]
      %v2856 = vld [vmem:[%s219 + $0x6c] sm:$0xf]
      %v2857 = vld [vmem:[%s219 + $0x70] sm:$0xf]
      %v2858 = vld [vmem:[%s219 + $0x74] sm:$0xf]
      %v2859 = vld [vmem:[%s219 + $0x78] sm:$0xf]
      %v2860 = vld [vmem:[%s219 + $0x7c] sm:$0xf]
      %v2861 = vld [vmem:[%s219 + $0x80] sm:$0xf]
      %v2862 = vld [vmem:[%s219 + $0x84] sm:$0xf]
      %v2863 = vld [vmem:[%s219 + $0x88] sm:$0xf]
      %v2864 = vld [vmem:[%s219 + $0x8c] sm:$0xf]
      %v2865 = vld [vmem:[%s219 + $0x90] sm:$0xf]
      %v2866 = vld [vmem:[%s219 + $0x94] sm:$0xf]
      %v2867 = vld [vmem:[%s219 + $0x98] sm:$0xf]
      %v2868 = vld [vmem:[%s219 + $0x9c] sm:$0xf]
      %v2869 = vld [vmem:[%s219 + $0xa0] sm:$0x3]
      %v2870 = vld [vmem:[%s219 + $0xa0] sm:$0x7]
      %v2871 = vld [vmem:[%s219 + $0x10] sm:$0x8]
      %v2909 = vunpack.c.l.b16 %v2833
      %v2910 = vunpack.c.l.b16 %v2834
      %v2911 = vunpack.c.l.b16 %v2835
      %v2912 = vunpack.c.l.b16 %v2836
      %v2913 = vunpack.c.l.b16 %v2837
      %v2914 = vunpack.c.l.b16 %v2838
      %v2915 = vunpack.c.l.b16 %v2839
      %v2916 = vunpack.c.l.b16 %v2840
      %v2917 = vunpack.c.l.b16 %v2841
      %v2918 = vunpack.c.l.b16 %v2842
      %v2919 = vunpack.c.l.b16 %v2843
      %v2920 = vunpack.c.l.b16 %v2844
      %v2921 = vunpack.c.l.b16 %v2845
      %v2922 = vunpack.c.l.b16 %v2846
      %v2923 = vunpack.c.l.b16 %v2847
      %v2924 = vunpack.c.l.b16 %v2848
      %v2925 = vunpack.c.l.b16 %v2849
      %v2926 = vunpack.c.l.b16 %v2850
      %v2927 = vunpack.c.l.b16 %v2851
      %v2928 = vunpack.c.l.b16 %v2852
      %v2929 = vunpack.c.l.b16 %v2853
      %v2930 = vunpack.c.l.b16 %v2854
      %v2931 = vunpack.c.l.b16 %v2855
      %v2932 = vunpack.c.l.b16 %v2856
      %v2933 = vunpack.c.l.b16 %v2857
      %v2934 = vunpack.c.l.b16 %v2858
      %v2935 = vunpack.c.l.b16 %v2859
      %v2936 = vunpack.c.l.b16 %v2860
      %v2937 = vunpack.c.l.b16 %v2861
      %v2938 = vunpack.c.l.b16 %v2862
      %v2939 = vunpack.c.l.b16 %v2863
      %v2940 = vunpack.c.l.b16 %v2864
      %v2941 = vunpack.c.l.b16 %v2865
      %v2942 = vunpack.c.l.b16 %v2866
      %v2943 = vunpack.c.l.b16 %v2867
      %v2944 = vunpack.c.l.b16 %v2868
      %v2945 = vunpack.c.l.b16 %v2869
      %v2946 = vpack.c.b16 %v2910, %v2909
      %v2947 = vpack.c.b16 %v2912, %v2911
      %v2948 = vpack.c.b16 %v2914, %v2913
      %v2949 = vpack.c.b16 %v2916, %v2915
      %v2950 = vpack.c.b16 %v2918, %v2917
      %v2951 = vpack.c.b16 %v2920, %v2919
      %v2952 = vpack.c.b16 %v2922, %v2921
      %v2953 = vpack.c.b16 %v2924, %v2923
      %v2954 = vpack.c.b16 %v2926, %v2925
      %v2955 = vpack.c.b16 %v2928, %v2927
      %v2956 = vpack.c.b16 %v2930, %v2929
      %v2957 = vpack.c.b16 %v2932, %v2931
      %v2958 = vpack.c.b16 %v2934, %v2933
      %v2959 = vpack.c.b16 %v2936, %v2935
      %v2960 = vpack.c.b16 %v2938, %v2937
      %v2961 = vpack.c.b16 %v2940, %v2939
      %v2962 = vpack.c.b16 %v2942, %v2941
      %v2963 = vpack.c.b16 %v2944, %v2943
      %v2964 = vpack.c.b16 %v2945, %v2945
      %v2966 = vunpack.c.l.b16 %v2870
      %v2967 = vpack.c.b16 %v2966, %v2966
      %v2969 = vshrl.u32 %v2946, 16
      %v2971 = vshll.u32 %v2946, 16
      %v2973 = vrot.slane %v2971, 1
      %v2974 = vor.u32 %v2969, %v2973
      %v2976 = vshll.u32 %v2947, 16
      %v2978 = vrot.slane %v2976, 1
      %v2979 = vsel %vm1674, %v2974, %v2978
      %v2980 = vshrl.u32 %v2947, 16
      %v2982 = vor.u32 %v2980, %v2978
      %v2984 = vshll.u32 %v2948, 16
      %v2986 = vrot.slane %v2984, 1
      %v2987 = vsel %vm1674, %v2982, %v2986
      %v2988 = vshrl.u32 %v2948, 16
      %v2990 = vor.u32 %v2988, %v2986
      %v2992 = vshll.u32 %v2949, 16
      %v2994 = vrot.slane %v2992, 1
      %v2995 = vsel %vm1674, %v2990, %v2994
      %v2996 = vshrl.u32 %v2949, 16
      %v2998 = vor.u32 %v2996, %v2994
      %v3000 = vshll.u32 %v2950, 16
      %v3002 = vrot.slane %v3000, 1
      %v3003 = vsel %vm1674, %v2998, %v3002
      %v3004 = vshrl.u32 %v2950, 16
      %v3006 = vor.u32 %v3004, %v3002
      %v3008 = vshll.u32 %v2951, 16
      %v3010 = vrot.slane %v3008, 1
      %v3011 = vsel %vm1674, %v3006, %v3010
      %v3012 = vshrl.u32 %v2951, 16
      %v3014 = vor.u32 %v3012, %v3010
      %v3016 = vshll.u32 %v2952, 16
      %v3018 = vrot.slane %v3016, 1
      %v3019 = vsel %vm1674, %v3014, %v3018
      %v3020 = vshrl.u32 %v2952, 16
      %v3022 = vor.u32 %v3020, %v3018
      %v3024 = vshll.u32 %v2953, 16
      %v3026 = vrot.slane %v3024, 1
      %v3027 = vsel %vm1674, %v3022, %v3026
      %v3028 = vshrl.u32 %v2953, 16
      %v3030 = vor.u32 %v3028, %v3026
      %v3032 = vshll.u32 %v2954, 16
      %v3034 = vrot.slane %v3032, 1
      %v3035 = vsel %vm1674, %v3030, %v3034
      %v3036 = vshrl.u32 %v2954, 16
      %v3038 = vor.u32 %v3036, %v3034
      %v3040 = vshll.u32 %v2955, 16
      %v3042 = vrot.slane %v3040, 1
      %v3043 = vsel %vm1674, %v3038, %v3042
      %v3044 = vshrl.u32 %v2955, 16
      %v3046 = vor.u32 %v3044, %v3042
      %v3048 = vshll.u32 %v2956, 16
      %v3050 = vrot.slane %v3048, 1
      %v3051 = vsel %vm1674, %v3046, %v3050
      %v3052 = vshrl.u32 %v2956, 16
      %v3054 = vor.u32 %v3052, %v3050
      %v3056 = vshll.u32 %v2957, 16
      %v3058 = vrot.slane %v3056, 1
      %v3059 = vsel %vm1674, %v3054, %v3058
      %v3060 = vshrl.u32 %v2957, 16
      %v3062 = vor.u32 %v3060, %v3058
      %v3064 = vshll.u32 %v2958, 16
      %v3066 = vrot.slane %v3064, 1
      %v3067 = vsel %vm1674, %v3062, %v3066
      %v3068 = vshrl.u32 %v2958, 16
      %v3070 = vor.u32 %v3068, %v3066
      %v3072 = vshll.u32 %v2959, 16
      %v3074 = vrot.slane %v3072, 1
      %v3075 = vsel %vm1674, %v3070, %v3074
      %v3076 = vshrl.u32 %v2959, 16
      %v3078 = vor.u32 %v3076, %v3074
      %v3080 = vshll.u32 %v2960, 16
      %v3082 = vrot.slane %v3080, 1
      %v3083 = vsel %vm1674, %v3078, %v3082
      %v3084 = vshrl.u32 %v2960, 16
      %v3086 = vor.u32 %v3084, %v3082
      %v3088 = vshll.u32 %v2961, 16
      %v3090 = vrot.slane %v3088, 1
      %v3091 = vsel %vm1674, %v3086, %v3090
      %v3092 = vshrl.u32 %v2961, 16
      %v3094 = vor.u32 %v3092, %v3090
      %v3096 = vshll.u32 %v2962, 16
      %v3098 = vrot.slane %v3096, 1
      %v3099 = vsel %vm1674, %v3094, %v3098
      %v3100 = vshrl.u32 %v2962, 16
      %v3102 = vor.u32 %v3100, %v3098
      %v3104 = vshll.u32 %v2963, 16
      %v3106 = vrot.slane %v3104, 1
      %v3107 = vsel %vm1674, %v3102, %v3106
      %v3108 = vshrl.u32 %v2963, 16
      %v3110 = vor.u32 %v3108, %v3106
      %v3112 = vshll.u32 %v2967, 16
      %v3114 = vrot.slane %v3112, 1
      %v3115 = vsel %vm1674, %v3110, %v3114
      %v3116 = vshrl.u32 %v2967, 16
      %v3118 = vor.u32 %v3116, %v3114
      %3119 = vrot.lane.b32.xlu0 %v2979, 64
      %v3120 = vpop.permute.xlu0 %3119
      %3121 = vrot.lane.b32.xlu0 %v2987, 64
      %v3122 = vpop.permute.xlu0 %3121
      %3123 = vrot.lane.b32.xlu0 %v2995, 64
      %v3124 = vpop.permute.xlu0 %3123
      %3125 = vrot.lane.b32.xlu0 %v3003, 64
      %v3126 = vpop.permute.xlu0 %3125
      %3127 = vrot.lane.b32.xlu0 %v3011, 64
      %v3128 = vpop.permute.xlu0 %3127
      %3129 = vrot.lane.b32.xlu0 %v3019, 64
      %v3130 = vpop.permute.xlu0 %3129
      %3131 = vrot.lane.b32.xlu0 %v3027, 64
      %v3132 = vpop.permute.xlu0 %3131
      %3133 = vrot.lane.b32.xlu0 %v3035, 64
      %v3134 = vpop.permute.xlu0 %3133
      %3135 = vrot.lane.b32.xlu0 %v3043, 64
      %v3136 = vpop.permute.xlu0 %3135
      %3137 = vrot.lane.b32.xlu0 %v3051, 64
      %v3138 = vpop.permute.xlu0 %3137
      %3139 = vrot.lane.b32.xlu0 %v3059, 64
      %v3140 = vpop.permute.xlu0 %3139
      %3141 = vrot.lane.b32.xlu0 %v3067, 64
      %v3142 = vpop.permute.xlu0 %3141
      %3143 = vrot.lane.b32.xlu0 %v3075, 64
      %v3144 = vpop.permute.xlu0 %3143
      %3145 = vrot.lane.b32.xlu0 %v3083, 64
      %v3146 = vpop.permute.xlu0 %3145
      %3147 = vrot.lane.b32.xlu0 %v3091, 64
      %v3148 = vpop.permute.xlu0 %3147
      %3149 = vrot.lane.b32.xlu0 %v3099, 64
      %v3150 = vpop.permute.xlu0 %3149
      %3151 = vrot.lane.b32.xlu0 %v3107, 64
      %v3152 = vpop.permute.xlu0 %3151
      %3153 = vrot.lane.b32.xlu0 %v3115, 64
      %v3154 = vpop.permute.xlu0 %3153
      %3155 = vrot.lane.b32.xlu0 %v3118, 64
      %v3156 = vpop.permute.xlu0 %3155
      %v3158 = vunpack.c.l.b16 %v2871
      %v3159 = vpack.c.b16 %v2910, %v3158
      %v3160 = vrot.slane %v3159, 1
      %v3161 = vrot.slane %v2947, 1
      %v3162 = vsel %vm1862, %v3160, %v3161
      %v3163 = vrot.slane %v2948, 1
      %v3164 = vsel %vm1862, %v3161, %v3163
      %v3165 = vrot.slane %v2949, 1
      %v3166 = vsel %vm1862, %v3163, %v3165
      %v3167 = vrot.slane %v2950, 1
      %v3168 = vsel %vm1862, %v3165, %v3167
      %v3169 = vrot.slane %v2951, 1
      %v3170 = vsel %vm1862, %v3167, %v3169
      %v3171 = vrot.slane %v2952, 1
      %v3172 = vsel %vm1862, %v3169, %v3171
      %v3173 = vrot.slane %v2953, 1
      %v3174 = vsel %vm1862, %v3171, %v3173
      %v3175 = vrot.slane %v2954, 1
      %v3176 = vsel %vm1862, %v3173, %v3175
      %v3177 = vrot.slane %v2955, 1
      %v3178 = vsel %vm1862, %v3175, %v3177
      %v3179 = vrot.slane %v2956, 1
      %v3180 = vsel %vm1862, %v3177, %v3179
      %v3181 = vrot.slane %v2957, 1
      %v3182 = vsel %vm1862, %v3179, %v3181
      %v3183 = vrot.slane %v2958, 1
      %v3184 = vsel %vm1862, %v3181, %v3183
      %v3185 = vrot.slane %v2959, 1
      %v3186 = vsel %vm1862, %v3183, %v3185
      %v3187 = vrot.slane %v2960, 1
      %v3188 = vsel %vm1862, %v3185, %v3187
      %v3189 = vrot.slane %v2961, 1
      %v3190 = vsel %vm1862, %v3187, %v3189
      %v3191 = vrot.slane %v2962, 1
      %v3192 = vsel %vm1862, %v3189, %v3191
      %v3193 = vrot.slane %v2963, 1
      %v3194 = vsel %vm1862, %v3191, %v3193
      %v3195 = vrot.slane %v2967, 1
      %v3196 = vsel %vm1862, %v3193, %v3195
      %v3198 = vsel %vm1900, %v2946, %v3120
      %v3200 = vsel %vm1900, %v2947, %v3122
      %v3202 = vsel %vm1900, %v2948, %v3124
      %v3204 = vsel %vm1900, %v2949, %v3126
      %v3206 = vsel %vm1900, %v2950, %v3128
      %v3208 = vsel %vm1900, %v2951, %v3130
      %v3210 = vsel %vm1900, %v2952, %v3132
      %v3212 = vsel %vm1900, %v2953, %v3134
      %v3214 = vsel %vm1900, %v2954, %v3136
      %v3216 = vsel %vm1900, %v2955, %v3138
      %v3218 = vsel %vm1900, %v2956, %v3140
      %v3220 = vsel %vm1900, %v2957, %v3142
      %v3222 = vsel %vm1900, %v2958, %v3144
      %v3224 = vsel %vm1900, %v2959, %v3146
      %v3226 = vsel %vm1900, %v2960, %v3148
      %v3228 = vsel %vm1900, %v2961, %v3150
      %v3230 = vsel %vm1900, %v2962, %v3152
      %v3232 = vsel %vm1900, %v2963, %v3154
      %v3235 = vsel %vm1900, %v2964, %v3156
      %s3236 = scalar_lea.vmem %s1, 192
      %v3237 = vld [vmem:[%s3236] sm:$0xf]
      %v3238 = vld [vmem:[%s3236 + $0x4] sm:$0xf]
      %v3239 = vld [vmem:[%s3236 + $0x8] sm:$0xf]
      %v3240 = vld [vmem:[%s3236 + $0xc] sm:$0xf]
      %v3241 = vld [vmem:[%s3236 + $0x10] sm:$0xf]
      %v3242 = vld [vmem:[%s3236 + $0x14] sm:$0xf]
      %v3243 = vld [vmem:[%s3236 + $0x18] sm:$0xf]
      %v3244 = vld [vmem:[%s3236 + $0x1c] sm:$0xf]
      %v3245 = vld [vmem:[%s3236 + $0x20] sm:$0xf]
      %v3246 = vld [vmem:[%s3236 + $0x24] sm:$0xf]
      %v3247 = vld [vmem:[%s3236 + $0x28] sm:$0xf]
      %v3248 = vld [vmem:[%s3236 + $0x2c] sm:$0xf]
      %v3249 = vld [vmem:[%s3236 + $0x30] sm:$0xf]
      %v3250 = vld [vmem:[%s3236 + $0x34] sm:$0xf]
      %v3251 = vld [vmem:[%s3236 + $0x38] sm:$0xf]
      %v3252 = vld [vmem:[%s3236 + $0x3c] sm:$0xf]
      %v3253 = vld [vmem:[%s3236 + $0x40] sm:$0xf]
      %v3254 = vld [vmem:[%s3236 + $0x44] sm:$0xf]
      %v3255 = vld [vmem:[%s3236 + $0x48] sm:$0xf]
      %v3256 = vld [vmem:[%s3236 + $0x4c] sm:$0xf]
      %v3257 = vld [vmem:[%s3236 + $0x50] sm:$0xf]
      %v3258 = vld [vmem:[%s3236 + $0x54] sm:$0xf]
      %v3259 = vld [vmem:[%s3236 + $0x58] sm:$0xf]
      %v3260 = vld [vmem:[%s3236 + $0x5c] sm:$0xf]
      %vm3280 = vcmask 1045504
      %v3281 = vrot.slane %v3198, 2
      %v3282 = vrot.slane %v3200, 2
      %v3283 = vsel %vm3280, %v3281, %v3282
      %v3284 = vrot.slane %v3162, 2
      %v3285 = vrot.slane %v3164, 2
      %v3286 = vsel %vm3280, %v3284, %v3285
      %v3287 = vrot.slane %v3202, 2
      %v3288 = vsel %vm3280, %v3282, %v3287
      %v3289 = vrot.slane %v3166, 2
      %v3290 = vsel %vm3280, %v3285, %v3289
      %v3291 = vrot.slane %v3204, 2
      %v3292 = vsel %vm3280, %v3287, %v3291
      %v3293 = vrot.slane %v3168, 2
      %v3294 = vsel %vm3280, %v3289, %v3293
      %v3295 = vrot.slane %v3206, 2
      %v3296 = vsel %vm3280, %v3291, %v3295
      %v3297 = vrot.slane %v3170, 2
      %v3298 = vsel %vm3280, %v3293, %v3297
      %v3299 = vrot.slane %v3208, 2
      %v3300 = vsel %vm3280, %v3295, %v3299
      %v3301 = vrot.slane %v3172, 2
      %v3302 = vsel %vm3280, %v3297, %v3301
      %v3303 = vrot.slane %v3210, 2
      %v3304 = vsel %vm3280, %v3299, %v3303
      %v3305 = vrot.slane %v3174, 2
      %v3306 = vsel %vm3280, %v3301, %v3305
      %v3307 = vrot.slane %v3212, 2
      %v3308 = vsel %vm3280, %v3303, %v3307
      %v3309 = vrot.slane %v3176, 2
      %v3310 = vsel %vm3280, %v3305, %v3309
      %v3311 = vrot.slane %v3214, 2
      %v3312 = vsel %vm3280, %v3307, %v3311
      %v3313 = vrot.slane %v3178, 2
      %v3314 = vsel %vm3280, %v3309, %v3313
      %v3315 = vrot.slane %v3216, 2
      %v3316 = vsel %vm3280, %v3311, %v3315
      %v3317 = vrot.slane %v3180, 2
      %v3318 = vsel %vm3280, %v3313, %v3317
      %v3319 = vrot.slane %v3218, 2
      %v3320 = vsel %vm3280, %v3315, %v3319
      %v3321 = vrot.slane %v3182, 2
      %v3322 = vsel %vm3280, %v3317, %v3321
      %v3323 = vrot.slane %v3220, 2
      %v3324 = vsel %vm3280, %v3319, %v3323
      %v3325 = vrot.slane %v3184, 2
      %v3326 = vsel %vm3280, %v3321, %v3325
      %v3327 = vrot.slane %v3222, 2
      %v3328 = vsel %vm3280, %v3323, %v3327
      %v3329 = vrot.slane %v3186, 2
      %v3330 = vsel %vm3280, %v3325, %v3329
      %v3331 = vrot.slane %v3224, 2
      %v3332 = vsel %vm3280, %v3327, %v3331
      %v3333 = vrot.slane %v3188, 2
      %v3334 = vsel %vm3280, %v3329, %v3333
      %v3335 = vrot.slane %v3226, 2
      %v3336 = vsel %vm3280, %v3331, %v3335
      %v3337 = vrot.slane %v3190, 2
      %v3338 = vsel %vm3280, %v3333, %v3337
      %v3339 = vrot.slane %v3228, 2
      %v3340 = vsel %vm3280, %v3335, %v3339
      %v3341 = vrot.slane %v3192, 2
      %v3342 = vsel %vm3280, %v3337, %v3341
      %v3343 = vrot.slane %v3230, 2
      %v3344 = vsel %vm3280, %v3339, %v3343
      %v3345 = vrot.slane %v3194, 2
      %v3346 = vsel %vm3280, %v3341, %v3345
      %v3347 = vrot.slane %v3232, 2
      %v3348 = vsel %vm3280, %v3343, %v3347
      %v3349 = vrot.slane %v3196, 2
      %v3350 = vsel %vm3280, %v3345, %v3349
      %v3351 = vrot.slane %v3235, 2
      %v3352 = vsel %vm3280, %v3347, %v3351
      %v3353 = vrot.slane %v3195, 2
      %v3354 = vsel %vm3280, %v3349, %v3353
      %v3397 = vunpack.c.l.b16 %v3237
      %v3398 = vunpack.c.l.b16 %v3238
      %v3399 = vunpack.c.l.b16 %v3239
      %v3400 = vunpack.c.l.b16 %v3240
      %v3401 = vunpack.c.l.b16 %v3241
      %v3402 = vunpack.c.l.b16 %v3242
      %v3403 = vunpack.c.l.b16 %v3243
      %v3404 = vunpack.c.l.b16 %v3244
      %v3405 = vunpack.c.l.b16 %v3245
      %v3406 = vunpack.c.l.b16 %v3246
      %v3407 = vunpack.c.l.b16 %v3247
      %v3408 = vunpack.c.l.b16 %v3248
      %v3409 = vunpack.c.l.b16 %v3249
      %v3410 = vunpack.c.l.b16 %v3250
      %v3411 = vunpack.c.l.b16 %v3251
      %v3412 = vunpack.c.l.b16 %v3252
      %v3413 = vunpack.c.l.b16 %v3253
      %v3414 = vunpack.c.l.b16 %v3254
      %v3415 = vunpack.c.l.b16 %v3255
      %v3416 = vunpack.c.l.b16 %v3256
      %v3417 = vunpack.c.l.b16 %v3257
      %v3418 = vunpack.c.l.b16 %v3258
      %v3419 = vunpack.c.l.b16 %v3259
      %v3420 = vunpack.c.l.b16 %v3260
      %v3421 = vpack.c.b16 %v3398, %v3397
      %v3422 = vpack.c.b16 %v3400, %v3399
      %v3423 = vpack.c.b16 %v3402, %v3401
      %v3424 = vpack.c.b16 %v3404, %v3403
      %v3425 = vpack.c.b16 %v3406, %v3405
      %v3426 = vpack.c.b16 %v3408, %v3407
      %v3427 = vpack.c.b16 %v3410, %v3409
      %v3428 = vpack.c.b16 %v3412, %v3411
      %v3429 = vpack.c.b16 %v3414, %v3413
      %v3430 = vpack.c.b16 %v3416, %v3415
      %v3431 = vpack.c.b16 %v3418, %v3417
      %v3432 = vpack.c.b16 %v3420, %v3419
      %v3446 = vsel %vm1900, %v3286, 0
      %v3449 = vsel %vm1900, %v3290, 0
      %v3452 = vsel %vm1900, %v3294, 0
      %v3455 = vsel %vm1900, %v3298, 0
      %v3458 = vsel %vm1900, %v3302, 0
      %v3461 = vsel %vm1900, %v3306, 0
      %v3464 = vsel %vm1900, %v3310, 0
      %v3467 = vsel %vm1900, %v3314, 0
      %v3470 = vsel %vm1900, %v3318, 0
      %v3473 = vsel %vm1900, %v3322, 0
      %v3476 = vsel %vm1900, %v3326, 0
      %v3479 = vsel %vm1900, %v3330, 0
      %v3482 = vsel %vm1900, %v3334, 0
      %v3485 = vsel %vm1900, %v3338, 0
      %v3488 = vsel %vm1900, %v3342, 0
      %v3491 = vsel %vm1900, %v3346, 0
      %v3494 = vsel %vm1900, %v3350, 0
      %v3497 = vsel %vm1900, %v3354, 0
      %3499 = vmatpush.bf16.msra.mxu0 %v3428
      %3500 = vmatpush.bf16.msra.mxu0 %v3427
      %3501 = vmatpush.bf16.msra.mxu0 %v3426
      %3502 = vmatpush.bf16.msra.mxu0 %v3425
      %3503 = vmatpush.bf16.msra.mxu0 %v3424
      %3504 = vmatpush.bf16.msra.mxu0 %v3423
      %3505 = vmatpush.bf16.msra.mxu0 %v3422
      %3506 = vmatpush.bf16.msra.mxu0 %v3421
      %3507 = vmatmul.bf16.gmra.mxu0 %v3283
      %v3508 = vpop.f32.mrf.mxu0
      %v3509 = vadd.f32 0.0, %v3508
      %v3510 = vpop.f32.mrf.mxu0
      %v3511 = vadd.f32 0.0, %v3510
      %3512 = vmatmul.bf16.gmra.mxu0 %v3288
      %v3513 = vpop.f32.mrf.mxu0
      %v3514 = vadd.f32 0.0, %v3513
      %v3515 = vpop.f32.mrf.mxu0
      %v3516 = vadd.f32 0.0, %v3515
      %3517 = vmatmul.bf16.gmra.mxu0 %v3292
      %v3518 = vpop.f32.mrf.mxu0
      %v3519 = vadd.f32 0.0, %v3518
      %v3520 = vpop.f32.mrf.mxu0
      %v3521 = vadd.f32 0.0, %v3520
      %3522 = vmatmul.bf16.gmra.mxu0 %v3296
      %v3523 = vpop.f32.mrf.mxu0
      %v3524 = vadd.f32 0.0, %v3523
      %v3525 = vpop.f32.mrf.mxu0
      %v3526 = vadd.f32 0.0, %v3525
      %3527 = vmatmul.bf16.gmra.mxu0 %v3300
      %v3528 = vpop.f32.mrf.mxu0
      %v3529 = vadd.f32 0.0, %v3528
      %v3530 = vpop.f32.mrf.mxu0
      %v3531 = vadd.f32 0.0, %v3530
      %3532 = vmatmul.bf16.gmra.mxu0 %v3304
      %v3533 = vpop.f32.mrf.mxu0
      %v3534 = vadd.f32 0.0, %v3533
      %v3535 = vpop.f32.mrf.mxu0
      %v3536 = vadd.f32 0.0, %v3535
      %3537 = vmatmul.bf16.gmra.mxu0 %v3308
      %v3538 = vpop.f32.mrf.mxu0
      %v3539 = vadd.f32 0.0, %v3538
      %v3540 = vpop.f32.mrf.mxu0
      %v3541 = vadd.f32 0.0, %v3540
      %3542 = vmatmul.bf16.gmra.mxu0 %v3312
      %v3543 = vpop.f32.mrf.mxu0
      %v3544 = vadd.f32 0.0, %v3543
      %v3545 = vpop.f32.mrf.mxu0
      %v3546 = vadd.f32 0.0, %v3545
      %3547 = vmatmul.bf16.gmra.mxu0 %v3316
      %v3548 = vpop.f32.mrf.mxu0
      %v3549 = vadd.f32 0.0, %v3548
      %v3550 = vpop.f32.mrf.mxu0
      %v3551 = vadd.f32 0.0, %v3550
      %3552 = vmatmul.bf16.gmra.mxu0 %v3320
      %v3553 = vpop.f32.mrf.mxu0
      %v3554 = vadd.f32 0.0, %v3553
      %v3555 = vpop.f32.mrf.mxu0
      %v3556 = vadd.f32 0.0, %v3555
      %3557 = vmatmul.bf16.gmra.mxu0 %v3324
      %v3558 = vpop.f32.mrf.mxu0
      %v3559 = vadd.f32 0.0, %v3558
      %v3560 = vpop.f32.mrf.mxu0
      %v3561 = vadd.f32 0.0, %v3560
      %3562 = vmatmul.bf16.gmra.mxu0 %v3328
      %v3563 = vpop.f32.mrf.mxu0
      %v3564 = vadd.f32 0.0, %v3563
      %v3565 = vpop.f32.mrf.mxu0
      %v3566 = vadd.f32 0.0, %v3565
      %3567 = vmatmul.bf16.gmra.mxu0 %v3332
      %v3568 = vpop.f32.mrf.mxu0
      %v3569 = vadd.f32 0.0, %v3568
      %v3570 = vpop.f32.mrf.mxu0
      %v3571 = vadd.f32 0.0, %v3570
      %3572 = vmatmul.bf16.gmra.mxu0 %v3336
      %v3573 = vpop.f32.mrf.mxu0
      %v3574 = vadd.f32 0.0, %v3573
      %v3575 = vpop.f32.mrf.mxu0
      %v3576 = vadd.f32 0.0, %v3575
      %3577 = vmatmul.bf16.gmra.mxu0 %v3340
      %v3578 = vpop.f32.mrf.mxu0
      %v3579 = vadd.f32 0.0, %v3578
      %v3580 = vpop.f32.mrf.mxu0
      %v3581 = vadd.f32 0.0, %v3580
      %3582 = vmatmul.bf16.gmra.mxu0 %v3344
      %v3583 = vpop.f32.mrf.mxu0
      %v3584 = vadd.f32 0.0, %v3583
      %v3585 = vpop.f32.mrf.mxu0
      %v3586 = vadd.f32 0.0, %v3585
      %3587 = vmatmul.bf16.gmra.mxu0 %v3348
      %v3588 = vpop.f32.mrf.mxu0
      %v3589 = vadd.f32 0.0, %v3588
      %v3590 = vpop.f32.mrf.mxu0
      %v3591 = vadd.f32 0.0, %v3590
      %3592 = vmatmul.bf16.gmra.mxu0 %v3352
      %v3593 = vpop.f32.mrf.mxu0
      %v3594 = vadd.f32 0.0, %v3593
      %v3595 = vpop.f32.mrf.mxu0
      %v3596 = vadd.f32 0.0, %v3595
      %3597 = vdwg.mxu0
      %3598 = vmatpush.bf16.msra.mxu0 0
      %3599 = vmatpush.bf16.msra.mxu0 0
      %3600 = vmatpush.bf16.msra.mxu0 0
      %3601 = vmatpush.bf16.msra.mxu0 0
      %3602 = vmatpush.bf16.msra.mxu0 %v3432
      %3603 = vmatpush.bf16.msra.mxu0 %v3431
      %3604 = vmatpush.bf16.msra.mxu0 %v3430
      %3605 = vmatpush.bf16.msra.mxu0 %v3429
      %3606 = vmatmul.bf16.gmra.mxu0 %v3446
      %v3607 = vpop.f32.mrf.mxu0
      %v3608 = vadd.f32 %v3509, %v3607
      %v3609 = vpop.f32.mrf.mxu0
      %v3610 = vadd.f32 %v3511, %v3609
      %3611 = vmatmul.bf16.gmra.mxu0 %v3449
      %v3612 = vpop.f32.mrf.mxu0
      %v3613 = vadd.f32 %v3514, %v3612
      %v3614 = vpop.f32.mrf.mxu0
      %v3615 = vadd.f32 %v3516, %v3614
      %3616 = vmatmul.bf16.gmra.mxu0 %v3452
      %v3617 = vpop.f32.mrf.mxu0
      %v3618 = vadd.f32 %v3519, %v3617
      %v3619 = vpop.f32.mrf.mxu0
      %v3620 = vadd.f32 %v3521, %v3619
      %3621 = vmatmul.bf16.gmra.mxu0 %v3455
      %v3622 = vpop.f32.mrf.mxu0
      %v3623 = vadd.f32 %v3524, %v3622
      %v3624 = vpop.f32.mrf.mxu0
      %v3625 = vadd.f32 %v3526, %v3624
      %3626 = vmatmul.bf16.gmra.mxu0 %v3458
      %v3627 = vpop.f32.mrf.mxu0
      %v3628 = vadd.f32 %v3529, %v3627
      %v3629 = vpop.f32.mrf.mxu0
      %v3630 = vadd.f32 %v3531, %v3629
      %3631 = vmatmul.bf16.gmra.mxu0 %v3461
      %v3632 = vpop.f32.mrf.mxu0
      %v3633 = vadd.f32 %v3534, %v3632
      %v3634 = vpop.f32.mrf.mxu0
      %v3635 = vadd.f32 %v3536, %v3634
      %3636 = vmatmul.bf16.gmra.mxu0 %v3464
      %v3637 = vpop.f32.mrf.mxu0
      %v3638 = vadd.f32 %v3539, %v3637
      %v3639 = vpop.f32.mrf.mxu0
      %v3640 = vadd.f32 %v3541, %v3639
      %3641 = vmatmul.bf16.gmra.mxu0 %v3467
      %v3642 = vpop.f32.mrf.mxu0
      %v3643 = vadd.f32 %v3544, %v3642
      %v3644 = vpop.f32.mrf.mxu0
      %v3645 = vadd.f32 %v3546, %v3644
      %3646 = vmatmul.bf16.gmra.mxu0 %v3470
      %v3647 = vpop.f32.mrf.mxu0
      %v3648 = vadd.f32 %v3549, %v3647
      %v3649 = vpop.f32.mrf.mxu0
      %v3650 = vadd.f32 %v3551, %v3649
      %3651 = vmatmul.bf16.gmra.mxu0 %v3473
      %v3652 = vpop.f32.mrf.mxu0
      %v3653 = vadd.f32 %v3554, %v3652
      %v3654 = vpop.f32.mrf.mxu0
      %v3655 = vadd.f32 %v3556, %v3654
      %3656 = vmatmul.bf16.gmra.mxu0 %v3476
      %v3657 = vpop.f32.mrf.mxu0
      %v3658 = vadd.f32 %v3559, %v3657
      %v3659 = vpop.f32.mrf.mxu0
      %v3660 = vadd.f32 %v3561, %v3659
      %3661 = vmatmul.bf16.gmra.mxu0 %v3479
      %v3662 = vpop.f32.mrf.mxu0
      %v3663 = vadd.f32 %v3564, %v3662
      %v3664 = vpop.f32.mrf.mxu0
      %v3665 = vadd.f32 %v3566, %v3664
      %3666 = vmatmul.bf16.gmra.mxu0 %v3482
      %v3667 = vpop.f32.mrf.mxu0
      %v3668 = vadd.f32 %v3569, %v3667
      %v3669 = vpop.f32.mrf.mxu0
      %v3670 = vadd.f32 %v3571, %v3669
      %3671 = vmatmul.bf16.gmra.mxu0 %v3485
      %v3672 = vpop.f32.mrf.mxu0
      %v3673 = vadd.f32 %v3574, %v3672
      %v3674 = vpop.f32.mrf.mxu0
      %v3675 = vadd.f32 %v3576, %v3674
      %3676 = vmatmul.bf16.gmra.mxu0 %v3488
      %v3677 = vpop.f32.mrf.mxu0
      %v3678 = vadd.f32 %v3579, %v3677
      %v3679 = vpop.f32.mrf.mxu0
      %v3680 = vadd.f32 %v3581, %v3679
      %3681 = vmatmul.bf16.gmra.mxu0 %v3491
      %v3682 = vpop.f32.mrf.mxu0
      %v3683 = vadd.f32 %v3584, %v3682
      %v3684 = vpop.f32.mrf.mxu0
      %v3685 = vadd.f32 %v3586, %v3684
      %3686 = vmatmul.bf16.gmra.mxu0 %v3494
      %v3687 = vpop.f32.mrf.mxu0
      %v3688 = vadd.f32 %v3589, %v3687
      %v3689 = vpop.f32.mrf.mxu0
      %v3690 = vadd.f32 %v3591, %v3689
      %3691 = vmatmul.bf16.gmra.mxu0 %v3497
      %v3692 = vpop.f32.mrf.mxu0
      %v3693 = vadd.f32 %v3594, %v3692
      %v3694 = vpop.f32.mrf.mxu0
      %v3695 = vadd.f32 %v3596, %v3694
      %3696 = vdwg.mxu0
      %v3697 = vadd.f32 %v2744, %v3608
      %v3698 = vadd.f32 %v2746, %v3610
      %v3699 = vadd.f32 %v2749, %v3613
      %v3700 = vadd.f32 %v2751, %v3615
      %v3701 = vadd.f32 %v2754, %v3618
      %v3702 = vadd.f32 %v2756, %v3620
      %v3703 = vadd.f32 %v2759, %v3623
      %v3704 = vadd.f32 %v2761, %v3625
      %v3705 = vadd.f32 %v2764, %v3628
      %v3706 = vadd.f32 %v2766, %v3630
      %v3707 = vadd.f32 %v2769, %v3633
      %v3708 = vadd.f32 %v2771, %v3635
      %v3709 = vadd.f32 %v2774, %v3638
      %v3710 = vadd.f32 %v2776, %v3640
      %v3711 = vadd.f32 %v2779, %v3643
      %v3712 = vadd.f32 %v2781, %v3645
      %v3713 = vadd.f32 %v2784, %v3648
      %v3714 = vadd.f32 %v2786, %v3650
      %v3715 = vadd.f32 %v2789, %v3653
      %v3716 = vadd.f32 %v2791, %v3655
      %v3717 = vadd.f32 %v2794, %v3658
      %v3718 = vadd.f32 %v2796, %v3660
      %v3719 = vadd.f32 %v2799, %v3663
      %v3720 = vadd.f32 %v2801, %v3665
      %v3721 = vadd.f32 %v2804, %v3668
      %v3722 = vadd.f32 %v2806, %v3670
      %v3723 = vadd.f32 %v2809, %v3673
      %v3724 = vadd.f32 %v2811, %v3675
      %v3725 = vadd.f32 %v2814, %v3678
      %v3726 = vadd.f32 %v2816, %v3680
      %v3727 = vadd.f32 %v2819, %v3683
      %v3728 = vadd.f32 %v2821, %v3685
      %v3729 = vadd.f32 %v2824, %v3688
      %v3730 = vadd.f32 %v2826, %v3690
      %v3731 = vadd.f32 %v2829, %v3693
      %v3732 = vadd.f32 %v2831, %v3695
      %v3733 = vld [vmem:[%s3] sm:$0x1]
      %v3735 = vperm.slane %v3733, 0
      %v3737 = vadd.f32 %v3697, %v3735
      %v3738 = vadd.f32 %v3698, %v3735
      %v3739 = vadd.f32 %v3699, %v3735
      %v3740 = vadd.f32 %v3700, %v3735
      %v3741 = vadd.f32 %v3701, %v3735
      %v3742 = vadd.f32 %v3702, %v3735
      %v3743 = vadd.f32 %v3703, %v3735
      %v3744 = vadd.f32 %v3704, %v3735
      %v3745 = vadd.f32 %v3705, %v3735
      %v3746 = vadd.f32 %v3706, %v3735
      %v3747 = vadd.f32 %v3707, %v3735
      %v3748 = vadd.f32 %v3708, %v3735
      %v3749 = vadd.f32 %v3709, %v3735
      %v3750 = vadd.f32 %v3710, %v3735
      %v3751 = vadd.f32 %v3711, %v3735
      %v3752 = vadd.f32 %v3712, %v3735
      %v3753 = vadd.f32 %v3713, %v3735
      %v3754 = vadd.f32 %v3714, %v3735
      %v3755 = vadd.f32 %v3715, %v3735
      %v3756 = vadd.f32 %v3716, %v3735
      %v3757 = vadd.f32 %v3717, %v3735
      %v3758 = vadd.f32 %v3718, %v3735
      %v3759 = vadd.f32 %v3719, %v3735
      %v3760 = vadd.f32 %v3720, %v3735
      %v3761 = vadd.f32 %v3721, %v3735
      %v3762 = vadd.f32 %v3722, %v3735
      %v3763 = vadd.f32 %v3723, %v3735
      %v3764 = vadd.f32 %v3724, %v3735
      %v3765 = vadd.f32 %v3725, %v3735
      %v3766 = vadd.f32 %v3726, %v3735
      %v3767 = vadd.f32 %v3727, %v3735
      %v3768 = vadd.f32 %v3728, %v3735
      %v3769 = vadd.f32 %v3729, %v3735
      %v3770 = vadd.f32 %v3730, %v3735
      %v3771 = vadd.f32 %v3731, %v3735
      %v3772 = vadd.f32 %v3732, %v3735
      %v3773 = vmax.f32 %v3737, 0.0
      %v3774 = vmax.f32 %v3738, 0.0
      %v3775 = vmax.f32 %v3739, 0.0
      %v3776 = vmax.f32 %v3740, 0.0
      %v3777 = vmax.f32 %v3741, 0.0
      %v3778 = vmax.f32 %v3742, 0.0
      %v3779 = vmax.f32 %v3743, 0.0
      %v3780 = vmax.f32 %v3744, 0.0
      %v3781 = vmax.f32 %v3745, 0.0
      %v3782 = vmax.f32 %v3746, 0.0
      %v3783 = vmax.f32 %v3747, 0.0
      %v3784 = vmax.f32 %v3748, 0.0
      %v3785 = vmax.f32 %v3749, 0.0
      %v3786 = vmax.f32 %v3750, 0.0
      %v3787 = vmax.f32 %v3751, 0.0
      %v3788 = vmax.f32 %v3752, 0.0
      %v3789 = vmax.f32 %v3753, 0.0
      %v3790 = vmax.f32 %v3754, 0.0
      %v3791 = vmax.f32 %v3755, 0.0
      %v3792 = vmax.f32 %v3756, 0.0
      %v3793 = vmax.f32 %v3757, 0.0
      %v3794 = vmax.f32 %v3758, 0.0
      %v3795 = vmax.f32 %v3759, 0.0
      %v3796 = vmax.f32 %v3760, 0.0
      %v3797 = vmax.f32 %v3761, 0.0
      %v3798 = vmax.f32 %v3762, 0.0
      %v3799 = vmax.f32 %v3763, 0.0
      %v3800 = vmax.f32 %v3764, 0.0
      %v3801 = vmax.f32 %v3765, 0.0
      %v3802 = vmax.f32 %v3766, 0.0
      %v3803 = vmax.f32 %v3767, 0.0
      %v3804 = vmax.f32 %v3768, 0.0
      %v3805 = vmax.f32 %v3769, 0.0
      %v3806 = vmax.f32 %v3770, 0.0
      %v3807 = vmax.f32 %v3771, 0.0
      %v3808 = vmax.f32 %v3772, 0.0
      %v3809 = vsel %vm1507, 1, 0
      %v3810 = vsel %vm1508, 1, 0
      %v3811 = vsel %vm1509, 1, 0
      %v3812 = vsel %vm1510, 1, 0
      %v3813 = vsel %vm1511, 1, 0
      %v3814 = vsel %vm1512, 1, 0
      %v3815 = vsel %vm1513, 1, 0
      %v3816 = vsel %vm1514, 1, 0
      %v3817 = vsel %vm1515, 1, 0
      %v3818 = vsel %vm1516, 1, 0
      %v3819 = vsel %vm1517, 1, 0
      %v3820 = vsel %vm1518, 1, 0
      %v3821 = vsel %vm1519, 1, 0
      %v3822 = vsel %vm1520, 1, 0
      %v3823 = vsel %vm1521, 1, 0
      %v3824 = vsel %vm1522, 1, 0
      %v3825 = vsel %vm1523, 1, 0
      %v3826 = vsel %vm1524, 1, 0
      %v3827 = vsel %vm1525, 1, 0
      %v3828 = vsel %vm1526, 1, 0
      %v3829 = vsel %vm1527, 1, 0
      %v3830 = vsel %vm1528, 1, 0
      %v3831 = vsel %vm1529, 1, 0
      %v3832 = vsel %vm1530, 1, 0
      %v3833 = vsel %vm1531, 1, 0
      %v3834 = vsel %vm1532, 1, 0
      %v3835 = vsel %vm1533, 1, 0
      %v3836 = vsel %vm1534, 1, 0
      %v3837 = vsel %vm1535, 1, 0
      %v3838 = vsel %vm1536, 1, 0
      %v3839 = vsel %vm1537, 1, 0
      %v3840 = vsel %vm1538, 1, 0
      %v3841 = vsel %vm1539, 1, 0
      %v3842 = vsel %vm1540, 1, 0
      %v3843 = vsel %vm1541, 1, 0
      %v3844 = vsel %vm1542, 1, 0
      %vm3845 = vcmp.eq.s32.totalorder %v3809, 1
      %vm3846 = vcmp.eq.s32.totalorder %v3810, 1
      %vm3847 = vcmp.eq.s32.totalorder %v3811, 1
      %vm3848 = vcmp.eq.s32.totalorder %v3812, 1
      %vm3849 = vcmp.eq.s32.totalorder %v3813, 1
      %vm3850 = vcmp.eq.s32.totalorder %v3814, 1
      %vm3851 = vcmp.eq.s32.totalorder %v3815, 1
      %vm3852 = vcmp.eq.s32.totalorder %v3816, 1
      %vm3853 = vcmp.eq.s32.totalorder %v3817, 1
      %vm3854 = vcmp.eq.s32.totalorder %v3818, 1
      %vm3855 = vcmp.eq.s32.totalorder %v3819, 1
      %vm3856 = vcmp.eq.s32.totalorder %v3820, 1
      %vm3857 = vcmp.eq.s32.totalorder %v3821, 1
      %vm3858 = vcmp.eq.s32.totalorder %v3822, 1
      %vm3859 = vcmp.eq.s32.totalorder %v3823, 1
      %vm3860 = vcmp.eq.s32.totalorder %v3824, 1
      %vm3861 = vcmp.eq.s32.totalorder %v3825, 1
      %vm3862 = vcmp.eq.s32.totalorder %v3826, 1
      %vm3863 = vcmp.eq.s32.totalorder %v3827, 1
      %vm3864 = vcmp.eq.s32.totalorder %v3828, 1
      %vm3865 = vcmp.eq.s32.totalorder %v3829, 1
      %vm3866 = vcmp.eq.s32.totalorder %v3830, 1
      %vm3867 = vcmp.eq.s32.totalorder %v3831, 1
      %vm3868 = vcmp.eq.s32.totalorder %v3832, 1
      %vm3869 = vcmp.eq.s32.totalorder %v3833, 1
      %vm3870 = vcmp.eq.s32.totalorder %v3834, 1
      %vm3871 = vcmp.eq.s32.totalorder %v3835, 1
      %vm3872 = vcmp.eq.s32.totalorder %v3836, 1
      %vm3873 = vcmp.eq.s32.totalorder %v3837, 1
      %vm3874 = vcmp.eq.s32.totalorder %v3838, 1
      %vm3875 = vcmp.eq.s32.totalorder %v3839, 1
      %vm3876 = vcmp.eq.s32.totalorder %v3840, 1
      %vm3877 = vcmp.eq.s32.totalorder %v3841, 1
      %vm3878 = vcmp.eq.s32.totalorder %v3842, 1
      %vm3879 = vcmp.eq.s32.totalorder %v3843, 1
      %vm3880 = vcmp.eq.s32.totalorder %v3844, 1
      %v3881 = vsel %vm3845, %v3773, 0.0
      %v3882 = vsel %vm3846, %v3774, 0.0
      %v3883 = vsel %vm3847, %v3775, 0.0
      %v3884 = vsel %vm3848, %v3776, 0.0
      %v3885 = vsel %vm3849, %v3777, 0.0
      %v3886 = vsel %vm3850, %v3778, 0.0
      %v3887 = vsel %vm3851, %v3779, 0.0
      %v3888 = vsel %vm3852, %v3780, 0.0
      %v3889 = vsel %vm3853, %v3781, 0.0
      %v3890 = vsel %vm3854, %v3782, 0.0
      %v3891 = vsel %vm3855, %v3783, 0.0
      %v3892 = vsel %vm3856, %v3784, 0.0
      %v3893 = vsel %vm3857, %v3785, 0.0
      %v3894 = vsel %vm3858, %v3786, 0.0
      %v3895 = vsel %vm3859, %v3787, 0.0
      %v3896 = vsel %vm3860, %v3788, 0.0
      %v3897 = vsel %vm3861, %v3789, 0.0
      %v3898 = vsel %vm3862, %v3790, 0.0
      %v3899 = vsel %vm3863, %v3791, 0.0
      %v3900 = vsel %vm3864, %v3792, 0.0
      %v3901 = vsel %vm3865, %v3793, 0.0
      %v3902 = vsel %vm3866, %v3794, 0.0
      %v3903 = vsel %vm3867, %v3795, 0.0
      %v3904 = vsel %vm3868, %v3796, 0.0
      %v3905 = vsel %vm3869, %v3797, 0.0
      %v3906 = vsel %vm3870, %v3798, 0.0
      %v3907 = vsel %vm3871, %v3799, 0.0
      %v3908 = vsel %vm3872, %v3800, 0.0
      %v3909 = vsel %vm3873, %v3801, 0.0
      %v3910 = vsel %vm3874, %v3802, 0.0
      %v3911 = vsel %vm3875, %v3803, 0.0
      %v3912 = vsel %vm3876, %v3804, 0.0
      %v3913 = vsel %vm3877, %v3805, 0.0
      %v3914 = vsel %vm3878, %v3806, 0.0
      %v3915 = vsel %vm3879, %v3807, 0.0
      %v3916 = vsel %vm3880, %v3808, 0.0
      %v3917 = vpack.c.bf16 %v3881, %v3881
      %v3918 = vpack.c.bf16 %v3882, %v3882
      %v3919 = vpack.c.bf16 %v3883, %v3883
      %v3920 = vpack.c.bf16 %v3884, %v3884
      %v3921 = vpack.c.bf16 %v3885, %v3885
      %v3922 = vpack.c.bf16 %v3886, %v3886
      %v3923 = vpack.c.bf16 %v3887, %v3887
      %v3924 = vpack.c.bf16 %v3888, %v3888
      %v3925 = vpack.c.bf16 %v3889, %v3889
      %v3926 = vpack.c.bf16 %v3890, %v3890
      %v3927 = vpack.c.bf16 %v3891, %v3891
      %v3928 = vpack.c.bf16 %v3892, %v3892
      %v3929 = vpack.c.bf16 %v3893, %v3893
      %v3930 = vpack.c.bf16 %v3894, %v3894
      %v3931 = vpack.c.bf16 %v3895, %v3895
      %v3932 = vpack.c.bf16 %v3896, %v3896
      %v3933 = vpack.c.bf16 %v3897, %v3897
      %v3934 = vpack.c.bf16 %v3898, %v3898
      %v3935 = vpack.c.bf16 %v3899, %v3899
      %v3936 = vpack.c.bf16 %v3900, %v3900
      %v3937 = vpack.c.bf16 %v3901, %v3901
      %v3938 = vpack.c.bf16 %v3902, %v3902
      %v3939 = vpack.c.bf16 %v3903, %v3903
      %v3940 = vpack.c.bf16 %v3904, %v3904
      %v3941 = vpack.c.bf16 %v3905, %v3905
      %v3942 = vpack.c.bf16 %v3906, %v3906
      %v3943 = vpack.c.bf16 %v3907, %v3907
      %v3944 = vpack.c.bf16 %v3908, %v3908
      %v3945 = vpack.c.bf16 %v3909, %v3909
      %v3946 = vpack.c.bf16 %v3910, %v3910
      %v3947 = vpack.c.bf16 %v3911, %v3911
      %v3948 = vpack.c.bf16 %v3912, %v3912
      %v3949 = vpack.c.bf16 %v3913, %v3913
      %v3950 = vpack.c.bf16 %v3914, %v3914
      %v3951 = vpack.c.bf16 %v3915, %v3915
      %v3952 = vpack.c.bf16 %v3916, %v3916
      %vm3953 = vsmask.f32 5392
      %vm3954 = vmor %vm230, %vm3953
      %v3956 = vshrl.u32 %v3917, 16
      %v3958 = vrot.slane %v3956, 6
      %v3959 = vshll.u32 %v3917, 16
      %v3961 = vrot.slane %v3959, 7
      %v3962 = vor.u32 %v3958, %v3961
      %v3963 = vrot.slane %v3962, 4
      %v3965 = vshrl.u32 %v3918, 16
      %v3967 = vrot.slane %v3965, 6
      %v3968 = vshll.u32 %v3918, 16
      %v3970 = vrot.slane %v3968, 7
      %v3971 = vor.u32 %v3967, %v3970
      %v3972 = vsel %vm3954, %v3963, %v3971
      %v3973 = vrot.slane %v3971, 4
      %v3975 = vshrl.u32 %v3919, 16
      %v3977 = vrot.slane %v3975, 6
      %v3978 = vshll.u32 %v3919, 16
      %v3980 = vrot.slane %v3978, 7
      %v3981 = vor.u32 %v3977, %v3980
      %v3982 = vsel %vm3954, %v3973, %v3981
      %v3983 = vrot.slane %v3981, 4
      %v3985 = vshrl.u32 %v3920, 16
      %v3987 = vrot.slane %v3985, 6
      %v3988 = vshll.u32 %v3920, 16
      %v3990 = vrot.slane %v3988, 7
      %v3991 = vor.u32 %v3987, %v3990
      %v3992 = vsel %vm3954, %v3983, %v3991
      %v3993 = vrot.slane %v3991, 4
      %v3995 = vshrl.u32 %v3921, 16
      %v3997 = vrot.slane %v3995, 6
      %v3998 = vshll.u32 %v3921, 16
      %v4000 = vrot.slane %v3998, 7
      %v4001 = vor.u32 %v3997, %v4000
      %v4002 = vsel %vm3954, %v3993, %v4001
      %v4003 = vrot.slane %v4001, 4
      %v4005 = vshrl.u32 %v3922, 16
      %v4007 = vrot.slane %v4005, 6
      %v4008 = vshll.u32 %v3922, 16
      %v4010 = vrot.slane %v4008, 7
      %v4011 = vor.u32 %v4007, %v4010
      %v4012 = vsel %vm3954, %v4003, %v4011
      %v4013 = vrot.slane %v4011, 4
      %v4015 = vshrl.u32 %v3923, 16
      %v4017 = vrot.slane %v4015, 6
      %v4018 = vshll.u32 %v3923, 16
      %v4020 = vrot.slane %v4018, 7
      %v4021 = vor.u32 %v4017, %v4020
      %v4022 = vsel %vm3954, %v4013, %v4021
      %v4023 = vrot.slane %v4021, 4
      %v4025 = vshrl.u32 %v3924, 16
      %v4027 = vrot.slane %v4025, 6
      %v4028 = vshll.u32 %v3924, 16
      %v4030 = vrot.slane %v4028, 7
      %v4031 = vor.u32 %v4027, %v4030
      %v4032 = vsel %vm3954, %v4023, %v4031
      %v4033 = vrot.slane %v4031, 4
      %v4035 = vshrl.u32 %v3925, 16
      %v4037 = vrot.slane %v4035, 6
      %v4038 = vshll.u32 %v3925, 16
      %v4040 = vrot.slane %v4038, 7
      %v4041 = vor.u32 %v4037, %v4040
      %v4042 = vsel %vm3954, %v4033, %v4041
      %v4043 = vrot.slane %v4041, 4
      %v4045 = vshrl.u32 %v3926, 16
      %v4047 = vrot.slane %v4045, 6
      %v4048 = vshll.u32 %v3926, 16
      %v4050 = vrot.slane %v4048, 7
      %v4051 = vor.u32 %v4047, %v4050
      %v4052 = vsel %vm3954, %v4043, %v4051
      %v4053 = vrot.slane %v4051, 4
      %v4055 = vshrl.u32 %v3927, 16
      %v4057 = vrot.slane %v4055, 6
      %v4058 = vshll.u32 %v3927, 16
      %v4060 = vrot.slane %v4058, 7
      %v4061 = vor.u32 %v4057, %v4060
      %v4062 = vsel %vm3954, %v4053, %v4061
      %v4063 = vrot.slane %v4061, 4
      %v4065 = vshrl.u32 %v3928, 16
      %v4067 = vrot.slane %v4065, 6
      %v4068 = vshll.u32 %v3928, 16
      %v4070 = vrot.slane %v4068, 7
      %v4071 = vor.u32 %v4067, %v4070
      %v4072 = vsel %vm3954, %v4063, %v4071
      %v4073 = vrot.slane %v4071, 4
      %v4075 = vshrl.u32 %v3929, 16
      %v4077 = vrot.slane %v4075, 6
      %v4078 = vshll.u32 %v3929, 16
      %v4080 = vrot.slane %v4078, 7
      %v4081 = vor.u32 %v4077, %v4080
      %v4082 = vsel %vm3954, %v4073, %v4081
      %v4083 = vrot.slane %v4081, 4
      %v4085 = vshrl.u32 %v3930, 16
      %v4087 = vrot.slane %v4085, 6
      %v4088 = vshll.u32 %v3930, 16
      %v4090 = vrot.slane %v4088, 7
      %v4091 = vor.u32 %v4087, %v4090
      %v4092 = vsel %vm3954, %v4083, %v4091
      %v4093 = vrot.slane %v4091, 4
      %v4095 = vshrl.u32 %v3931, 16
      %v4097 = vrot.slane %v4095, 6
      %v4098 = vshll.u32 %v3931, 16
      %v4100 = vrot.slane %v4098, 7
      %v4101 = vor.u32 %v4097, %v4100
      %v4102 = vsel %vm3954, %v4093, %v4101
      %v4103 = vrot.slane %v4101, 4
      %v4105 = vshrl.u32 %v3932, 16
      %v4107 = vrot.slane %v4105, 6
      %v4108 = vshll.u32 %v3932, 16
      %v4110 = vrot.slane %v4108, 7
      %v4111 = vor.u32 %v4107, %v4110
      %v4112 = vsel %vm3954, %v4103, %v4111
      %v4113 = vrot.slane %v4111, 4
      %v4115 = vshrl.u32 %v3933, 16
      %v4117 = vrot.slane %v4115, 6
      %v4118 = vshll.u32 %v3933, 16
      %v4120 = vrot.slane %v4118, 7
      %v4121 = vor.u32 %v4117, %v4120
      %v4122 = vsel %vm3954, %v4113, %v4121
      %v4123 = vrot.slane %v4121, 4
      %v4125 = vshrl.u32 %v3934, 16
      %v4127 = vrot.slane %v4125, 6
      %v4128 = vshll.u32 %v3934, 16
      %v4130 = vrot.slane %v4128, 7
      %v4131 = vor.u32 %v4127, %v4130
      %v4132 = vsel %vm3954, %v4123, %v4131
      %v4133 = vrot.slane %v4131, 4
      %v4135 = vshrl.u32 %v3935, 16
      %v4137 = vrot.slane %v4135, 6
      %v4138 = vshll.u32 %v3935, 16
      %v4140 = vrot.slane %v4138, 7
      %v4141 = vor.u32 %v4137, %v4140
      %v4142 = vsel %vm3954, %v4133, %v4141
      %v4143 = vrot.slane %v4141, 4
      %v4145 = vshrl.u32 %v3936, 16
      %v4147 = vrot.slane %v4145, 6
      %v4148 = vshll.u32 %v3936, 16
      %v4150 = vrot.slane %v4148, 7
      %v4151 = vor.u32 %v4147, %v4150
      %v4152 = vsel %vm3954, %v4143, %v4151
      %v4153 = vrot.slane %v4151, 4
      %v4155 = vshrl.u32 %v3937, 16
      %v4157 = vrot.slane %v4155, 6
      %v4158 = vshll.u32 %v3937, 16
      %v4160 = vrot.slane %v4158, 7
      %v4161 = vor.u32 %v4157, %v4160
      %v4162 = vsel %vm3954, %v4153, %v4161
      %v4163 = vrot.slane %v4161, 4
      %v4165 = vshrl.u32 %v3938, 16
      %v4167 = vrot.slane %v4165, 6
      %v4168 = vshll.u32 %v3938, 16
      %v4170 = vrot.slane %v4168, 7
      %v4171 = vor.u32 %v4167, %v4170
      %v4172 = vsel %vm3954, %v4163, %v4171
      %v4173 = vrot.slane %v4171, 4
      %v4175 = vshrl.u32 %v3939, 16
      %v4177 = vrot.slane %v4175, 6
      %v4178 = vshll.u32 %v3939, 16
      %v4180 = vrot.slane %v4178, 7
      %v4181 = vor.u32 %v4177, %v4180
      %v4182 = vsel %vm3954, %v4173, %v4181
      %v4183 = vrot.slane %v4181, 4
      %v4185 = vshrl.u32 %v3940, 16
      %v4187 = vrot.slane %v4185, 6
      %v4188 = vshll.u32 %v3940, 16
      %v4190 = vrot.slane %v4188, 7
      %v4191 = vor.u32 %v4187, %v4190
      %v4192 = vsel %vm3954, %v4183, %v4191
      %v4193 = vrot.slane %v4191, 4
      %v4195 = vshrl.u32 %v3941, 16
      %v4197 = vrot.slane %v4195, 6
      %v4198 = vshll.u32 %v3941, 16
      %v4200 = vrot.slane %v4198, 7
      %v4201 = vor.u32 %v4197, %v4200
      %v4202 = vsel %vm3954, %v4193, %v4201
      %v4203 = vrot.slane %v4201, 4
      %v4205 = vshrl.u32 %v3942, 16
      %v4207 = vrot.slane %v4205, 6
      %v4208 = vshll.u32 %v3942, 16
      %v4210 = vrot.slane %v4208, 7
      %v4211 = vor.u32 %v4207, %v4210
      %v4212 = vsel %vm3954, %v4203, %v4211
      %v4213 = vrot.slane %v4211, 4
      %v4215 = vshrl.u32 %v3943, 16
      %v4217 = vrot.slane %v4215, 6
      %v4218 = vshll.u32 %v3943, 16
      %v4220 = vrot.slane %v4218, 7
      %v4221 = vor.u32 %v4217, %v4220
      %v4222 = vsel %vm3954, %v4213, %v4221
      %v4223 = vrot.slane %v4221, 4
      %v4225 = vshrl.u32 %v3944, 16
      %v4227 = vrot.slane %v4225, 6
      %v4228 = vshll.u32 %v3944, 16
      %v4230 = vrot.slane %v4228, 7
      %v4231 = vor.u32 %v4227, %v4230
      %v4232 = vsel %vm3954, %v4223, %v4231
      %v4233 = vrot.slane %v4231, 4
      %v4235 = vshrl.u32 %v3945, 16
      %v4237 = vrot.slane %v4235, 6
      %v4238 = vshll.u32 %v3945, 16
      %v4240 = vrot.slane %v4238, 7
      %v4241 = vor.u32 %v4237, %v4240
      %v4242 = vsel %vm3954, %v4233, %v4241
      %v4243 = vrot.slane %v4241, 4
      %v4245 = vshrl.u32 %v3946, 16
      %v4247 = vrot.slane %v4245, 6
      %v4248 = vshll.u32 %v3946, 16
      %v4250 = vrot.slane %v4248, 7
      %v4251 = vor.u32 %v4247, %v4250
      %v4252 = vsel %vm3954, %v4243, %v4251
      %v4253 = vrot.slane %v4251, 4
      %v4255 = vshrl.u32 %v3947, 16
      %v4257 = vrot.slane %v4255, 6
      %v4258 = vshll.u32 %v3947, 16
      %v4260 = vrot.slane %v4258, 7
      %v4261 = vor.u32 %v4257, %v4260
      %v4262 = vsel %vm3954, %v4253, %v4261
      %v4263 = vrot.slane %v4261, 4
      %v4265 = vshrl.u32 %v3948, 16
      %v4267 = vrot.slane %v4265, 6
      %v4268 = vshll.u32 %v3948, 16
      %v4270 = vrot.slane %v4268, 7
      %v4271 = vor.u32 %v4267, %v4270
      %v4272 = vsel %vm3954, %v4263, %v4271
      %v4273 = vrot.slane %v4271, 4
      %v4275 = vshrl.u32 %v3949, 16
      %v4277 = vrot.slane %v4275, 6
      %v4278 = vshll.u32 %v3949, 16
      %v4280 = vrot.slane %v4278, 7
      %v4281 = vor.u32 %v4277, %v4280
      %v4282 = vsel %vm3954, %v4273, %v4281
      %v4283 = vrot.slane %v4281, 4
      %v4285 = vshrl.u32 %v3950, 16
      %v4287 = vrot.slane %v4285, 6
      %v4288 = vshll.u32 %v3950, 16
      %v4290 = vrot.slane %v4288, 7
      %v4291 = vor.u32 %v4287, %v4290
      %v4292 = vsel %vm3954, %v4283, %v4291
      %v4293 = vrot.slane %v4291, 4
      %v4295 = vshrl.u32 %v3951, 16
      %v4297 = vrot.slane %v4295, 6
      %v4298 = vshll.u32 %v3951, 16
      %v4300 = vrot.slane %v4298, 7
      %v4301 = vor.u32 %v4297, %v4300
      %v4302 = vsel %vm3954, %v4293, %v4301
      %v4303 = vrot.slane %v4301, 4
      %v4305 = vshrl.u32 %v3952, 16
      %v4307 = vrot.slane %v4305, 6
      %v4308 = vshll.u32 %v3952, 16
      %v4310 = vrot.slane %v4308, 7
      %v4311 = vor.u32 %v4307, %v4310
      %v4312 = vsel %vm3954, %v4303, %v4311
      %v4313 = vrot.slane %v4311, 4
      %v4351 = vld [vmem:[#allocation2 + $0x8] sm:$0xe]
      %v4352 = vsel %vm237, %v3962, %v4351
      %4353 = vst [vmem:[#allocation2 + $0x8] sm:$0xe] %v4352
      %4354 = vst.msk [vmem:[#allocation2 + $0xc] sm:$0xf] %vm226, %v3972
      %4355 = vst.msk [vmem:[#allocation2 + $0x10] sm:$0xf] %vm226, %v3982
      %4356 = vst.msk [vmem:[#allocation2 + $0x14] sm:$0xf] %vm226, %v3992
      %4357 = vst.msk [vmem:[#allocation2 + $0x18] sm:$0xf] %vm226, %v4002
      %4358 = vst.msk [vmem:[#allocation2 + $0x1c] sm:$0xf] %vm226, %v4012
      %4359 = vst.msk [vmem:[#allocation2 + $0x20] sm:$0xf] %vm226, %v4022
      %4360 = vst.msk [vmem:[#allocation2 + $0x24] sm:$0xf] %vm226, %v4032
      %4361 = vst.msk [vmem:[#allocation2 + $0x28] sm:$0xf] %vm226, %v4042
      %4362 = vst.msk [vmem:[#allocation2 + $0x2c] sm:$0xf] %vm226, %v4052
      %4363 = vst.msk [vmem:[#allocation2 + $0x30] sm:$0xf] %vm226, %v4062
      %4364 = vst.msk [vmem:[#allocation2 + $0x34] sm:$0xf] %vm226, %v4072
      %4365 = vst.msk [vmem:[#allocation2 + $0x38] sm:$0xf] %vm226, %v4082
      %4366 = vst.msk [vmem:[#allocation2 + $0x3c] sm:$0xf] %vm226, %v4092
      %4367 = vst.msk [vmem:[#allocation2 + $0x40] sm:$0xf] %vm226, %v4102
      %4368 = vst.msk [vmem:[#allocation2 + $0x44] sm:$0xf] %vm226, %v4112
      %4369 = vst.msk [vmem:[#allocation2 + $0x48] sm:$0xf] %vm226, %v4122
      %4370 = vst.msk [vmem:[#allocation2 + $0x4c] sm:$0xf] %vm226, %v4132
      %4371 = vst.msk [vmem:[#allocation2 + $0x50] sm:$0xf] %vm226, %v4142
      %4372 = vst.msk [vmem:[#allocation2 + $0x54] sm:$0xf] %vm226, %v4152
      %4373 = vst.msk [vmem:[#allocation2 + $0x58] sm:$0xf] %vm226, %v4162
      %4374 = vst.msk [vmem:[#allocation2 + $0x5c] sm:$0xf] %vm226, %v4172
      %4375 = vst.msk [vmem:[#allocation2 + $0x60] sm:$0xf] %vm226, %v4182
      %4376 = vst.msk [vmem:[#allocation2 + $0x64] sm:$0xf] %vm226, %v4192
      %4377 = vst.msk [vmem:[#allocation2 + $0x68] sm:$0xf] %vm226, %v4202
      %4378 = vst.msk [vmem:[#allocation2 + $0x6c] sm:$0xf] %vm226, %v4212
      %4379 = vst.msk [vmem:[#allocation2 + $0x70] sm:$0xf] %vm226, %v4222
      %4380 = vst.msk [vmem:[#allocation2 + $0x74] sm:$0xf] %vm226, %v4232
      %4381 = vst.msk [vmem:[#allocation2 + $0x78] sm:$0xf] %vm226, %v4242
      %4382 = vst.msk [vmem:[#allocation2 + $0x7c] sm:$0xf] %vm226, %v4252
      %4383 = vst.msk [vmem:[#allocation2 + $0x80] sm:$0xf] %vm226, %v4262
      %4384 = vst.msk [vmem:[#allocation2 + $0x84] sm:$0xf] %vm226, %v4272
      %4385 = vst.msk [vmem:[#allocation2 + $0x88] sm:$0xf] %vm226, %v4282
      %4386 = vst.msk [vmem:[#allocation2 + $0x8c] sm:$0xf] %vm226, %v4292
      %4387 = vst.msk [vmem:[#allocation2 + $0x90] sm:$0xf] %vm226, %v4302
      %4388 = vst.msk [vmem:[#allocation2 + $0x94] sm:$0xf] %vm226, %v4312
      %v4389 = vld [vmem:[#allocation2 + $0x98] sm:$0x3]
      %v4390 = vsel %vm231, %v4313, %v4389
      %4391 = vst [vmem:[#allocation2 + $0x98] sm:$0x3] %v4390
      %v4392 = vld [vmem:[#allocation2] sm:$0xf]
      %v4393 = vld [vmem:[#allocation2 + $0x4] sm:$0xf]
      %v4394 = vld [vmem:[#allocation2 + $0x8] sm:$0xf]
      %v4395 = vld [vmem:[#allocation2 + $0xc] sm:$0xf]
      %v4396 = vld [vmem:[#allocation2 + $0x10] sm:$0xf]
      %v4397 = vld [vmem:[#allocation2 + $0x14] sm:$0xf]
      %v4398 = vld [vmem:[#allocation2 + $0x18] sm:$0xf]
      %v4399 = vld [vmem:[#allocation2 + $0x1c] sm:$0xf]
      %v4400 = vld [vmem:[#allocation2 + $0x20] sm:$0xf]
      %v4401 = vld [vmem:[#allocation2 + $0x24] sm:$0xf]
      %v4402 = vld [vmem:[#allocation2 + $0x28] sm:$0xf]
      %v4403 = vld [vmem:[#allocation2 + $0x2c] sm:$0xf]
      %v4404 = vld [vmem:[#allocation2 + $0x30] sm:$0xf]
      %v4405 = vld [vmem:[#allocation2 + $0x34] sm:$0xf]
      %v4406 = vld [vmem:[#allocation2 + $0x38] sm:$0xf]
      %v4407 = vld [vmem:[#allocation2 + $0x3c] sm:$0xf]
      %v4408 = vld [vmem:[#allocation2 + $0x40] sm:$0xf]
      %v4409 = vld [vmem:[#allocation2 + $0x44] sm:$0xf]
      %v4410 = vld [vmem:[#allocation2 + $0x48] sm:$0xf]
      %v4411 = vld [vmem:[#allocation2 + $0x4c] sm:$0xf]
      %v4412 = vld [vmem:[#allocation2 + $0x50] sm:$0xf]
      %v4413 = vld [vmem:[#allocation2 + $0x54] sm:$0xf]
      %v4414 = vld [vmem:[#allocation2 + $0x58] sm:$0xf]
      %v4415 = vld [vmem:[#allocation2 + $0x5c] sm:$0xf]
      %v4416 = vld [vmem:[#allocation2 + $0x60] sm:$0xf]
      %v4417 = vld [vmem:[#allocation2 + $0x64] sm:$0xf]
      %v4418 = vld [vmem:[#allocation2 + $0x68] sm:$0xf]
      %v4419 = vld [vmem:[#allocation2 + $0x6c] sm:$0xf]
      %v4420 = vld [vmem:[#allocation2 + $0x70] sm:$0xf]
      %v4421 = vld [vmem:[#allocation2 + $0x74] sm:$0xf]
      %v4422 = vld [vmem:[#allocation2 + $0x78] sm:$0xf]
      %v4423 = vld [vmem:[#allocation2 + $0x7c] sm:$0xf]
      %v4424 = vld [vmem:[#allocation2 + $0x80] sm:$0xf]
      %v4425 = vld [vmem:[#allocation2 + $0x84] sm:$0xf]
      %v4426 = vld [vmem:[#allocation2 + $0x88] sm:$0xf]
      %v4427 = vld [vmem:[#allocation2 + $0x8c] sm:$0xf]
      %v4428 = vld [vmem:[#allocation2 + $0x90] sm:$0x1]
      %v4429 = vld [vmem:[#allocation2] sm:$0xe]
      %v4466 = vunpack.c.l.b16 %v4392
      %v4467 = vunpack.c.l.b16 %v4393
      %v4468 = vunpack.c.l.b16 %v4394
      %v4469 = vunpack.c.l.b16 %v4395
      %v4470 = vunpack.c.l.b16 %v4396
      %v4471 = vunpack.c.l.b16 %v4397
      %v4472 = vunpack.c.l.b16 %v4398
      %v4473 = vunpack.c.l.b16 %v4399
      %v4474 = vunpack.c.l.b16 %v4400
      %v4475 = vunpack.c.l.b16 %v4401
      %v4476 = vunpack.c.l.b16 %v4402
      %v4477 = vunpack.c.l.b16 %v4403
      %v4478 = vunpack.c.l.b16 %v4404
      %v4479 = vunpack.c.l.b16 %v4405
      %v4480 = vunpack.c.l.b16 %v4406
      %v4481 = vunpack.c.l.b16 %v4407
      %v4482 = vunpack.c.l.b16 %v4408
      %v4483 = vunpack.c.l.b16 %v4409
      %v4484 = vunpack.c.l.b16 %v4410
      %v4485 = vunpack.c.l.b16 %v4411
      %v4486 = vunpack.c.l.b16 %v4412
      %v4487 = vunpack.c.l.b16 %v4413
      %v4488 = vunpack.c.l.b16 %v4414
      %v4489 = vunpack.c.l.b16 %v4415
      %v4490 = vunpack.c.l.b16 %v4416
      %v4491 = vunpack.c.l.b16 %v4417
      %v4492 = vunpack.c.l.b16 %v4418
      %v4493 = vunpack.c.l.b16 %v4419
      %v4494 = vunpack.c.l.b16 %v4420
      %v4495 = vunpack.c.l.b16 %v4421
      %v4496 = vunpack.c.l.b16 %v4422
      %v4497 = vunpack.c.l.b16 %v4423
      %v4498 = vunpack.c.l.b16 %v4424
      %v4499 = vunpack.c.l.b16 %v4425
      %v4500 = vunpack.c.l.b16 %v4426
      %v4501 = vunpack.c.l.b16 %v4427
      %v4502 = vpack.c.b16 %v4467, %v4466
      %v4503 = vpack.c.b16 %v4469, %v4468
      %v4504 = vpack.c.b16 %v4471, %v4470
      %v4505 = vpack.c.b16 %v4473, %v4472
      %v4506 = vpack.c.b16 %v4475, %v4474
      %v4507 = vpack.c.b16 %v4477, %v4476
      %v4508 = vpack.c.b16 %v4479, %v4478
      %v4509 = vpack.c.b16 %v4481, %v4480
      %v4510 = vpack.c.b16 %v4483, %v4482
      %v4511 = vpack.c.b16 %v4485, %v4484
      %v4512 = vpack.c.b16 %v4487, %v4486
      %v4513 = vpack.c.b16 %v4489, %v4488
      %v4514 = vpack.c.b16 %v4491, %v4490
      %v4515 = vpack.c.b16 %v4493, %v4492
      %v4516 = vpack.c.b16 %v4495, %v4494
      %v4517 = vpack.c.b16 %v4497, %v4496
      %v4518 = vpack.c.b16 %v4499, %v4498
      %v4519 = vpack.c.b16 %v4501, %v4500
      %v4521 = vunpack.c.l.b16 %v4428
      %v4522 = vpack.c.b16 %v4521, %v4521
      %v4524 = vshrl.u32 %v4502, 16
      %v4526 = vshll.u32 %v4502, 16
      %v4528 = vrot.slane %v4526, 1
      %v4529 = vor.u32 %v4524, %v4528
      %v4531 = vshll.u32 %v4503, 16
      %v4533 = vrot.slane %v4531, 1
      %v4534 = vsel %vm1674, %v4529, %v4533
      %v4535 = vshrl.u32 %v4503, 16
      %v4537 = vor.u32 %v4535, %v4533
      %v4539 = vshll.u32 %v4504, 16
      %v4541 = vrot.slane %v4539, 1
      %v4542 = vsel %vm1674, %v4537, %v4541
      %v4543 = vshrl.u32 %v4504, 16
      %v4545 = vor.u32 %v4543, %v4541
      %v4547 = vshll.u32 %v4505, 16
      %v4549 = vrot.slane %v4547, 1
      %v4550 = vsel %vm1674, %v4545, %v4549
      %v4551 = vshrl.u32 %v4505, 16
      %v4553 = vor.u32 %v4551, %v4549
      %v4555 = vshll.u32 %v4506, 16
      %v4557 = vrot.slane %v4555, 1
      %v4558 = vsel %vm1674, %v4553, %v4557
      %v4559 = vshrl.u32 %v4506, 16
      %v4561 = vor.u32 %v4559, %v4557
      %v4563 = vshll.u32 %v4507, 16
      %v4565 = vrot.slane %v4563, 1
      %v4566 = vsel %vm1674, %v4561, %v4565
      %v4567 = vshrl.u32 %v4507, 16
      %v4569 = vor.u32 %v4567, %v4565
      %v4571 = vshll.u32 %v4508, 16
      %v4573 = vrot.slane %v4571, 1
      %v4574 = vsel %vm1674, %v4569, %v4573
      %v4575 = vshrl.u32 %v4508, 16
      %v4577 = vor.u32 %v4575, %v4573
      %v4579 = vshll.u32 %v4509, 16
      %v4581 = vrot.slane %v4579, 1
      %v4582 = vsel %vm1674, %v4577, %v4581
      %v4583 = vshrl.u32 %v4509, 16
      %v4585 = vor.u32 %v4583, %v4581
      %v4587 = vshll.u32 %v4510, 16
      %v4589 = vrot.slane %v4587, 1
      %v4590 = vsel %vm1674, %v4585, %v4589
      %v4591 = vshrl.u32 %v4510, 16
      %v4593 = vor.u32 %v4591, %v4589
      %v4595 = vshll.u32 %v4511, 16
      %v4597 = vrot.slane %v4595, 1
      %v4598 = vsel %vm1674, %v4593, %v4597
      %v4599 = vshrl.u32 %v4511, 16
      %v4601 = vor.u32 %v4599, %v4597
      %v4603 = vshll.u32 %v4512, 16
      %v4605 = vrot.slane %v4603, 1
      %v4606 = vsel %vm1674, %v4601, %v4605
      %v4607 = vshrl.u32 %v4512, 16
      %v4609 = vor.u32 %v4607, %v4605
      %v4611 = vshll.u32 %v4513, 16
      %v4613 = vrot.slane %v4611, 1
      %v4614 = vsel %vm1674, %v4609, %v4613
      %v4615 = vshrl.u32 %v4513, 16
      %v4617 = vor.u32 %v4615, %v4613
      %v4619 = vshll.u32 %v4514, 16
      %v4621 = vrot.slane %v4619, 1
      %v4622 = vsel %vm1674, %v4617, %v4621
      %v4623 = vshrl.u32 %v4514, 16
      %v4625 = vor.u32 %v4623, %v4621
      %v4627 = vshll.u32 %v4515, 16
      %v4629 = vrot.slane %v4627, 1
      %v4630 = vsel %vm1674, %v4625, %v4629
      %v4631 = vshrl.u32 %v4515, 16
      %v4633 = vor.u32 %v4631, %v4629
      %v4635 = vshll.u32 %v4516, 16
      %v4637 = vrot.slane %v4635, 1
      %v4638 = vsel %vm1674, %v4633, %v4637
      %v4639 = vshrl.u32 %v4516, 16
      %v4641 = vor.u32 %v4639, %v4637
      %v4643 = vshll.u32 %v4517, 16
      %v4645 = vrot.slane %v4643, 1
      %v4646 = vsel %vm1674, %v4641, %v4645
      %v4647 = vshrl.u32 %v4517, 16
      %v4649 = vor.u32 %v4647, %v4645
      %v4651 = vshll.u32 %v4518, 16
      %v4653 = vrot.slane %v4651, 1
      %v4654 = vsel %vm1674, %v4649, %v4653
      %v4655 = vshrl.u32 %v4518, 16
      %v4657 = vor.u32 %v4655, %v4653
      %v4659 = vshll.u32 %v4519, 16
      %v4661 = vrot.slane %v4659, 1
      %v4662 = vsel %vm1674, %v4657, %v4661
      %v4663 = vshrl.u32 %v4519, 16
      %v4665 = vor.u32 %v4663, %v4661
      %v4667 = vshll.u32 %v4522, 16
      %v4669 = vrot.slane %v4667, 1
      %v4670 = vsel %vm1674, %v4665, %v4669
      %4671 = vrot.lane.b32.xlu0 %v4534, 64
      %v4672 = vpop.permute.xlu0 %4671
      %4673 = vrot.lane.b32.xlu0 %v4542, 64
      %v4674 = vpop.permute.xlu0 %4673
      %4675 = vrot.lane.b32.xlu0 %v4550, 64
      %v4676 = vpop.permute.xlu0 %4675
      %4677 = vrot.lane.b32.xlu0 %v4558, 64
      %v4678 = vpop.permute.xlu0 %4677
      %4679 = vrot.lane.b32.xlu0 %v4566, 64
      %v4680 = vpop.permute.xlu0 %4679
      %4681 = vrot.lane.b32.xlu0 %v4574, 64
      %v4682 = vpop.permute.xlu0 %4681
      %4683 = vrot.lane.b32.xlu0 %v4582, 64
      %v4684 = vpop.permute.xlu0 %4683
      %4685 = vrot.lane.b32.xlu0 %v4590, 64
      %v4686 = vpop.permute.xlu0 %4685
      %4687 = vrot.lane.b32.xlu0 %v4598, 64
      %v4688 = vpop.permute.xlu0 %4687
      %4689 = vrot.lane.b32.xlu0 %v4606, 64
      %v4690 = vpop.permute.xlu0 %4689
      %4691 = vrot.lane.b32.xlu0 %v4614, 64
      %v4692 = vpop.permute.xlu0 %4691
      %4693 = vrot.lane.b32.xlu0 %v4622, 64
      %v4694 = vpop.permute.xlu0 %4693
      %4695 = vrot.lane.b32.xlu0 %v4630, 64
      %v4696 = vpop.permute.xlu0 %4695
      %4697 = vrot.lane.b32.xlu0 %v4638, 64
      %v4698 = vpop.permute.xlu0 %4697
      %4699 = vrot.lane.b32.xlu0 %v4646, 64
      %v4700 = vpop.permute.xlu0 %4699
      %4701 = vrot.lane.b32.xlu0 %v4654, 64
      %v4702 = vpop.permute.xlu0 %4701
      %4703 = vrot.lane.b32.xlu0 %v4662, 64
      %v4704 = vpop.permute.xlu0 %4703
      %4705 = vrot.lane.b32.xlu0 %v4670, 64
      %v4706 = vpop.permute.xlu0 %4705
      %v4708 = vunpack.c.l.b16 %v4429
      %v4709 = vpack.c.b16 %v4467, %v4708
      %v4710 = vrot.slane %v4709, 1
      %v4711 = vrot.slane %v4503, 1
      %v4712 = vsel %vm1862, %v4710, %v4711
      %v4713 = vrot.slane %v4504, 1
      %v4714 = vsel %vm1862, %v4711, %v4713
      %v4715 = vrot.slane %v4505, 1
      %v4716 = vsel %vm1862, %v4713, %v4715
      %v4717 = vrot.slane %v4506, 1
      %v4718 = vsel %vm1862, %v4715, %v4717
      %v4719 = vrot.slane %v4507, 1
      %v4720 = vsel %vm1862, %v4717, %v4719
      %v4721 = vrot.slane %v4508, 1
      %v4722 = vsel %vm1862, %v4719, %v4721
      %v4723 = vrot.slane %v4509, 1
      %v4724 = vsel %vm1862, %v4721, %v4723
      %v4725 = vrot.slane %v4510, 1
      %v4726 = vsel %vm1862, %v4723, %v4725
      %v4727 = vrot.slane %v4511, 1
      %v4728 = vsel %vm1862, %v4725, %v4727
      %v4729 = vrot.slane %v4512, 1
      %v4730 = vsel %vm1862, %v4727, %v4729
      %v4731 = vrot.slane %v4513, 1
      %v4732 = vsel %vm1862, %v4729, %v4731
      %v4733 = vrot.slane %v4514, 1
      %v4734 = vsel %vm1862, %v4731, %v4733
      %v4735 = vrot.slane %v4515, 1
      %v4736 = vsel %vm1862, %v4733, %v4735
      %v4737 = vrot.slane %v4516, 1
      %v4738 = vsel %vm1862, %v4735, %v4737
      %v4739 = vrot.slane %v4517, 1
      %v4740 = vsel %vm1862, %v4737, %v4739
      %v4741 = vrot.slane %v4518, 1
      %v4742 = vsel %vm1862, %v4739, %v4741
      %v4743 = vrot.slane %v4519, 1
      %v4744 = vsel %vm1862, %v4741, %v4743
      %v4745 = vrot.slane %v4522, 1
      %v4746 = vsel %vm1862, %v4743, %v4745
      %v4748 = vsel %vm1900, %v4502, %v4672
      %v4751 = vsel %vm1900, %v4503, %v4674
      %v4754 = vsel %vm1900, %v4504, %v4676
      %v4757 = vsel %vm1900, %v4505, %v4678
      %v4760 = vsel %vm1900, %v4506, %v4680
      %v4763 = vsel %vm1900, %v4507, %v4682
      %v4766 = vsel %vm1900, %v4508, %v4684
      %v4769 = vsel %vm1900, %v4509, %v4686
      %v4772 = vsel %vm1900, %v4510, %v4688
      %v4775 = vsel %vm1900, %v4511, %v4690
      %v4778 = vsel %vm1900, %v4512, %v4692
      %v4781 = vsel %vm1900, %v4513, %v4694
      %v4784 = vsel %vm1900, %v4514, %v4696
      %v4787 = vsel %vm1900, %v4515, %v4698
      %v4790 = vsel %vm1900, %v4516, %v4700
      %v4793 = vsel %vm1900, %v4517, %v4702
      %v4796 = vsel %vm1900, %v4518, %v4704
      %v4799 = vsel %vm1900, %v4519, %v4706
      %v4801 = vld [vmem:[%s2] sm:$0xf]
      %v4802 = vld [vmem:[%s2 + $0x4] sm:$0xf]
      %v4803 = vld [vmem:[%s2 + $0x8] sm:$0xf]
      %v4804 = vld [vmem:[%s2 + $0xc] sm:$0xf]
      %v4805 = vld [vmem:[%s2 + $0x10] sm:$0xf]
      %v4806 = vld [vmem:[%s2 + $0x14] sm:$0xf]
      %v4807 = vld [vmem:[%s2 + $0x18] sm:$0xf]
      %v4808 = vld [vmem:[%s2 + $0x1c] sm:$0xf]
      %v4809 = vld [vmem:[%s2 + $0x20] sm:$0xf]
      %v4810 = vld [vmem:[%s2 + $0x24] sm:$0xf]
      %v4811 = vld [vmem:[%s2 + $0x28] sm:$0xf]
      %v4812 = vld [vmem:[%s2 + $0x2c] sm:$0xf]
      %v4813 = vld [vmem:[%s2 + $0x30] sm:$0xf]
      %v4814 = vld [vmem:[%s2 + $0x34] sm:$0xf]
      %v4815 = vld [vmem:[%s2 + $0x38] sm:$0xf]
      %v4816 = vld [vmem:[%s2 + $0x3c] sm:$0xf]
      %v4817 = vld [vmem:[%s2 + $0x40] sm:$0xf]
      %v4818 = vld [vmem:[%s2 + $0x44] sm:$0xf]
      %v4819 = vld [vmem:[%s2 + $0x48] sm:$0xf]
      %v4820 = vld [vmem:[%s2 + $0x4c] sm:$0xf]
      %v4821 = vld [vmem:[%s2 + $0x50] sm:$0xf]
      %v4822 = vld [vmem:[%s2 + $0x54] sm:$0xf]
      %v4823 = vld [vmem:[%s2 + $0x58] sm:$0xf]
      %v4824 = vld [vmem:[%s2 + $0x5c] sm:$0xf]
      %v4825 = vld [vmem:[#allocation2 + $0x8] sm:$0xe]
      %v4826 = vld [vmem:[#allocation2 + $0x90] sm:$0xf]
      %v4827 = vld [vmem:[#allocation2 + $0x94] sm:$0xf]
      %v4828 = vld [vmem:[#allocation2 + $0x98] sm:$0x1]
      %v4829 = vld [vmem:[#allocation2 + $0x98] sm:$0x3]
      %v4830 = vld [vmem:[#allocation2 + $0x8] sm:$0xc]
      %v4835 = vunpack.c.l.b16 %v4825
      %v4836 = vunpack.c.l.b16 %v4826
      %v4837 = vunpack.c.l.b16 %v4827
      %v4838 = vunpack.c.l.b16 %v4828
      %v4839 = vpack.c.b16 %v4469, %v4835
      %v4840 = vpack.c.b16 %v4837, %v4836
      %v4841 = vpack.c.b16 %v4838, %v4838
      %v4843 = vunpack.c.l.b16 %v4829
      %v4844 = vpack.c.b16 %v4843, %v4843
      %v4846 = vshrl.u32 %v4839, 16
      %v4848 = vshll.u32 %v4839, 16
      %v4850 = vrot.slane %v4848, 1
      %v4851 = vor.u32 %v4846, %v4850
      %v4852 = vsel %vm1674, %v4851, %v4541
      %v4854 = vshll.u32 %v4840, 16
      %v4856 = vrot.slane %v4854, 1
      %v4857 = vsel %vm1674, %v4665, %v4856
      %v4858 = vshrl.u32 %v4840, 16
      %v4860 = vor.u32 %v4858, %v4856
      %v4862 = vshll.u32 %v4844, 16
      %v4864 = vrot.slane %v4862, 1
      %v4865 = vsel %vm1674, %v4860, %v4864
      %v4866 = vshrl.u32 %v4844, 16
      %v4868 = vor.u32 %v4866, %v4864
      %4869 = vrot.lane.b32.xlu0 %v4852, 64
      %v4870 = vpop.permute.xlu0 %4869
      %4871 = vrot.lane.b32.xlu0 %v4857, 64
      %v4872 = vpop.permute.xlu0 %4871
      %4873 = vrot.lane.b32.xlu0 %v4865, 64
      %v4874 = vpop.permute.xlu0 %4873
      %4875 = vrot.lane.b32.xlu0 %v4868, 64
      %v4876 = vpop.permute.xlu0 %4875
      %v4878 = vunpack.c.l.b16 %v4830
      %v4879 = vpack.c.b16 %v4469, %v4878
      %v4880 = vrot.slane %v4879, 1
      %v4881 = vsel %vm1862, %v4880, %v4713
      %v4882 = vrot.slane %v4840, 1
      %v4883 = vsel %vm1862, %v4743, %v4882
      %v4884 = vrot.slane %v4844, 1
      %v4885 = vsel %vm1862, %v4882, %v4884
      %v4887 = vsel %vm1900, %v4839, %v4870
      %v4889 = vsel %vm1900, %v4519, %v4872
      %v4891 = vsel %vm1900, %v4840, %v4874
      %v4894 = vsel %vm1900, %v4841, %v4876
      %s4895 = scalar_lea.vmem %s2, 96
      %v4896 = vld [vmem:[%s4895] sm:$0xf]
      %v4897 = vld [vmem:[%s4895 + $0x4] sm:$0xf]
      %v4898 = vld [vmem:[%s4895 + $0x8] sm:$0xf]
      %v4899 = vld [vmem:[%s4895 + $0xc] sm:$0xf]
      %v4900 = vld [vmem:[%s4895 + $0x10] sm:$0xf]
      %v4901 = vld [vmem:[%s4895 + $0x14] sm:$0xf]
      %v4902 = vld [vmem:[%s4895 + $0x18] sm:$0xf]
      %v4903 = vld [vmem:[%s4895 + $0x1c] sm:$0xf]
      %v4904 = vld [vmem:[%s4895 + $0x20] sm:$0xf]
      %v4905 = vld [vmem:[%s4895 + $0x24] sm:$0xf]
      %v4906 = vld [vmem:[%s4895 + $0x28] sm:$0xf]
      %v4907 = vld [vmem:[%s4895 + $0x2c] sm:$0xf]
      %v4908 = vld [vmem:[%s4895 + $0x30] sm:$0xf]
      %v4909 = vld [vmem:[%s4895 + $0x34] sm:$0xf]
      %v4910 = vld [vmem:[%s4895 + $0x38] sm:$0xf]
      %v4911 = vld [vmem:[%s4895 + $0x3c] sm:$0xf]
      %v4912 = vld [vmem:[%s4895 + $0x40] sm:$0xf]
      %v4913 = vld [vmem:[%s4895 + $0x44] sm:$0xf]
      %v4914 = vld [vmem:[%s4895 + $0x48] sm:$0xf]
      %v4915 = vld [vmem:[%s4895 + $0x4c] sm:$0xf]
      %v4916 = vld [vmem:[%s4895 + $0x50] sm:$0xf]
      %v4917 = vld [vmem:[%s4895 + $0x54] sm:$0xf]
      %v4918 = vld [vmem:[%s4895 + $0x58] sm:$0xf]
      %v4919 = vld [vmem:[%s4895 + $0x5c] sm:$0xf]
      %v4939 = vrot.slane %v4887, 1
      %v4940 = vrot.slane %v4754, 1
      %v4941 = vsel %vm1862, %v4939, %v4940
      %v4942 = vrot.slane %v4881, 1
      %v4943 = vrot.slane %v4716, 1
      %v4944 = vsel %vm1862, %v4942, %v4943
      %v4945 = vrot.slane %v4757, 1
      %v4946 = vsel %vm1862, %v4940, %v4945
      %v4947 = vrot.slane %v4718, 1
      %v4948 = vsel %vm1862, %v4943, %v4947
      %v4949 = vrot.slane %v4760, 1
      %v4950 = vsel %vm1862, %v4945, %v4949
      %v4951 = vrot.slane %v4720, 1
      %v4952 = vsel %vm1862, %v4947, %v4951
      %v4953 = vrot.slane %v4763, 1
      %v4954 = vsel %vm1862, %v4949, %v4953
      %v4955 = vrot.slane %v4722, 1
      %v4956 = vsel %vm1862, %v4951, %v4955
      %v4957 = vrot.slane %v4766, 1
      %v4958 = vsel %vm1862, %v4953, %v4957
      %v4959 = vrot.slane %v4724, 1
      %v4960 = vsel %vm1862, %v4955, %v4959
      %v4961 = vrot.slane %v4769, 1
      %v4962 = vsel %vm1862, %v4957, %v4961
      %v4963 = vrot.slane %v4726, 1
      %v4964 = vsel %vm1862, %v4959, %v4963
      %v4965 = vrot.slane %v4772, 1
      %v4966 = vsel %vm1862, %v4961, %v4965
      %v4967 = vrot.slane %v4728, 1
      %v4968 = vsel %vm1862, %v4963, %v4967
      %v4969 = vrot.slane %v4775, 1
      %v4970 = vsel %vm1862, %v4965, %v4969
      %v4971 = vrot.slane %v4730, 1
      %v4972 = vsel %vm1862, %v4967, %v4971
      %v4973 = vrot.slane %v4778, 1
      %v4974 = vsel %vm1862, %v4969, %v4973
      %v4975 = vrot.slane %v4732, 1
      %v4976 = vsel %vm1862, %v4971, %v4975
      %v4977 = vrot.slane %v4781, 1
      %v4978 = vsel %vm1862, %v4973, %v4977
      %v4979 = vrot.slane %v4734, 1
      %v4980 = vsel %vm1862, %v4975, %v4979
      %v4981 = vrot.slane %v4784, 1
      %v4982 = vsel %vm1862, %v4977, %v4981
      %v4983 = vrot.slane %v4736, 1
      %v4984 = vsel %vm1862, %v4979, %v4983
      %v4985 = vrot.slane %v4787, 1
      %v4986 = vsel %vm1862, %v4981, %v4985
      %v4987 = vrot.slane %v4738, 1
      %v4988 = vsel %vm1862, %v4983, %v4987
      %v4989 = vrot.slane %v4790, 1
      %v4990 = vsel %vm1862, %v4985, %v4989
      %v4991 = vrot.slane %v4740, 1
      %v4992 = vsel %vm1862, %v4987, %v4991
      %v4993 = vrot.slane %v4793, 1
      %v4994 = vsel %vm1862, %v4989, %v4993
      %v4995 = vrot.slane %v4742, 1
      %v4996 = vsel %vm1862, %v4991, %v4995
      %v4997 = vrot.slane %v4796, 1
      %v4998 = vsel %vm1862, %v4993, %v4997
      %v4999 = vrot.slane %v4744, 1
      %v5000 = vsel %vm1862, %v4995, %v4999
      %v5001 = vrot.slane %v4889, 1
      %v5002 = vsel %vm1862, %v4997, %v5001
      %v5003 = vrot.slane %v4883, 1
      %v5004 = vsel %vm1862, %v4999, %v5003
      %v5005 = vrot.slane %v4891, 1
      %v5006 = vsel %vm1862, %v5001, %v5005
      %v5007 = vrot.slane %v4885, 1
      %v5008 = vsel %vm1862, %v5003, %v5007
      %v5009 = vrot.slane %v4894, 1
      %v5010 = vsel %vm1862, %v5005, %v5009
      %v5011 = vrot.slane %v4884, 1
      %v5012 = vsel %vm1862, %v5007, %v5011
      %v5055 = vunpack.c.l.b16 %v4896
      %v5056 = vunpack.c.l.b16 %v4897
      %v5057 = vunpack.c.l.b16 %v4898
      %v5058 = vunpack.c.l.b16 %v4899
      %v5059 = vunpack.c.l.b16 %v4900
      %v5060 = vunpack.c.l.b16 %v4901
      %v5061 = vunpack.c.l.b16 %v4902
      %v5062 = vunpack.c.l.b16 %v4903
      %v5063 = vunpack.c.l.b16 %v4904
      %v5064 = vunpack.c.l.b16 %v4905
      %v5065 = vunpack.c.l.b16 %v4906
      %v5066 = vunpack.c.l.b16 %v4907
      %v5067 = vunpack.c.l.b16 %v4908
      %v5068 = vunpack.c.l.b16 %v4909
      %v5069 = vunpack.c.l.b16 %v4910
      %v5070 = vunpack.c.l.b16 %v4911
      %v5071 = vunpack.c.l.b16 %v4912
      %v5072 = vunpack.c.l.b16 %v4913
      %v5073 = vunpack.c.l.b16 %v4914
      %v5074 = vunpack.c.l.b16 %v4915
      %v5075 = vunpack.c.l.b16 %v4916
      %v5076 = vunpack.c.l.b16 %v4917
      %v5077 = vunpack.c.l.b16 %v4918
      %v5078 = vunpack.c.l.b16 %v4919
      %v5079 = vpack.c.b16 %v5056, %v5055
      %v5080 = vpack.c.b16 %v5058, %v5057
      %v5081 = vpack.c.b16 %v5060, %v5059
      %v5082 = vpack.c.b16 %v5062, %v5061
      %v5083 = vpack.c.b16 %v5064, %v5063
      %v5084 = vpack.c.b16 %v5066, %v5065
      %v5085 = vpack.c.b16 %v5068, %v5067
      %v5086 = vpack.c.b16 %v5070, %v5069
      %v5087 = vpack.c.b16 %v5072, %v5071
      %v5088 = vpack.c.b16 %v5074, %v5073
      %v5089 = vpack.c.b16 %v5076, %v5075
      %v5090 = vpack.c.b16 %v5078, %v5077
      %v5104 = vsel %vm1900, %v4944, 0
      %v5107 = vsel %vm1900, %v4948, 0
      %v5110 = vsel %vm1900, %v4952, 0
      %v5113 = vsel %vm1900, %v4956, 0
      %v5116 = vsel %vm1900, %v4960, 0
      %v5119 = vsel %vm1900, %v4964, 0
      %v5122 = vsel %vm1900, %v4968, 0
      %v5125 = vsel %vm1900, %v4972, 0
      %v5128 = vsel %vm1900, %v4976, 0
      %v5131 = vsel %vm1900, %v4980, 0
      %v5134 = vsel %vm1900, %v4984, 0
      %v5137 = vsel %vm1900, %v4988, 0
      %v5140 = vsel %vm1900, %v4992, 0
      %v5143 = vsel %vm1900, %v4996, 0
      %v5146 = vsel %vm1900, %v5000, 0
      %v5149 = vsel %vm1900, %v5004, 0
      %v5152 = vsel %vm1900, %v5008, 0
      %v5155 = vsel %vm1900, %v5012, 0
      %5157 = vmatpush.bf16.msra.mxu0 %v5086
      %5158 = vmatpush.bf16.msra.mxu0 %v5085
      %5159 = vmatpush.bf16.msra.mxu0 %v5084
      %5160 = vmatpush.bf16.msra.mxu0 %v5083
      %5161 = vmatpush.bf16.msra.mxu0 %v5082
      %5162 = vmatpush.bf16.msra.mxu0 %v5081
      %5163 = vmatpush.bf16.msra.mxu0 %v5080
      %5164 = vmatpush.bf16.msra.mxu0 %v5079
      %5165 = vmatmul.bf16.gmra.mxu0 %v4941
      %v5166 = vpop.f32.mrf.mxu0
      %v5167 = vadd.f32 0.0, %v5166
      %v5168 = vpop.f32.mrf.mxu0
      %v5169 = vadd.f32 0.0, %v5168
      %5170 = vmatmul.bf16.gmra.mxu0 %v4946
      %v5171 = vpop.f32.mrf.mxu0
      %v5172 = vadd.f32 0.0, %v5171
      %v5173 = vpop.f32.mrf.mxu0
      %v5174 = vadd.f32 0.0, %v5173
      %5175 = vmatmul.bf16.gmra.mxu0 %v4950
      %v5176 = vpop.f32.mrf.mxu0
      %v5177 = vadd.f32 0.0, %v5176
      %v5178 = vpop.f32.mrf.mxu0
      %v5179 = vadd.f32 0.0, %v5178
      %5180 = vmatmul.bf16.gmra.mxu0 %v4954
      %v5181 = vpop.f32.mrf.mxu0
      %v5182 = vadd.f32 0.0, %v5181
      %v5183 = vpop.f32.mrf.mxu0
      %v5184 = vadd.f32 0.0, %v5183
      %5185 = vmatmul.bf16.gmra.mxu0 %v4958
      %v5186 = vpop.f32.mrf.mxu0
      %v5187 = vadd.f32 0.0, %v5186
      %v5188 = vpop.f32.mrf.mxu0
      %v5189 = vadd.f32 0.0, %v5188
      %5190 = vmatmul.bf16.gmra.mxu0 %v4962
      %v5191 = vpop.f32.mrf.mxu0
      %v5192 = vadd.f32 0.0, %v5191
      %v5193 = vpop.f32.mrf.mxu0
      %v5194 = vadd.f32 0.0, %v5193
      %5195 = vmatmul.bf16.gmra.mxu0 %v4966
      %v5196 = vpop.f32.mrf.mxu0
      %v5197 = vadd.f32 0.0, %v5196
      %v5198 = vpop.f32.mrf.mxu0
      %v5199 = vadd.f32 0.0, %v5198
      %5200 = vmatmul.bf16.gmra.mxu0 %v4970
      %v5201 = vpop.f32.mrf.mxu0
      %v5202 = vadd.f32 0.0, %v5201
      %v5203 = vpop.f32.mrf.mxu0
      %v5204 = vadd.f32 0.0, %v5203
      %5205 = vmatmul.bf16.gmra.mxu0 %v4974
      %v5206 = vpop.f32.mrf.mxu0
      %v5207 = vadd.f32 0.0, %v5206
      %v5208 = vpop.f32.mrf.mxu0
      %v5209 = vadd.f32 0.0, %v5208
      %5210 = vmatmul.bf16.gmra.mxu0 %v4978
      %v5211 = vpop.f32.mrf.mxu0
      %v5212 = vadd.f32 0.0, %v5211
      %v5213 = vpop.f32.mrf.mxu0
      %v5214 = vadd.f32 0.0, %v5213
      %5215 = vmatmul.bf16.gmra.mxu0 %v4982
      %v5216 = vpop.f32.mrf.mxu0
      %v5217 = vadd.f32 0.0, %v5216
      %v5218 = vpop.f32.mrf.mxu0
      %v5219 = vadd.f32 0.0, %v5218
      %5220 = vmatmul.bf16.gmra.mxu0 %v4986
      %v5221 = vpop.f32.mrf.mxu0
      %v5222 = vadd.f32 0.0, %v5221
      %v5223 = vpop.f32.mrf.mxu0
      %v5224 = vadd.f32 0.0, %v5223
      %5225 = vmatmul.bf16.gmra.mxu0 %v4990
      %v5226 = vpop.f32.mrf.mxu0
      %v5227 = vadd.f32 0.0, %v5226
      %v5228 = vpop.f32.mrf.mxu0
      %v5229 = vadd.f32 0.0, %v5228
      %5230 = vmatmul.bf16.gmra.mxu0 %v4994
      %v5231 = vpop.f32.mrf.mxu0
      %v5232 = vadd.f32 0.0, %v5231
      %v5233 = vpop.f32.mrf.mxu0
      %v5234 = vadd.f32 0.0, %v5233
      %5235 = vmatmul.bf16.gmra.mxu0 %v4998
      %v5236 = vpop.f32.mrf.mxu0
      %v5237 = vadd.f32 0.0, %v5236
      %v5238 = vpop.f32.mrf.mxu0
      %v5239 = vadd.f32 0.0, %v5238
      %5240 = vmatmul.bf16.gmra.mxu0 %v5002
      %v5241 = vpop.f32.mrf.mxu0
      %v5242 = vadd.f32 0.0, %v5241
      %v5243 = vpop.f32.mrf.mxu0
      %v5244 = vadd.f32 0.0, %v5243
      %5245 = vmatmul.bf16.gmra.mxu0 %v5006
      %v5246 = vpop.f32.mrf.mxu0
      %v5247 = vadd.f32 0.0, %v5246
      %v5248 = vpop.f32.mrf.mxu0
      %v5249 = vadd.f32 0.0, %v5248
      %5250 = vmatmul.bf16.gmra.mxu0 %v5010
      %v5251 = vpop.f32.mrf.mxu0
      %v5252 = vadd.f32 0.0, %v5251
      %v5253 = vpop.f32.mrf.mxu0
      %v5254 = vadd.f32 0.0, %v5253
      %5255 = vdwg.mxu0
      %5256 = vmatpush.bf16.msra.mxu0 0
      %5257 = vmatpush.bf16.msra.mxu0 0
      %5258 = vmatpush.bf16.msra.mxu0 0
      %5259 = vmatpush.bf16.msra.mxu0 0
      %5260 = vmatpush.bf16.msra.mxu0 %v5090
      %5261 = vmatpush.bf16.msra.mxu0 %v5089
      %5262 = vmatpush.bf16.msra.mxu0 %v5088
      %5263 = vmatpush.bf16.msra.mxu0 %v5087
      %5264 = vmatmul.bf16.gmra.mxu0 %v5104
      %v5265 = vpop.f32.mrf.mxu0
      %v5266 = vadd.f32 %v5167, %v5265
      %v5267 = vpop.f32.mrf.mxu0
      %v5268 = vadd.f32 %v5169, %v5267
      %5269 = vmatmul.bf16.gmra.mxu0 %v5107
      %v5270 = vpop.f32.mrf.mxu0
      %v5271 = vadd.f32 %v5172, %v5270
      %v5272 = vpop.f32.mrf.mxu0
      %v5273 = vadd.f32 %v5174, %v5272
      %5274 = vmatmul.bf16.gmra.mxu0 %v5110
      %v5275 = vpop.f32.mrf.mxu0
      %v5276 = vadd.f32 %v5177, %v5275
      %v5277 = vpop.f32.mrf.mxu0
      %v5278 = vadd.f32 %v5179, %v5277
      %5279 = vmatmul.bf16.gmra.mxu0 %v5113
      %v5280 = vpop.f32.mrf.mxu0
      %v5281 = vadd.f32 %v5182, %v5280
      %v5282 = vpop.f32.mrf.mxu0
      %v5283 = vadd.f32 %v5184, %v5282
      %5284 = vmatmul.bf16.gmra.mxu0 %v5116
      %v5285 = vpop.f32.mrf.mxu0
      %v5286 = vadd.f32 %v5187, %v5285
      %v5287 = vpop.f32.mrf.mxu0
      %v5288 = vadd.f32 %v5189, %v5287
      %5289 = vmatmul.bf16.gmra.mxu0 %v5119
      %v5290 = vpop.f32.mrf.mxu0
      %v5291 = vadd.f32 %v5192, %v5290
      %v5292 = vpop.f32.mrf.mxu0
      %v5293 = vadd.f32 %v5194, %v5292
      %5294 = vmatmul.bf16.gmra.mxu0 %v5122
      %v5295 = vpop.f32.mrf.mxu0
      %v5296 = vadd.f32 %v5197, %v5295
      %v5297 = vpop.f32.mrf.mxu0
      %v5298 = vadd.f32 %v5199, %v5297
      %5299 = vmatmul.bf16.gmra.mxu0 %v5125
      %v5300 = vpop.f32.mrf.mxu0
      %v5301 = vadd.f32 %v5202, %v5300
      %v5302 = vpop.f32.mrf.mxu0
      %v5303 = vadd.f32 %v5204, %v5302
      %5304 = vmatmul.bf16.gmra.mxu0 %v5128
      %v5305 = vpop.f32.mrf.mxu0
      %v5306 = vadd.f32 %v5207, %v5305
      %v5307 = vpop.f32.mrf.mxu0
      %v5308 = vadd.f32 %v5209, %v5307
      %5309 = vmatmul.bf16.gmra.mxu0 %v5131
      %v5310 = vpop.f32.mrf.mxu0
      %v5311 = vadd.f32 %v5212, %v5310
      %v5312 = vpop.f32.mrf.mxu0
      %v5313 = vadd.f32 %v5214, %v5312
      %5314 = vmatmul.bf16.gmra.mxu0 %v5134
      %v5315 = vpop.f32.mrf.mxu0
      %v5316 = vadd.f32 %v5217, %v5315
      %v5317 = vpop.f32.mrf.mxu0
      %v5318 = vadd.f32 %v5219, %v5317
      %5319 = vmatmul.bf16.gmra.mxu0 %v5137
      %v5320 = vpop.f32.mrf.mxu0
      %v5321 = vadd.f32 %v5222, %v5320
      %v5322 = vpop.f32.mrf.mxu0
      %v5323 = vadd.f32 %v5224, %v5322
      %5324 = vmatmul.bf16.gmra.mxu0 %v5140
      %v5325 = vpop.f32.mrf.mxu0
      %v5326 = vadd.f32 %v5227, %v5325
      %v5327 = vpop.f32.mrf.mxu0
      %v5328 = vadd.f32 %v5229, %v5327
      %5329 = vmatmul.bf16.gmra.mxu0 %v5143
      %v5330 = vpop.f32.mrf.mxu0
      %v5331 = vadd.f32 %v5232, %v5330
      %v5332 = vpop.f32.mrf.mxu0
      %v5333 = vadd.f32 %v5234, %v5332
      %5334 = vmatmul.bf16.gmra.mxu0 %v5146
      %v5335 = vpop.f32.mrf.mxu0
      %v5336 = vadd.f32 %v5237, %v5335
      %v5337 = vpop.f32.mrf.mxu0
      %v5338 = vadd.f32 %v5239, %v5337
      %5339 = vmatmul.bf16.gmra.mxu0 %v5149
      %v5340 = vpop.f32.mrf.mxu0
      %v5341 = vadd.f32 %v5242, %v5340
      %v5342 = vpop.f32.mrf.mxu0
      %v5343 = vadd.f32 %v5244, %v5342
      %5344 = vmatmul.bf16.gmra.mxu0 %v5152
      %v5345 = vpop.f32.mrf.mxu0
      %v5346 = vadd.f32 %v5247, %v5345
      %v5347 = vpop.f32.mrf.mxu0
      %v5348 = vadd.f32 %v5249, %v5347
      %5349 = vmatmul.bf16.gmra.mxu0 %v5155
      %v5350 = vpop.f32.mrf.mxu0
      %v5351 = vadd.f32 %v5252, %v5350
      %v5352 = vpop.f32.mrf.mxu0
      %v5353 = vadd.f32 %v5254, %v5352
      %5354 = vdwg.mxu0
      %v5379 = vunpack.c.l.b16 %v4801
      %v5380 = vunpack.c.l.b16 %v4802
      %v5381 = vunpack.c.l.b16 %v4803
      %v5382 = vunpack.c.l.b16 %v4804
      %v5383 = vunpack.c.l.b16 %v4805
      %v5384 = vunpack.c.l.b16 %v4806
      %v5385 = vunpack.c.l.b16 %v4807
      %v5386 = vunpack.c.l.b16 %v4808
      %v5387 = vunpack.c.l.b16 %v4809
      %v5388 = vunpack.c.l.b16 %v4810
      %v5389 = vunpack.c.l.b16 %v4811
      %v5390 = vunpack.c.l.b16 %v4812
      %v5391 = vunpack.c.l.b16 %v4813
      %v5392 = vunpack.c.l.b16 %v4814
      %v5393 = vunpack.c.l.b16 %v4815
      %v5394 = vunpack.c.l.b16 %v4816
      %v5395 = vunpack.c.l.b16 %v4817
      %v5396 = vunpack.c.l.b16 %v4818
      %v5397 = vunpack.c.l.b16 %v4819
      %v5398 = vunpack.c.l.b16 %v4820
      %v5399 = vunpack.c.l.b16 %v4821
      %v5400 = vunpack.c.l.b16 %v4822
      %v5401 = vunpack.c.l.b16 %v4823
      %v5402 = vunpack.c.l.b16 %v4824
      %v5403 = vpack.c.b16 %v5380, %v5379
      %v5404 = vpack.c.b16 %v5382, %v5381
      %v5405 = vpack.c.b16 %v5384, %v5383
      %v5406 = vpack.c.b16 %v5386, %v5385
      %v5407 = vpack.c.b16 %v5388, %v5387
      %v5408 = vpack.c.b16 %v5390, %v5389
      %v5409 = vpack.c.b16 %v5392, %v5391
      %v5410 = vpack.c.b16 %v5394, %v5393
      %v5411 = vpack.c.b16 %v5396, %v5395
      %v5412 = vpack.c.b16 %v5398, %v5397
      %v5413 = vpack.c.b16 %v5400, %v5399
      %v5414 = vpack.c.b16 %v5402, %v5401
      %v5428 = vsel %vm1900, %v4712, 0
      %v5431 = vsel %vm1900, %v4714, 0
      %v5434 = vsel %vm1900, %v4716, 0
      %v5437 = vsel %vm1900, %v4718, 0
      %v5440 = vsel %vm1900, %v4720, 0
      %v5443 = vsel %vm1900, %v4722, 0
      %v5446 = vsel %vm1900, %v4724, 0
      %v5449 = vsel %vm1900, %v4726, 0
      %v5452 = vsel %vm1900, %v4728, 0
      %v5455 = vsel %vm1900, %v4730, 0
      %v5458 = vsel %vm1900, %v4732, 0
      %v5461 = vsel %vm1900, %v4734, 0
      %v5464 = vsel %vm1900, %v4736, 0
      %v5467 = vsel %vm1900, %v4738, 0
      %v5470 = vsel %vm1900, %v4740, 0
      %v5473 = vsel %vm1900, %v4742, 0
      %v5476 = vsel %vm1900, %v4744, 0
      %v5479 = vsel %vm1900, %v4746, 0
      %5481 = vmatpush.bf16.msra.mxu0 %v5410
      %5482 = vmatpush.bf16.msra.mxu0 %v5409
      %5483 = vmatpush.bf16.msra.mxu0 %v5408
      %5484 = vmatpush.bf16.msra.mxu0 %v5407
      %5485 = vmatpush.bf16.msra.mxu0 %v5406
      %5486 = vmatpush.bf16.msra.mxu0 %v5405
      %5487 = vmatpush.bf16.msra.mxu0 %v5404
      %5488 = vmatpush.bf16.msra.mxu0 %v5403
      %5489 = vmatmul.bf16.gmra.mxu0 %v4748
      %v5490 = vpop.f32.mrf.mxu0
      %v5491 = vadd.f32 %v5266, %v5490
      %v5492 = vpop.f32.mrf.mxu0
      %v5493 = vadd.f32 %v5268, %v5492
      %5494 = vmatmul.bf16.gmra.mxu0 %v4751
      %v5495 = vpop.f32.mrf.mxu0
      %v5496 = vadd.f32 %v5271, %v5495
      %v5497 = vpop.f32.mrf.mxu0
      %v5498 = vadd.f32 %v5273, %v5497
      %5499 = vmatmul.bf16.gmra.mxu0 %v4754
      %v5500 = vpop.f32.mrf.mxu0
      %v5501 = vadd.f32 %v5276, %v5500
      %v5502 = vpop.f32.mrf.mxu0
      %v5503 = vadd.f32 %v5278, %v5502
      %5504 = vmatmul.bf16.gmra.mxu0 %v4757
      %v5505 = vpop.f32.mrf.mxu0
      %v5506 = vadd.f32 %v5281, %v5505
      %v5507 = vpop.f32.mrf.mxu0
      %v5508 = vadd.f32 %v5283, %v5507
      %5509 = vmatmul.bf16.gmra.mxu0 %v4760
      %v5510 = vpop.f32.mrf.mxu0
      %v5511 = vadd.f32 %v5286, %v5510
      %v5512 = vpop.f32.mrf.mxu0
      %v5513 = vadd.f32 %v5288, %v5512
      %5514 = vmatmul.bf16.gmra.mxu0 %v4763
      %v5515 = vpop.f32.mrf.mxu0
      %v5516 = vadd.f32 %v5291, %v5515
      %v5517 = vpop.f32.mrf.mxu0
      %v5518 = vadd.f32 %v5293, %v5517
      %5519 = vmatmul.bf16.gmra.mxu0 %v4766
      %v5520 = vpop.f32.mrf.mxu0
      %v5521 = vadd.f32 %v5296, %v5520
      %v5522 = vpop.f32.mrf.mxu0
      %v5523 = vadd.f32 %v5298, %v5522
      %5524 = vmatmul.bf16.gmra.mxu0 %v4769
      %v5525 = vpop.f32.mrf.mxu0
      %v5526 = vadd.f32 %v5301, %v5525
      %v5527 = vpop.f32.mrf.mxu0
      %v5528 = vadd.f32 %v5303, %v5527
      %5529 = vmatmul.bf16.gmra.mxu0 %v4772
      %v5530 = vpop.f32.mrf.mxu0
      %v5531 = vadd.f32 %v5306, %v5530
      %v5532 = vpop.f32.mrf.mxu0
      %v5533 = vadd.f32 %v5308, %v5532
      %5534 = vmatmul.bf16.gmra.mxu0 %v4775
      %v5535 = vpop.f32.mrf.mxu0
      %v5536 = vadd.f32 %v5311, %v5535
      %v5537 = vpop.f32.mrf.mxu0
      %v5538 = vadd.f32 %v5313, %v5537
      %5539 = vmatmul.bf16.gmra.mxu0 %v4778
      %v5540 = vpop.f32.mrf.mxu0
      %v5541 = vadd.f32 %v5316, %v5540
      %v5542 = vpop.f32.mrf.mxu0
      %v5543 = vadd.f32 %v5318, %v5542
      %5544 = vmatmul.bf16.gmra.mxu0 %v4781
      %v5545 = vpop.f32.mrf.mxu0
      %v5546 = vadd.f32 %v5321, %v5545
      %v5547 = vpop.f32.mrf.mxu0
      %v5548 = vadd.f32 %v5323, %v5547
      %5549 = vmatmul.bf16.gmra.mxu0 %v4784
      %v5550 = vpop.f32.mrf.mxu0
      %v5551 = vadd.f32 %v5326, %v5550
      %v5552 = vpop.f32.mrf.mxu0
      %v5553 = vadd.f32 %v5328, %v5552
      %5554 = vmatmul.bf16.gmra.mxu0 %v4787
      %v5555 = vpop.f32.mrf.mxu0
      %v5556 = vadd.f32 %v5331, %v5555
      %v5557 = vpop.f32.mrf.mxu0
      %v5558 = vadd.f32 %v5333, %v5557
      %5559 = vmatmul.bf16.gmra.mxu0 %v4790
      %v5560 = vpop.f32.mrf.mxu0
      %v5561 = vadd.f32 %v5336, %v5560
      %v5562 = vpop.f32.mrf.mxu0
      %v5563 = vadd.f32 %v5338, %v5562
      %5564 = vmatmul.bf16.gmra.mxu0 %v4793
      %v5565 = vpop.f32.mrf.mxu0
      %v5566 = vadd.f32 %v5341, %v5565
      %v5567 = vpop.f32.mrf.mxu0
      %v5568 = vadd.f32 %v5343, %v5567
      %5569 = vmatmul.bf16.gmra.mxu0 %v4796
      %v5570 = vpop.f32.mrf.mxu0
      %v5571 = vadd.f32 %v5346, %v5570
      %v5572 = vpop.f32.mrf.mxu0
      %v5573 = vadd.f32 %v5348, %v5572
      %5574 = vmatmul.bf16.gmra.mxu0 %v4799
      %v5575 = vpop.f32.mrf.mxu0
      %v5576 = vadd.f32 %v5351, %v5575
      %v5577 = vpop.f32.mrf.mxu0
      %v5578 = vadd.f32 %v5353, %v5577
      %5579 = vdwg.mxu0
      %5580 = vmatpush.bf16.msra.mxu0 0
      %5581 = vmatpush.bf16.msra.mxu0 0
      %5582 = vmatpush.bf16.msra.mxu0 0
      %5583 = vmatpush.bf16.msra.mxu0 0
      %5584 = vmatpush.bf16.msra.mxu0 %v5414
      %5585 = vmatpush.bf16.msra.mxu0 %v5413
      %5586 = vmatpush.bf16.msra.mxu0 %v5412
      %5587 = vmatpush.bf16.msra.mxu0 %v5411
      %5588 = vmatmul.bf16.gmra.mxu0 %v5428
      %v5589 = vpop.f32.mrf.mxu0
      %v5590 = vadd.f32 %v5491, %v5589
      %v5591 = vpop.f32.mrf.mxu0
      %v5592 = vadd.f32 %v5493, %v5591
      %5593 = vmatmul.bf16.gmra.mxu0 %v5431
      %v5594 = vpop.f32.mrf.mxu0
      %v5595 = vadd.f32 %v5496, %v5594
      %v5596 = vpop.f32.mrf.mxu0
      %v5597 = vadd.f32 %v5498, %v5596
      %5598 = vmatmul.bf16.gmra.mxu0 %v5434
      %v5599 = vpop.f32.mrf.mxu0
      %v5600 = vadd.f32 %v5501, %v5599
      %v5601 = vpop.f32.mrf.mxu0
      %v5602 = vadd.f32 %v5503, %v5601
      %5603 = vmatmul.bf16.gmra.mxu0 %v5437
      %v5604 = vpop.f32.mrf.mxu0
      %v5605 = vadd.f32 %v5506, %v5604
      %v5606 = vpop.f32.mrf.mxu0
      %v5607 = vadd.f32 %v5508, %v5606
      %5608 = vmatmul.bf16.gmra.mxu0 %v5440
      %v5609 = vpop.f32.mrf.mxu0
      %v5610 = vadd.f32 %v5511, %v5609
      %v5611 = vpop.f32.mrf.mxu0
      %v5612 = vadd.f32 %v5513, %v5611
      %5613 = vmatmul.bf16.gmra.mxu0 %v5443
      %v5614 = vpop.f32.mrf.mxu0
      %v5615 = vadd.f32 %v5516, %v5614
      %v5616 = vpop.f32.mrf.mxu0
      %v5617 = vadd.f32 %v5518, %v5616
      %5618 = vmatmul.bf16.gmra.mxu0 %v5446
      %v5619 = vpop.f32.mrf.mxu0
      %v5620 = vadd.f32 %v5521, %v5619
      %v5621 = vpop.f32.mrf.mxu0
      %v5622 = vadd.f32 %v5523, %v5621
      %5623 = vmatmul.bf16.gmra.mxu0 %v5449
      %v5624 = vpop.f32.mrf.mxu0
      %v5625 = vadd.f32 %v5526, %v5624
      %v5626 = vpop.f32.mrf.mxu0
      %v5627 = vadd.f32 %v5528, %v5626
      %5628 = vmatmul.bf16.gmra.mxu0 %v5452
      %v5629 = vpop.f32.mrf.mxu0
      %v5630 = vadd.f32 %v5531, %v5629
      %v5631 = vpop.f32.mrf.mxu0
      %v5632 = vadd.f32 %v5533, %v5631
      %5633 = vmatmul.bf16.gmra.mxu0 %v5455
      %v5634 = vpop.f32.mrf.mxu0
      %v5635 = vadd.f32 %v5536, %v5634
      %v5636 = vpop.f32.mrf.mxu0
      %v5637 = vadd.f32 %v5538, %v5636
      %5638 = vmatmul.bf16.gmra.mxu0 %v5458
      %v5639 = vpop.f32.mrf.mxu0
      %v5640 = vadd.f32 %v5541, %v5639
      %v5641 = vpop.f32.mrf.mxu0
      %v5642 = vadd.f32 %v5543, %v5641
      %5643 = vmatmul.bf16.gmra.mxu0 %v5461
      %v5644 = vpop.f32.mrf.mxu0
      %v5645 = vadd.f32 %v5546, %v5644
      %v5646 = vpop.f32.mrf.mxu0
      %v5647 = vadd.f32 %v5548, %v5646
      %5648 = vmatmul.bf16.gmra.mxu0 %v5464
      %v5649 = vpop.f32.mrf.mxu0
      %v5650 = vadd.f32 %v5551, %v5649
      %v5651 = vpop.f32.mrf.mxu0
      %v5652 = vadd.f32 %v5553, %v5651
      %5653 = vmatmul.bf16.gmra.mxu0 %v5467
      %v5654 = vpop.f32.mrf.mxu0
      %v5655 = vadd.f32 %v5556, %v5654
      %v5656 = vpop.f32.mrf.mxu0
      %v5657 = vadd.f32 %v5558, %v5656
      %5658 = vmatmul.bf16.gmra.mxu0 %v5470
      %v5659 = vpop.f32.mrf.mxu0
      %v5660 = vadd.f32 %v5561, %v5659
      %v5661 = vpop.f32.mrf.mxu0
      %v5662 = vadd.f32 %v5563, %v5661
      %5663 = vmatmul.bf16.gmra.mxu0 %v5473
      %v5664 = vpop.f32.mrf.mxu0
      %v5665 = vadd.f32 %v5566, %v5664
      %v5666 = vpop.f32.mrf.mxu0
      %v5667 = vadd.f32 %v5568, %v5666
      %5668 = vmatmul.bf16.gmra.mxu0 %v5476
      %v5669 = vpop.f32.mrf.mxu0
      %v5670 = vadd.f32 %v5571, %v5669
      %v5671 = vpop.f32.mrf.mxu0
      %v5672 = vadd.f32 %v5573, %v5671
      %5673 = vmatmul.bf16.gmra.mxu0 %v5479
      %v5674 = vpop.f32.mrf.mxu0
      %v5675 = vadd.f32 %v5576, %v5674
      %v5676 = vpop.f32.mrf.mxu0
      %v5677 = vadd.f32 %v5578, %v5676
      %5678 = vdwg.mxu0
      %v5679 = vld [vmem:[#allocation2 + $0x10] sm:$0xc]
      %v5680 = vld [vmem:[#allocation2 + $0x14] sm:$0xf]
      %v5681 = vld [vmem:[#allocation2 + $0x18] sm:$0xf]
      %v5682 = vld [vmem:[#allocation2 + $0x1c] sm:$0xf]
      %v5683 = vld [vmem:[#allocation2 + $0x20] sm:$0xf]
      %v5684 = vld [vmem:[#allocation2 + $0x24] sm:$0xf]
      %v5685 = vld [vmem:[#allocation2 + $0x28] sm:$0xf]
      %v5686 = vld [vmem:[#allocation2 + $0x2c] sm:$0xf]
      %v5687 = vld [vmem:[#allocation2 + $0x30] sm:$0xf]
      %v5688 = vld [vmem:[#allocation2 + $0x34] sm:$0xf]
      %v5689 = vld [vmem:[#allocation2 + $0x38] sm:$0xf]
      %v5690 = vld [vmem:[#allocation2 + $0x3c] sm:$0xf]
      %v5691 = vld [vmem:[#allocation2 + $0x40] sm:$0xf]
      %v5692 = vld [vmem:[#allocation2 + $0x44] sm:$0xf]
      %v5693 = vld [vmem:[#allocation2 + $0x48] sm:$0xf]
      %v5694 = vld [vmem:[#allocation2 + $0x4c] sm:$0xf]
      %v5695 = vld [vmem:[#allocation2 + $0x50] sm:$0xf]
      %v5696 = vld [vmem:[#allocation2 + $0x54] sm:$0xf]
      %v5697 = vld [vmem:[#allocation2 + $0x58] sm:$0xf]
      %v5698 = vld [vmem:[#allocation2 + $0x5c] sm:$0xf]
      %v5699 = vld [vmem:[#allocation2 + $0x60] sm:$0xf]
      %v5700 = vld [vmem:[#allocation2 + $0x64] sm:$0xf]
      %v5701 = vld [vmem:[#allocation2 + $0x68] sm:$0xf]
      %v5702 = vld [vmem:[#allocation2 + $0x6c] sm:$0xf]
      %v5703 = vld [vmem:[#allocation2 + $0x70] sm:$0xf]
      %v5704 = vld [vmem:[#allocation2 + $0x74] sm:$0xf]
      %v5705 = vld [vmem:[#allocation2 + $0x78] sm:$0xf]
      %v5706 = vld [vmem:[#allocation2 + $0x7c] sm:$0xf]
      %v5707 = vld [vmem:[#allocation2 + $0x80] sm:$0xf]
      %v5708 = vld [vmem:[#allocation2 + $0x84] sm:$0xf]
      %v5709 = vld [vmem:[#allocation2 + $0x88] sm:$0xf]
      %v5710 = vld [vmem:[#allocation2 + $0x8c] sm:$0xf]
      %v5711 = vld [vmem:[#allocation2 + $0x90] sm:$0xf]
      %v5712 = vld [vmem:[#allocation2 + $0x94] sm:$0xf]
      %v5713 = vld [vmem:[#allocation2 + $0x98] sm:$0xf]
      %v5714 = vld [vmem:[#allocation2 + $0x9c] sm:$0xf]
      %v5715 = vld [vmem:[#allocation2 + $0xa0] sm:$0x3]
      %v5716 = vld [vmem:[#allocation2 + $0xa0] sm:$0x7]
      %v5717 = vld [vmem:[#allocation2 + $0x10] sm:$0x8]
      %v5755 = vunpack.c.l.b16 %v5679
      %v5756 = vunpack.c.l.b16 %v5680
      %v5757 = vunpack.c.l.b16 %v5681
      %v5758 = vunpack.c.l.b16 %v5682
      %v5759 = vunpack.c.l.b16 %v5683
      %v5760 = vunpack.c.l.b16 %v5684
      %v5761 = vunpack.c.l.b16 %v5685
      %v5762 = vunpack.c.l.b16 %v5686
      %v5763 = vunpack.c.l.b16 %v5687
      %v5764 = vunpack.c.l.b16 %v5688
      %v5765 = vunpack.c.l.b16 %v5689
      %v5766 = vunpack.c.l.b16 %v5690
      %v5767 = vunpack.c.l.b16 %v5691
      %v5768 = vunpack.c.l.b16 %v5692
      %v5769 = vunpack.c.l.b16 %v5693
      %v5770 = vunpack.c.l.b16 %v5694
      %v5771 = vunpack.c.l.b16 %v5695
      %v5772 = vunpack.c.l.b16 %v5696
      %v5773 = vunpack.c.l.b16 %v5697
      %v5774 = vunpack.c.l.b16 %v5698
      %v5775 = vunpack.c.l.b16 %v5699
      %v5776 = vunpack.c.l.b16 %v5700
      %v5777 = vunpack.c.l.b16 %v5701
      %v5778 = vunpack.c.l.b16 %v5702
      %v5779 = vunpack.c.l.b16 %v5703
      %v5780 = vunpack.c.l.b16 %v5704
      %v5781 = vunpack.c.l.b16 %v5705
      %v5782 = vunpack.c.l.b16 %v5706
      %v5783 = vunpack.c.l.b16 %v5707
      %v5784 = vunpack.c.l.b16 %v5708
      %v5785 = vunpack.c.l.b16 %v5709
      %v5786 = vunpack.c.l.b16 %v5710
      %v5787 = vunpack.c.l.b16 %v5711
      %v5788 = vunpack.c.l.b16 %v5712
      %v5789 = vunpack.c.l.b16 %v5713
      %v5790 = vunpack.c.l.b16 %v5714
      %v5791 = vunpack.c.l.b16 %v5715
      %v5792 = vpack.c.b16 %v5756, %v5755
      %v5793 = vpack.c.b16 %v5758, %v5757
      %v5794 = vpack.c.b16 %v5760, %v5759
      %v5795 = vpack.c.b16 %v5762, %v5761
      %v5796 = vpack.c.b16 %v5764, %v5763
      %v5797 = vpack.c.b16 %v5766, %v5765
      %v5798 = vpack.c.b16 %v5768, %v5767
      %v5799 = vpack.c.b16 %v5770, %v5769
      %v5800 = vpack.c.b16 %v5772, %v5771
      %v5801 = vpack.c.b16 %v5774, %v5773
      %v5802 = vpack.c.b16 %v5776, %v5775
      %v5803 = vpack.c.b16 %v5778, %v5777
      %v5804 = vpack.c.b16 %v5780, %v5779
      %v5805 = vpack.c.b16 %v5782, %v5781
      %v5806 = vpack.c.b16 %v5784, %v5783
      %v5807 = vpack.c.b16 %v5786, %v5785
      %v5808 = vpack.c.b16 %v5788, %v5787
      %v5809 = vpack.c.b16 %v5790, %v5789
      %v5810 = vpack.c.b16 %v5791, %v5791
      %v5812 = vunpack.c.l.b16 %v5716
      %v5813 = vpack.c.b16 %v5812, %v5812
      %v5815 = vshrl.u32 %v5792, 16
      %v5817 = vshll.u32 %v5792, 16
      %v5819 = vrot.slane %v5817, 1
      %v5820 = vor.u32 %v5815, %v5819
      %v5822 = vshll.u32 %v5793, 16
      %v5824 = vrot.slane %v5822, 1
      %v5825 = vsel %vm1674, %v5820, %v5824
      %v5826 = vshrl.u32 %v5793, 16
      %v5828 = vor.u32 %v5826, %v5824
      %v5830 = vshll.u32 %v5794, 16
      %v5832 = vrot.slane %v5830, 1
      %v5833 = vsel %vm1674, %v5828, %v5832
      %v5834 = vshrl.u32 %v5794, 16
      %v5836 = vor.u32 %v5834, %v5832
      %v5838 = vshll.u32 %v5795, 16
      %v5840 = vrot.slane %v5838, 1
      %v5841 = vsel %vm1674, %v5836, %v5840
      %v5842 = vshrl.u32 %v5795, 16
      %v5844 = vor.u32 %v5842, %v5840
      %v5846 = vshll.u32 %v5796, 16
      %v5848 = vrot.slane %v5846, 1
      %v5849 = vsel %vm1674, %v5844, %v5848
      %v5850 = vshrl.u32 %v5796, 16
      %v5852 = vor.u32 %v5850, %v5848
      %v5854 = vshll.u32 %v5797, 16
      %v5856 = vrot.slane %v5854, 1
      %v5857 = vsel %vm1674, %v5852, %v5856
      %v5858 = vshrl.u32 %v5797, 16
      %v5860 = vor.u32 %v5858, %v5856
      %v5862 = vshll.u32 %v5798, 16
      %v5864 = vrot.slane %v5862, 1
      %v5865 = vsel %vm1674, %v5860, %v5864
      %v5866 = vshrl.u32 %v5798, 16
      %v5868 = vor.u32 %v5866, %v5864
      %v5870 = vshll.u32 %v5799, 16
      %v5872 = vrot.slane %v5870, 1
      %v5873 = vsel %vm1674, %v5868, %v5872
      %v5874 = vshrl.u32 %v5799, 16
      %v5876 = vor.u32 %v5874, %v5872
      %v5878 = vshll.u32 %v5800, 16
      %v5880 = vrot.slane %v5878, 1
      %v5881 = vsel %vm1674, %v5876, %v5880
      %v5882 = vshrl.u32 %v5800, 16
      %v5884 = vor.u32 %v5882, %v5880
      %v5886 = vshll.u32 %v5801, 16
      %v5888 = vrot.slane %v5886, 1
      %v5889 = vsel %vm1674, %v5884, %v5888
      %v5890 = vshrl.u32 %v5801, 16
      %v5892 = vor.u32 %v5890, %v5888
      %v5894 = vshll.u32 %v5802, 16
      %v5896 = vrot.slane %v5894, 1
      %v5897 = vsel %vm1674, %v5892, %v5896
      %v5898 = vshrl.u32 %v5802, 16
      %v5900 = vor.u32 %v5898, %v5896
      %v5902 = vshll.u32 %v5803, 16
      %v5904 = vrot.slane %v5902, 1
      %v5905 = vsel %vm1674, %v5900, %v5904
      %v5906 = vshrl.u32 %v5803, 16
      %v5908 = vor.u32 %v5906, %v5904
      %v5910 = vshll.u32 %v5804, 16
      %v5912 = vrot.slane %v5910, 1
      %v5913 = vsel %vm1674, %v5908, %v5912
      %v5914 = vshrl.u32 %v5804, 16
      %v5916 = vor.u32 %v5914, %v5912
      %v5918 = vshll.u32 %v5805, 16
      %v5920 = vrot.slane %v5918, 1
      %v5921 = vsel %vm1674, %v5916, %v5920
      %v5922 = vshrl.u32 %v5805, 16
      %v5924 = vor.u32 %v5922, %v5920
      %v5926 = vshll.u32 %v5806, 16
      %v5928 = vrot.slane %v5926, 1
      %v5929 = vsel %vm1674, %v5924, %v5928
      %v5930 = vshrl.u32 %v5806, 16
      %v5932 = vor.u32 %v5930, %v5928
      %v5934 = vshll.u32 %v5807, 16
      %v5936 = vrot.slane %v5934, 1
      %v5937 = vsel %vm1674, %v5932, %v5936
      %v5938 = vshrl.u32 %v5807, 16
      %v5940 = vor.u32 %v5938, %v5936
      %v5942 = vshll.u32 %v5808, 16
      %v5944 = vrot.slane %v5942, 1
      %v5945 = vsel %vm1674, %v5940, %v5944
      %v5946 = vshrl.u32 %v5808, 16
      %v5948 = vor.u32 %v5946, %v5944
      %v5950 = vshll.u32 %v5809, 16
      %v5952 = vrot.slane %v5950, 1
      %v5953 = vsel %vm1674, %v5948, %v5952
      %v5954 = vshrl.u32 %v5809, 16
      %v5956 = vor.u32 %v5954, %v5952
      %v5958 = vshll.u32 %v5813, 16
      %v5960 = vrot.slane %v5958, 1
      %v5961 = vsel %vm1674, %v5956, %v5960
      %v5962 = vshrl.u32 %v5813, 16
      %v5964 = vor.u32 %v5962, %v5960
      %5965 = vrot.lane.b32.xlu0 %v5825, 64
      %v5966 = vpop.permute.xlu0 %5965
      %5967 = vrot.lane.b32.xlu0 %v5833, 64
      %v5968 = vpop.permute.xlu0 %5967
      %5969 = vrot.lane.b32.xlu0 %v5841, 64
      %v5970 = vpop.permute.xlu0 %5969
      %5971 = vrot.lane.b32.xlu0 %v5849, 64
      %v5972 = vpop.permute.xlu0 %5971
      %5973 = vrot.lane.b32.xlu0 %v5857, 64
      %v5974 = vpop.permute.xlu0 %5973
      %5975 = vrot.lane.b32.xlu0 %v5865, 64
      %v5976 = vpop.permute.xlu0 %5975
      %5977 = vrot.lane.b32.xlu0 %v5873, 64
      %v5978 = vpop.permute.xlu0 %5977
      %5979 = vrot.lane.b32.xlu0 %v5881, 64
      %v5980 = vpop.permute.xlu0 %5979
      %5981 = vrot.lane.b32.xlu0 %v5889, 64
      %v5982 = vpop.permute.xlu0 %5981
      %5983 = vrot.lane.b32.xlu0 %v5897, 64
      %v5984 = vpop.permute.xlu0 %5983
      %5985 = vrot.lane.b32.xlu0 %v5905, 64
      %v5986 = vpop.permute.xlu0 %5985
      %5987 = vrot.lane.b32.xlu0 %v5913, 64
      %v5988 = vpop.permute.xlu0 %5987
      %5989 = vrot.lane.b32.xlu0 %v5921, 64
      %v5990 = vpop.permute.xlu0 %5989
      %5991 = vrot.lane.b32.xlu0 %v5929, 64
      %v5992 = vpop.permute.xlu0 %5991
      %5993 = vrot.lane.b32.xlu0 %v5937, 64
      %v5994 = vpop.permute.xlu0 %5993
      %5995 = vrot.lane.b32.xlu0 %v5945, 64
      %v5996 = vpop.permute.xlu0 %5995
      %5997 = vrot.lane.b32.xlu0 %v5953, 64
      %v5998 = vpop.permute.xlu0 %5997
      %5999 = vrot.lane.b32.xlu0 %v5961, 64
      %v6000 = vpop.permute.xlu0 %5999
      %6001 = vrot.lane.b32.xlu0 %v5964, 64
      %v6002 = vpop.permute.xlu0 %6001
      %v6004 = vunpack.c.l.b16 %v5717
      %v6005 = vpack.c.b16 %v5756, %v6004
      %v6006 = vrot.slane %v6005, 1
      %v6007 = vrot.slane %v5793, 1
      %v6008 = vsel %vm1862, %v6006, %v6007
      %v6009 = vrot.slane %v5794, 1
      %v6010 = vsel %vm1862, %v6007, %v6009
      %v6011 = vrot.slane %v5795, 1
      %v6012 = vsel %vm1862, %v6009, %v6011
      %v6013 = vrot.slane %v5796, 1
      %v6014 = vsel %vm1862, %v6011, %v6013
      %v6015 = vrot.slane %v5797, 1
      %v6016 = vsel %vm1862, %v6013, %v6015
      %v6017 = vrot.slane %v5798, 1
      %v6018 = vsel %vm1862, %v6015, %v6017
      %v6019 = vrot.slane %v5799, 1
      %v6020 = vsel %vm1862, %v6017, %v6019
      %v6021 = vrot.slane %v5800, 1
      %v6022 = vsel %vm1862, %v6019, %v6021
      %v6023 = vrot.slane %v5801, 1
      %v6024 = vsel %vm1862, %v6021, %v6023
      %v6025 = vrot.slane %v5802, 1
      %v6026 = vsel %vm1862, %v6023, %v6025
      %v6027 = vrot.slane %v5803, 1
      %v6028 = vsel %vm1862, %v6025, %v6027
      %v6029 = vrot.slane %v5804, 1
      %v6030 = vsel %vm1862, %v6027, %v6029
      %v6031 = vrot.slane %v5805, 1
      %v6032 = vsel %vm1862, %v6029, %v6031
      %v6033 = vrot.slane %v5806, 1
      %v6034 = vsel %vm1862, %v6031, %v6033
      %v6035 = vrot.slane %v5807, 1
      %v6036 = vsel %vm1862, %v6033, %v6035
      %v6037 = vrot.slane %v5808, 1
      %v6038 = vsel %vm1862, %v6035, %v6037
      %v6039 = vrot.slane %v5809, 1
      %v6040 = vsel %vm1862, %v6037, %v6039
      %v6041 = vrot.slane %v5813, 1
      %v6042 = vsel %vm1862, %v6039, %v6041
      %v6044 = vsel %vm1900, %v5792, %v5966
      %v6046 = vsel %vm1900, %v5793, %v5968
      %v6048 = vsel %vm1900, %v5794, %v5970
      %v6050 = vsel %vm1900, %v5795, %v5972
      %v6052 = vsel %vm1900, %v5796, %v5974
      %v6054 = vsel %vm1900, %v5797, %v5976
      %v6056 = vsel %vm1900, %v5798, %v5978
      %v6058 = vsel %vm1900, %v5799, %v5980
      %v6060 = vsel %vm1900, %v5800, %v5982
      %v6062 = vsel %vm1900, %v5801, %v5984
      %v6064 = vsel %vm1900, %v5802, %v5986
      %v6066 = vsel %vm1900, %v5803, %v5988
      %v6068 = vsel %vm1900, %v5804, %v5990
      %v6070 = vsel %vm1900, %v5805, %v5992
      %v6072 = vsel %vm1900, %v5806, %v5994
      %v6074 = vsel %vm1900, %v5807, %v5996
      %v6076 = vsel %vm1900, %v5808, %v5998
      %v6078 = vsel %vm1900, %v5809, %v6000
      %v6081 = vsel %vm1900, %v5810, %v6002
      %s6082 = scalar_lea.vmem %s2, 192
      %v6083 = vld [vmem:[%s6082] sm:$0xf]
      %v6084 = vld [vmem:[%s6082 + $0x4] sm:$0xf]
      %v6085 = vld [vmem:[%s6082 + $0x8] sm:$0xf]
      %v6086 = vld [vmem:[%s6082 + $0xc] sm:$0xf]
      %v6087 = vld [vmem:[%s6082 + $0x10] sm:$0xf]
      %v6088 = vld [vmem:[%s6082 + $0x14] sm:$0xf]
      %v6089 = vld [vmem:[%s6082 + $0x18] sm:$0xf]
      %v6090 = vld [vmem:[%s6082 + $0x1c] sm:$0xf]
      %v6091 = vld [vmem:[%s6082 + $0x20] sm:$0xf]
      %v6092 = vld [vmem:[%s6082 + $0x24] sm:$0xf]
      %v6093 = vld [vmem:[%s6082 + $0x28] sm:$0xf]
      %v6094 = vld [vmem:[%s6082 + $0x2c] sm:$0xf]
      %v6095 = vld [vmem:[%s6082 + $0x30] sm:$0xf]
      %v6096 = vld [vmem:[%s6082 + $0x34] sm:$0xf]
      %v6097 = vld [vmem:[%s6082 + $0x38] sm:$0xf]
      %v6098 = vld [vmem:[%s6082 + $0x3c] sm:$0xf]
      %v6099 = vld [vmem:[%s6082 + $0x40] sm:$0xf]
      %v6100 = vld [vmem:[%s6082 + $0x44] sm:$0xf]
      %v6101 = vld [vmem:[%s6082 + $0x48] sm:$0xf]
      %v6102 = vld [vmem:[%s6082 + $0x4c] sm:$0xf]
      %v6103 = vld [vmem:[%s6082 + $0x50] sm:$0xf]
      %v6104 = vld [vmem:[%s6082 + $0x54] sm:$0xf]
      %v6105 = vld [vmem:[%s6082 + $0x58] sm:$0xf]
      %v6106 = vld [vmem:[%s6082 + $0x5c] sm:$0xf]
      %v6126 = vrot.slane %v6044, 2
      %v6127 = vrot.slane %v6046, 2
      %v6128 = vsel %vm3280, %v6126, %v6127
      %v6129 = vrot.slane %v6008, 2
      %v6130 = vrot.slane %v6010, 2
      %v6131 = vsel %vm3280, %v6129, %v6130
      %v6132 = vrot.slane %v6048, 2
      %v6133 = vsel %vm3280, %v6127, %v6132
      %v6134 = vrot.slane %v6012, 2
      %v6135 = vsel %vm3280, %v6130, %v6134
      %v6136 = vrot.slane %v6050, 2
      %v6137 = vsel %vm3280, %v6132, %v6136
      %v6138 = vrot.slane %v6014, 2
      %v6139 = vsel %vm3280, %v6134, %v6138
      %v6140 = vrot.slane %v6052, 2
      %v6141 = vsel %vm3280, %v6136, %v6140
      %v6142 = vrot.slane %v6016, 2
      %v6143 = vsel %vm3280, %v6138, %v6142
      %v6144 = vrot.slane %v6054, 2
      %v6145 = vsel %vm3280, %v6140, %v6144
      %v6146 = vrot.slane %v6018, 2
      %v6147 = vsel %vm3280, %v6142, %v6146
      %v6148 = vrot.slane %v6056, 2
      %v6149 = vsel %vm3280, %v6144, %v6148
      %v6150 = vrot.slane %v6020, 2
      %v6151 = vsel %vm3280, %v6146, %v6150
      %v6152 = vrot.slane %v6058, 2
      %v6153 = vsel %vm3280, %v6148, %v6152
      %v6154 = vrot.slane %v6022, 2
      %v6155 = vsel %vm3280, %v6150, %v6154
      %v6156 = vrot.slane %v6060, 2
      %v6157 = vsel %vm3280, %v6152, %v6156
      %v6158 = vrot.slane %v6024, 2
      %v6159 = vsel %vm3280, %v6154, %v6158
      %v6160 = vrot.slane %v6062, 2
      %v6161 = vsel %vm3280, %v6156, %v6160
      %v6162 = vrot.slane %v6026, 2
      %v6163 = vsel %vm3280, %v6158, %v6162
      %v6164 = vrot.slane %v6064, 2
      %v6165 = vsel %vm3280, %v6160, %v6164
      %v6166 = vrot.slane %v6028, 2
      %v6167 = vsel %vm3280, %v6162, %v6166
      %v6168 = vrot.slane %v6066, 2
      %v6169 = vsel %vm3280, %v6164, %v6168
      %v6170 = vrot.slane %v6030, 2
      %v6171 = vsel %vm3280, %v6166, %v6170
      %v6172 = vrot.slane %v6068, 2
      %v6173 = vsel %vm3280, %v6168, %v6172
      %v6174 = vrot.slane %v6032, 2
      %v6175 = vsel %vm3280, %v6170, %v6174
      %v6176 = vrot.slane %v6070, 2
      %v6177 = vsel %vm3280, %v6172, %v6176
      %v6178 = vrot.slane %v6034, 2
      %v6179 = vsel %vm3280, %v6174, %v6178
      %v6180 = vrot.slane %v6072, 2
      %v6181 = vsel %vm3280, %v6176, %v6180
      %v6182 = vrot.slane %v6036, 2
      %v6183 = vsel %vm3280, %v6178, %v6182
      %v6184 = vrot.slane %v6074, 2
      %v6185 = vsel %vm3280, %v6180, %v6184
      %v6186 = vrot.slane %v6038, 2
      %v6187 = vsel %vm3280, %v6182, %v6186
      %v6188 = vrot.slane %v6076, 2
      %v6189 = vsel %vm3280, %v6184, %v6188
      %v6190 = vrot.slane %v6040, 2
      %v6191 = vsel %vm3280, %v6186, %v6190
      %v6192 = vrot.slane %v6078, 2
      %v6193 = vsel %vm3280, %v6188, %v6192
      %v6194 = vrot.slane %v6042, 2
      %v6195 = vsel %vm3280, %v6190, %v6194
      %v6196 = vrot.slane %v6081, 2
      %v6197 = vsel %vm3280, %v6192, %v6196
      %v6198 = vrot.slane %v6041, 2
      %v6199 = vsel %vm3280, %v6194, %v6198
      %v6242 = vunpack.c.l.b16 %v6083
      %v6243 = vunpack.c.l.b16 %v6084
      %v6244 = vunpack.c.l.b16 %v6085
      %v6245 = vunpack.c.l.b16 %v6086
      %v6246 = vunpack.c.l.b16 %v6087
      %v6247 = vunpack.c.l.b16 %v6088
      %v6248 = vunpack.c.l.b16 %v6089
      %v6249 = vunpack.c.l.b16 %v6090
      %v6250 = vunpack.c.l.b16 %v6091
      %v6251 = vunpack.c.l.b16 %v6092
      %v6252 = vunpack.c.l.b16 %v6093
      %v6253 = vunpack.c.l.b16 %v6094
      %v6254 = vunpack.c.l.b16 %v6095
      %v6255 = vunpack.c.l.b16 %v6096
      %v6256 = vunpack.c.l.b16 %v6097
      %v6257 = vunpack.c.l.b16 %v6098
      %v6258 = vunpack.c.l.b16 %v6099
      %v6259 = vunpack.c.l.b16 %v6100
      %v6260 = vunpack.c.l.b16 %v6101
      %v6261 = vunpack.c.l.b16 %v6102
      %v6262 = vunpack.c.l.b16 %v6103
      %v6263 = vunpack.c.l.b16 %v6104
      %v6264 = vunpack.c.l.b16 %v6105
      %v6265 = vunpack.c.l.b16 %v6106
      %v6266 = vpack.c.b16 %v6243, %v6242
      %v6267 = vpack.c.b16 %v6245, %v6244
      %v6268 = vpack.c.b16 %v6247, %v6246
      %v6269 = vpack.c.b16 %v6249, %v6248
      %v6270 = vpack.c.b16 %v6251, %v6250
      %v6271 = vpack.c.b16 %v6253, %v6252
      %v6272 = vpack.c.b16 %v6255, %v6254
      %v6273 = vpack.c.b16 %v6257, %v6256
      %v6274 = vpack.c.b16 %v6259, %v6258
      %v6275 = vpack.c.b16 %v6261, %v6260
      %v6276 = vpack.c.b16 %v6263, %v6262
      %v6277 = vpack.c.b16 %v6265, %v6264
      %v6291 = vsel %vm1900, %v6131, 0
      %v6294 = vsel %vm1900, %v6135, 0
      %v6297 = vsel %vm1900, %v6139, 0
      %v6300 = vsel %vm1900, %v6143, 0
      %v6303 = vsel %vm1900, %v6147, 0
      %v6306 = vsel %vm1900, %v6151, 0
      %v6309 = vsel %vm1900, %v6155, 0
      %v6312 = vsel %vm1900, %v6159, 0
      %v6315 = vsel %vm1900, %v6163, 0
      %v6318 = vsel %vm1900, %v6167, 0
      %v6321 = vsel %vm1900, %v6171, 0
      %v6324 = vsel %vm1900, %v6175, 0
      %v6327 = vsel %vm1900, %v6179, 0
      %v6330 = vsel %vm1900, %v6183, 0
      %v6333 = vsel %vm1900, %v6187, 0
      %v6336 = vsel %vm1900, %v6191, 0
      %v6339 = vsel %vm1900, %v6195, 0
      %v6342 = vsel %vm1900, %v6199, 0
      %6344 = vmatpush.bf16.msra.mxu0 %v6273
      %6345 = vmatpush.bf16.msra.mxu0 %v6272
      %6346 = vmatpush.bf16.msra.mxu0 %v6271
      %6347 = vmatpush.bf16.msra.mxu0 %v6270
      %6348 = vmatpush.bf16.msra.mxu0 %v6269
      %6349 = vmatpush.bf16.msra.mxu0 %v6268
      %6350 = vmatpush.bf16.msra.mxu0 %v6267
      %6351 = vmatpush.bf16.msra.mxu0 %v6266
      %6352 = vmatmul.bf16.gmra.mxu0 %v6128
      %v6353 = vpop.f32.mrf.mxu0
      %v6354 = vadd.f32 0.0, %v6353
      %v6355 = vpop.f32.mrf.mxu0
      %v6356 = vadd.f32 0.0, %v6355
      %6357 = vmatmul.bf16.gmra.mxu0 %v6133
      %v6358 = vpop.f32.mrf.mxu0
      %v6359 = vadd.f32 0.0, %v6358
      %v6360 = vpop.f32.mrf.mxu0
      %v6361 = vadd.f32 0.0, %v6360
      %6362 = vmatmul.bf16.gmra.mxu0 %v6137
      %v6363 = vpop.f32.mrf.mxu0
      %v6364 = vadd.f32 0.0, %v6363
      %v6365 = vpop.f32.mrf.mxu0
      %v6366 = vadd.f32 0.0, %v6365
      %6367 = vmatmul.bf16.gmra.mxu0 %v6141
      %v6368 = vpop.f32.mrf.mxu0
      %v6369 = vadd.f32 0.0, %v6368
      %v6370 = vpop.f32.mrf.mxu0
      %v6371 = vadd.f32 0.0, %v6370
      %6372 = vmatmul.bf16.gmra.mxu0 %v6145
      %v6373 = vpop.f32.mrf.mxu0
      %v6374 = vadd.f32 0.0, %v6373
      %v6375 = vpop.f32.mrf.mxu0
      %v6376 = vadd.f32 0.0, %v6375
      %6377 = vmatmul.bf16.gmra.mxu0 %v6149
      %v6378 = vpop.f32.mrf.mxu0
      %v6379 = vadd.f32 0.0, %v6378
      %v6380 = vpop.f32.mrf.mxu0
      %v6381 = vadd.f32 0.0, %v6380
      %6382 = vmatmul.bf16.gmra.mxu0 %v6153
      %v6383 = vpop.f32.mrf.mxu0
      %v6384 = vadd.f32 0.0, %v6383
      %v6385 = vpop.f32.mrf.mxu0
      %v6386 = vadd.f32 0.0, %v6385
      %6387 = vmatmul.bf16.gmra.mxu0 %v6157
      %v6388 = vpop.f32.mrf.mxu0
      %v6389 = vadd.f32 0.0, %v6388
      %v6390 = vpop.f32.mrf.mxu0
      %v6391 = vadd.f32 0.0, %v6390
      %6392 = vmatmul.bf16.gmra.mxu0 %v6161
      %v6393 = vpop.f32.mrf.mxu0
      %v6394 = vadd.f32 0.0, %v6393
      %v6395 = vpop.f32.mrf.mxu0
      %v6396 = vadd.f32 0.0, %v6395
      %6397 = vmatmul.bf16.gmra.mxu0 %v6165
      %v6398 = vpop.f32.mrf.mxu0
      %v6399 = vadd.f32 0.0, %v6398
      %v6400 = vpop.f32.mrf.mxu0
      %v6401 = vadd.f32 0.0, %v6400
      %6402 = vmatmul.bf16.gmra.mxu0 %v6169
      %v6403 = vpop.f32.mrf.mxu0
      %v6404 = vadd.f32 0.0, %v6403
      %v6405 = vpop.f32.mrf.mxu0
      %v6406 = vadd.f32 0.0, %v6405
      %6407 = vmatmul.bf16.gmra.mxu0 %v6173
      %v6408 = vpop.f32.mrf.mxu0
      %v6409 = vadd.f32 0.0, %v6408
      %v6410 = vpop.f32.mrf.mxu0
      %v6411 = vadd.f32 0.0, %v6410
      %6412 = vmatmul.bf16.gmra.mxu0 %v6177
      %v6413 = vpop.f32.mrf.mxu0
      %v6414 = vadd.f32 0.0, %v6413
      %v6415 = vpop.f32.mrf.mxu0
      %v6416 = vadd.f32 0.0, %v6415
      %6417 = vmatmul.bf16.gmra.mxu0 %v6181
      %v6418 = vpop.f32.mrf.mxu0
      %v6419 = vadd.f32 0.0, %v6418
      %v6420 = vpop.f32.mrf.mxu0
      %v6421 = vadd.f32 0.0, %v6420
      %6422 = vmatmul.bf16.gmra.mxu0 %v6185
      %v6423 = vpop.f32.mrf.mxu0
      %v6424 = vadd.f32 0.0, %v6423
      %v6425 = vpop.f32.mrf.mxu0
      %v6426 = vadd.f32 0.0, %v6425
      %6427 = vmatmul.bf16.gmra.mxu0 %v6189
      %v6428 = vpop.f32.mrf.mxu0
      %v6429 = vadd.f32 0.0, %v6428
      %v6430 = vpop.f32.mrf.mxu0
      %v6431 = vadd.f32 0.0, %v6430
      %6432 = vmatmul.bf16.gmra.mxu0 %v6193
      %v6433 = vpop.f32.mrf.mxu0
      %v6434 = vadd.f32 0.0, %v6433
      %v6435 = vpop.f32.mrf.mxu0
      %v6436 = vadd.f32 0.0, %v6435
      %6437 = vmatmul.bf16.gmra.mxu0 %v6197
      %v6438 = vpop.f32.mrf.mxu0
      %v6439 = vadd.f32 0.0, %v6438
      %v6440 = vpop.f32.mrf.mxu0
      %v6441 = vadd.f32 0.0, %v6440
      %6442 = vdwg.mxu0
      %6443 = vmatpush.bf16.msra.mxu0 0
      %6444 = vmatpush.bf16.msra.mxu0 0
      %6445 = vmatpush.bf16.msra.mxu0 0
      %6446 = vmatpush.bf16.msra.mxu0 0
      %6447 = vmatpush.bf16.msra.mxu0 %v6277
      %6448 = vmatpush.bf16.msra.mxu0 %v6276
      %6449 = vmatpush.bf16.msra.mxu0 %v6275
      %6450 = vmatpush.bf16.msra.mxu0 %v6274
      %6451 = vmatmul.bf16.gmra.mxu0 %v6291
      %v6452 = vpop.f32.mrf.mxu0
      %v6453 = vadd.f32 %v6354, %v6452
      %v6454 = vpop.f32.mrf.mxu0
      %v6455 = vadd.f32 %v6356, %v6454
      %6456 = vmatmul.bf16.gmra.mxu0 %v6294
      %v6457 = vpop.f32.mrf.mxu0
      %v6458 = vadd.f32 %v6359, %v6457
      %v6459 = vpop.f32.mrf.mxu0
      %v6460 = vadd.f32 %v6361, %v6459
      %6461 = vmatmul.bf16.gmra.mxu0 %v6297
      %v6462 = vpop.f32.mrf.mxu0
      %v6463 = vadd.f32 %v6364, %v6462
      %v6464 = vpop.f32.mrf.mxu0
      %v6465 = vadd.f32 %v6366, %v6464
      %6466 = vmatmul.bf16.gmra.mxu0 %v6300
      %v6467 = vpop.f32.mrf.mxu0
      %v6468 = vadd.f32 %v6369, %v6467
      %v6469 = vpop.f32.mrf.mxu0
      %v6470 = vadd.f32 %v6371, %v6469
      %6471 = vmatmul.bf16.gmra.mxu0 %v6303
      %v6472 = vpop.f32.mrf.mxu0
      %v6473 = vadd.f32 %v6374, %v6472
      %v6474 = vpop.f32.mrf.mxu0
      %v6475 = vadd.f32 %v6376, %v6474
      %6476 = vmatmul.bf16.gmra.mxu0 %v6306
      %v6477 = vpop.f32.mrf.mxu0
      %v6478 = vadd.f32 %v6379, %v6477
      %v6479 = vpop.f32.mrf.mxu0
      %v6480 = vadd.f32 %v6381, %v6479
      %6481 = vmatmul.bf16.gmra.mxu0 %v6309
      %v6482 = vpop.f32.mrf.mxu0
      %v6483 = vadd.f32 %v6384, %v6482
      %v6484 = vpop.f32.mrf.mxu0
      %v6485 = vadd.f32 %v6386, %v6484
      %6486 = vmatmul.bf16.gmra.mxu0 %v6312
      %v6487 = vpop.f32.mrf.mxu0
      %v6488 = vadd.f32 %v6389, %v6487
      %v6489 = vpop.f32.mrf.mxu0
      %v6490 = vadd.f32 %v6391, %v6489
      %6491 = vmatmul.bf16.gmra.mxu0 %v6315
      %v6492 = vpop.f32.mrf.mxu0
      %v6493 = vadd.f32 %v6394, %v6492
      %v6494 = vpop.f32.mrf.mxu0
      %v6495 = vadd.f32 %v6396, %v6494
      %6496 = vmatmul.bf16.gmra.mxu0 %v6318
      %v6497 = vpop.f32.mrf.mxu0
      %v6498 = vadd.f32 %v6399, %v6497
      %v6499 = vpop.f32.mrf.mxu0
      %v6500 = vadd.f32 %v6401, %v6499
      %6501 = vmatmul.bf16.gmra.mxu0 %v6321
      %v6502 = vpop.f32.mrf.mxu0
      %v6503 = vadd.f32 %v6404, %v6502
      %v6504 = vpop.f32.mrf.mxu0
      %v6505 = vadd.f32 %v6406, %v6504
      %6506 = vmatmul.bf16.gmra.mxu0 %v6324
      %v6507 = vpop.f32.mrf.mxu0
      %v6508 = vadd.f32 %v6409, %v6507
      %v6509 = vpop.f32.mrf.mxu0
      %v6510 = vadd.f32 %v6411, %v6509
      %6511 = vmatmul.bf16.gmra.mxu0 %v6327
      %v6512 = vpop.f32.mrf.mxu0
      %v6513 = vadd.f32 %v6414, %v6512
      %v6514 = vpop.f32.mrf.mxu0
      %v6515 = vadd.f32 %v6416, %v6514
      %6516 = vmatmul.bf16.gmra.mxu0 %v6330
      %v6517 = vpop.f32.mrf.mxu0
      %v6518 = vadd.f32 %v6419, %v6517
      %v6519 = vpop.f32.mrf.mxu0
      %v6520 = vadd.f32 %v6421, %v6519
      %6521 = vmatmul.bf16.gmra.mxu0 %v6333
      %v6522 = vpop.f32.mrf.mxu0
      %v6523 = vadd.f32 %v6424, %v6522
      %v6524 = vpop.f32.mrf.mxu0
      %v6525 = vadd.f32 %v6426, %v6524
      %6526 = vmatmul.bf16.gmra.mxu0 %v6336
      %v6527 = vpop.f32.mrf.mxu0
      %v6528 = vadd.f32 %v6429, %v6527
      %v6529 = vpop.f32.mrf.mxu0
      %v6530 = vadd.f32 %v6431, %v6529
      %6531 = vmatmul.bf16.gmra.mxu0 %v6339
      %v6532 = vpop.f32.mrf.mxu0
      %v6533 = vadd.f32 %v6434, %v6532
      %v6534 = vpop.f32.mrf.mxu0
      %v6535 = vadd.f32 %v6436, %v6534
      %6536 = vmatmul.bf16.gmra.mxu0 %v6342
      %v6537 = vpop.f32.mrf.mxu0
      %v6538 = vadd.f32 %v6439, %v6537
      %v6539 = vpop.f32.mrf.mxu0
      %v6540 = vadd.f32 %v6441, %v6539
      %6541 = vdwg.mxu0
      %v6542 = vadd.f32 %v5590, %v6453
      %v6543 = vadd.f32 %v5592, %v6455
      %v6544 = vadd.f32 %v5595, %v6458
      %v6545 = vadd.f32 %v5597, %v6460
      %v6546 = vadd.f32 %v5600, %v6463
      %v6547 = vadd.f32 %v5602, %v6465
      %v6548 = vadd.f32 %v5605, %v6468
      %v6549 = vadd.f32 %v5607, %v6470
      %v6550 = vadd.f32 %v5610, %v6473
      %v6551 = vadd.f32 %v5612, %v6475
      %v6552 = vadd.f32 %v5615, %v6478
      %v6553 = vadd.f32 %v5617, %v6480
      %v6554 = vadd.f32 %v5620, %v6483
      %v6555 = vadd.f32 %v5622, %v6485
      %v6556 = vadd.f32 %v5625, %v6488
      %v6557 = vadd.f32 %v5627, %v6490
      %v6558 = vadd.f32 %v5630, %v6493
      %v6559 = vadd.f32 %v5632, %v6495
      %v6560 = vadd.f32 %v5635, %v6498
      %v6561 = vadd.f32 %v5637, %v6500
      %v6562 = vadd.f32 %v5640, %v6503
      %v6563 = vadd.f32 %v5642, %v6505
      %v6564 = vadd.f32 %v5645, %v6508
      %v6565 = vadd.f32 %v5647, %v6510
      %v6566 = vadd.f32 %v5650, %v6513
      %v6567 = vadd.f32 %v5652, %v6515
      %v6568 = vadd.f32 %v5655, %v6518
      %v6569 = vadd.f32 %v5657, %v6520
      %v6570 = vadd.f32 %v5660, %v6523
      %v6571 = vadd.f32 %v5662, %v6525
      %v6572 = vadd.f32 %v5665, %v6528
      %v6573 = vadd.f32 %v5667, %v6530
      %v6574 = vadd.f32 %v5670, %v6533
      %v6575 = vadd.f32 %v5672, %v6535
      %v6576 = vadd.f32 %v5675, %v6538
      %v6577 = vadd.f32 %v5677, %v6540
      %v6578 = vld [vmem:[%s219 + $0x8] sm:$0xe]
      %v6579 = vld [vmem:[%s219 + $0xc] sm:$0xf]
      %v6580 = vld [vmem:[%s219 + $0x10] sm:$0xf]
      %v6581 = vld [vmem:[%s219 + $0x14] sm:$0xf]
      %v6582 = vld [vmem:[%s219 + $0x18] sm:$0xf]
      %v6583 = vld [vmem:[%s219 + $0x1c] sm:$0xf]
      %v6584 = vld [vmem:[%s219 + $0x20] sm:$0xf]
      %v6585 = vld [vmem:[%s219 + $0x24] sm:$0xf]
      %v6586 = vld [vmem:[%s219 + $0x28] sm:$0xf]
      %v6587 = vld [vmem:[%s219 + $0x2c] sm:$0xf]
      %v6588 = vld [vmem:[%s219 + $0x30] sm:$0xf]
      %v6589 = vld [vmem:[%s219 + $0x34] sm:$0xf]
      %v6590 = vld [vmem:[%s219 + $0x38] sm:$0xf]
      %v6591 = vld [vmem:[%s219 + $0x3c] sm:$0xf]
      %v6592 = vld [vmem:[%s219 + $0x40] sm:$0xf]
      %v6593 = vld [vmem:[%s219 + $0x44] sm:$0xf]
      %v6594 = vld [vmem:[%s219 + $0x48] sm:$0xf]
      %v6595 = vld [vmem:[%s219 + $0x4c] sm:$0xf]
      %v6596 = vld [vmem:[%s219 + $0x50] sm:$0xf]
      %v6597 = vld [vmem:[%s219 + $0x54] sm:$0xf]
      %v6598 = vld [vmem:[%s219 + $0x58] sm:$0xf]
      %v6599 = vld [vmem:[%s219 + $0x5c] sm:$0xf]
      %v6600 = vld [vmem:[%s219 + $0x60] sm:$0xf]
      %v6601 = vld [vmem:[%s219 + $0x64] sm:$0xf]
      %v6602 = vld [vmem:[%s219 + $0x68] sm:$0xf]
      %v6603 = vld [vmem:[%s219 + $0x6c] sm:$0xf]
      %v6604 = vld [vmem:[%s219 + $0x70] sm:$0xf]
      %v6605 = vld [vmem:[%s219 + $0x74] sm:$0xf]
      %v6606 = vld [vmem:[%s219 + $0x78] sm:$0xf]
      %v6607 = vld [vmem:[%s219 + $0x7c] sm:$0xf]
      %v6608 = vld [vmem:[%s219 + $0x80] sm:$0xf]
      %v6609 = vld [vmem:[%s219 + $0x84] sm:$0xf]
      %v6610 = vld [vmem:[%s219 + $0x88] sm:$0xf]
      %v6611 = vld [vmem:[%s219 + $0x8c] sm:$0xf]
      %v6612 = vld [vmem:[%s219 + $0x90] sm:$0xf]
      %v6613 = vld [vmem:[%s219 + $0x94] sm:$0xf]
      %v6614 = vld [vmem:[%s219 + $0x98] sm:$0x3]
      %v6615 = vunpack.c.l.bf16 %v6578
      %v6616 = vunpack.c.l.bf16 %v6579
      %v6617 = vunpack.c.l.bf16 %v6580
      %v6618 = vunpack.c.l.bf16 %v6581
      %v6619 = vunpack.c.l.bf16 %v6582
      %v6620 = vunpack.c.l.bf16 %v6583
      %v6621 = vunpack.c.l.bf16 %v6584
      %v6622 = vunpack.c.l.bf16 %v6585
      %v6623 = vunpack.c.l.bf16 %v6586
      %v6624 = vunpack.c.l.bf16 %v6587
      %v6625 = vunpack.c.l.bf16 %v6588
      %v6626 = vunpack.c.l.bf16 %v6589
      %v6627 = vunpack.c.l.bf16 %v6590
      %v6628 = vunpack.c.l.bf16 %v6591
      %v6629 = vunpack.c.l.bf16 %v6592
      %v6630 = vunpack.c.l.bf16 %v6593
      %v6631 = vunpack.c.l.bf16 %v6594
      %v6632 = vunpack.c.l.bf16 %v6595
      %v6633 = vunpack.c.l.bf16 %v6596
      %v6634 = vunpack.c.l.bf16 %v6597
      %v6635 = vunpack.c.l.bf16 %v6598
      %v6636 = vunpack.c.l.bf16 %v6599
      %v6637 = vunpack.c.l.bf16 %v6600
      %v6638 = vunpack.c.l.bf16 %v6601
      %v6639 = vunpack.c.l.bf16 %v6602
      %v6640 = vunpack.c.l.bf16 %v6603
      %v6641 = vunpack.c.l.bf16 %v6604
      %v6642 = vunpack.c.l.bf16 %v6605
      %v6643 = vunpack.c.l.bf16 %v6606
      %v6644 = vunpack.c.l.bf16 %v6607
      %v6645 = vunpack.c.l.bf16 %v6608
      %v6646 = vunpack.c.l.bf16 %v6609
      %v6647 = vunpack.c.l.bf16 %v6610
      %v6648 = vunpack.c.l.bf16 %v6611
      %v6649 = vunpack.c.l.bf16 %v6612
      %v6650 = vunpack.c.l.bf16 %v6613
      %v6651 = vunpack.c.l.bf16 %v6614
      %v6652 = vld [vmem:[%s4] sm:$0x1]
      %v6654 = vperm.slane %v6652, 0
      %v6656 = vadd.f32 %v6542, %v6654
      %v6657 = vadd.f32 %v6543, %v6654
      %v6658 = vadd.f32 %v6544, %v6654
      %v6659 = vadd.f32 %v6545, %v6654
      %v6660 = vadd.f32 %v6546, %v6654
      %v6661 = vadd.f32 %v6547, %v6654
      %v6662 = vadd.f32 %v6548, %v6654
      %v6663 = vadd.f32 %v6549, %v6654
      %v6664 = vadd.f32 %v6550, %v6654
      %v6665 = vadd.f32 %v6551, %v6654
      %v6666 = vadd.f32 %v6552, %v6654
      %v6667 = vadd.f32 %v6553, %v6654
      %v6668 = vadd.f32 %v6554, %v6654
      %v6669 = vadd.f32 %v6555, %v6654
      %v6670 = vadd.f32 %v6556, %v6654
      %v6671 = vadd.f32 %v6557, %v6654
      %v6672 = vadd.f32 %v6558, %v6654
      %v6673 = vadd.f32 %v6559, %v6654
      %v6674 = vadd.f32 %v6560, %v6654
      %v6675 = vadd.f32 %v6561, %v6654
      %v6676 = vadd.f32 %v6562, %v6654
      %v6677 = vadd.f32 %v6563, %v6654
      %v6678 = vadd.f32 %v6564, %v6654
      %v6679 = vadd.f32 %v6565, %v6654
      %v6680 = vadd.f32 %v6566, %v6654
      %v6681 = vadd.f32 %v6567, %v6654
      %v6682 = vadd.f32 %v6568, %v6654
      %v6683 = vadd.f32 %v6569, %v6654
      %v6684 = vadd.f32 %v6570, %v6654
      %v6685 = vadd.f32 %v6571, %v6654
      %v6686 = vadd.f32 %v6572, %v6654
      %v6687 = vadd.f32 %v6573, %v6654
      %v6688 = vadd.f32 %v6574, %v6654
      %v6689 = vadd.f32 %v6575, %v6654
      %v6690 = vadd.f32 %v6576, %v6654
      %v6691 = vadd.f32 %v6577, %v6654
      %vm6729 = vcmask 1044480
      %v6730 = vrot.slane %v6615, 3
      %v6731 = vrot.slane %v6616, 3
      %v6732 = vsel %vm6729, %v6730, %v6731
      %v6733 = vrot.slane %v6617, 3
      %v6734 = vsel %vm6729, %v6731, %v6733
      %v6735 = vrot.slane %v6618, 3
      %v6736 = vsel %vm6729, %v6733, %v6735
      %v6737 = vrot.slane %v6619, 3
      %v6738 = vsel %vm6729, %v6735, %v6737
      %v6739 = vrot.slane %v6620, 3
      %v6740 = vsel %vm6729, %v6737, %v6739
      %v6741 = vrot.slane %v6621, 3
      %v6742 = vsel %vm6729, %v6739, %v6741
      %v6743 = vrot.slane %v6622, 3
      %v6744 = vsel %vm6729, %v6741, %v6743
      %v6745 = vrot.slane %v6623, 3
      %v6746 = vsel %vm6729, %v6743, %v6745
      %v6747 = vrot.slane %v6624, 3
      %v6748 = vsel %vm6729, %v6745, %v6747
      %v6749 = vrot.slane %v6625, 3
      %v6750 = vsel %vm6729, %v6747, %v6749
      %v6751 = vrot.slane %v6626, 3
      %v6752 = vsel %vm6729, %v6749, %v6751
      %v6753 = vrot.slane %v6627, 3
      %v6754 = vsel %vm6729, %v6751, %v6753
      %v6755 = vrot.slane %v6628, 3
      %v6756 = vsel %vm6729, %v6753, %v6755
      %v6757 = vrot.slane %v6629, 3
      %v6758 = vsel %vm6729, %v6755, %v6757
      %v6759 = vrot.slane %v6630, 3
      %v6760 = vsel %vm6729, %v6757, %v6759
      %v6761 = vrot.slane %v6631, 3
      %v6762 = vsel %vm6729, %v6759, %v6761
      %v6763 = vrot.slane %v6632, 3
      %v6764 = vsel %vm6729, %v6761, %v6763
      %v6765 = vrot.slane %v6633, 3
      %v6766 = vsel %vm6729, %v6763, %v6765
      %v6767 = vrot.slane %v6634, 3
      %v6768 = vsel %vm6729, %v6765, %v6767
      %v6769 = vrot.slane %v6635, 3
      %v6770 = vsel %vm6729, %v6767, %v6769
      %v6771 = vrot.slane %v6636, 3
      %v6772 = vsel %vm6729, %v6769, %v6771
      %v6773 = vrot.slane %v6637, 3
      %v6774 = vsel %vm6729, %v6771, %v6773
      %v6775 = vrot.slane %v6638, 3
      %v6776 = vsel %vm6729, %v6773, %v6775
      %v6777 = vrot.slane %v6639, 3
      %v6778 = vsel %vm6729, %v6775, %v6777
      %v6779 = vrot.slane %v6640, 3
      %v6780 = vsel %vm6729, %v6777, %v6779
      %v6781 = vrot.slane %v6641, 3
      %v6782 = vsel %vm6729, %v6779, %v6781
      %v6783 = vrot.slane %v6642, 3
      %v6784 = vsel %vm6729, %v6781, %v6783
      %v6785 = vrot.slane %v6643, 3
      %v6786 = vsel %vm6729, %v6783, %v6785
      %v6787 = vrot.slane %v6644, 3
      %v6788 = vsel %vm6729, %v6785, %v6787
      %v6789 = vrot.slane %v6645, 3
      %v6790 = vsel %vm6729, %v6787, %v6789
      %v6791 = vrot.slane %v6646, 3
      %v6792 = vsel %vm6729, %v6789, %v6791
      %v6793 = vrot.slane %v6647, 3
      %v6794 = vsel %vm6729, %v6791, %v6793
      %v6795 = vrot.slane %v6648, 3
      %v6796 = vsel %vm6729, %v6793, %v6795
      %v6797 = vrot.slane %v6649, 3
      %v6798 = vsel %vm6729, %v6795, %v6797
      %v6799 = vrot.slane %v6650, 3
      %v6800 = vsel %vm6729, %v6797, %v6799
      %v6801 = vrot.slane %v6651, 3
      %v6802 = vsel %vm6729, %v6799, %v6801
      %v6839 = vadd.f32 %v6656, %v6732
      %v6840 = vadd.f32 %v6657, %v6734
      %v6841 = vadd.f32 %v6658, %v6736
      %v6842 = vadd.f32 %v6659, %v6738
      %v6843 = vadd.f32 %v6660, %v6740
      %v6844 = vadd.f32 %v6661, %v6742
      %v6845 = vadd.f32 %v6662, %v6744
      %v6846 = vadd.f32 %v6663, %v6746
      %v6847 = vadd.f32 %v6664, %v6748
      %v6848 = vadd.f32 %v6665, %v6750
      %v6849 = vadd.f32 %v6666, %v6752
      %v6850 = vadd.f32 %v6667, %v6754
      %v6851 = vadd.f32 %v6668, %v6756
      %v6852 = vadd.f32 %v6669, %v6758
      %v6853 = vadd.f32 %v6670, %v6760
      %v6854 = vadd.f32 %v6671, %v6762
      %v6855 = vadd.f32 %v6672, %v6764
      %v6856 = vadd.f32 %v6673, %v6766
      %v6857 = vadd.f32 %v6674, %v6768
      %v6858 = vadd.f32 %v6675, %v6770
      %v6859 = vadd.f32 %v6676, %v6772
      %v6860 = vadd.f32 %v6677, %v6774
      %v6861 = vadd.f32 %v6678, %v6776
      %v6862 = vadd.f32 %v6679, %v6778
      %v6863 = vadd.f32 %v6680, %v6780
      %v6864 = vadd.f32 %v6681, %v6782
      %v6865 = vadd.f32 %v6682, %v6784
      %v6866 = vadd.f32 %v6683, %v6786
      %v6867 = vadd.f32 %v6684, %v6788
      %v6868 = vadd.f32 %v6685, %v6790
      %v6869 = vadd.f32 %v6686, %v6792
      %v6870 = vadd.f32 %v6687, %v6794
      %v6871 = vadd.f32 %v6688, %v6796
      %v6872 = vadd.f32 %v6689, %v6798
      %v6873 = vadd.f32 %v6690, %v6800
      %v6874 = vadd.f32 %v6691, %v6802
      %v6875 = vmax.f32 %v6839, 0.0
      %v6876 = vmax.f32 %v6840, 0.0
      %v6877 = vmax.f32 %v6841, 0.0
      %v6878 = vmax.f32 %v6842, 0.0
      %v6879 = vmax.f32 %v6843, 0.0
      %v6880 = vmax.f32 %v6844, 0.0
      %v6881 = vmax.f32 %v6845, 0.0
      %v6882 = vmax.f32 %v6846, 0.0
      %v6883 = vmax.f32 %v6847, 0.0
      %v6884 = vmax.f32 %v6848, 0.0
      %v6885 = vmax.f32 %v6849, 0.0
      %v6886 = vmax.f32 %v6850, 0.0
      %v6887 = vmax.f32 %v6851, 0.0
      %v6888 = vmax.f32 %v6852, 0.0
      %v6889 = vmax.f32 %v6853, 0.0
      %v6890 = vmax.f32 %v6854, 0.0
      %v6891 = vmax.f32 %v6855, 0.0
      %v6892 = vmax.f32 %v6856, 0.0
      %v6893 = vmax.f32 %v6857, 0.0
      %v6894 = vmax.f32 %v6858, 0.0
      %v6895 = vmax.f32 %v6859, 0.0
      %v6896 = vmax.f32 %v6860, 0.0
      %v6897 = vmax.f32 %v6861, 0.0
      %v6898 = vmax.f32 %v6862, 0.0
      %v6899 = vmax.f32 %v6863, 0.0
      %v6900 = vmax.f32 %v6864, 0.0
      %v6901 = vmax.f32 %v6865, 0.0
      %v6902 = vmax.f32 %v6866, 0.0
      %v6903 = vmax.f32 %v6867, 0.0
      %v6904 = vmax.f32 %v6868, 0.0
      %v6905 = vmax.f32 %v6869, 0.0
      %v6906 = vmax.f32 %v6870, 0.0
      %v6907 = vmax.f32 %v6871, 0.0
      %v6908 = vmax.f32 %v6872, 0.0
      %v6909 = vmax.f32 %v6873, 0.0
      %v6910 = vmax.f32 %v6874, 0.0
      %6911 = vst.msk [vmem:[%s224] sm:$0xff] %vm1900, %v6875
      %6912 = vst.msk [vmem:[%s224 + $0x8] sm:$0xff] %vm1900, %v6876
      %6913 = vst.msk [vmem:[%s224 + $0x10] sm:$0xff] %vm1900, %v6877
      %6914 = vst.msk [vmem:[%s224 + $0x18] sm:$0xff] %vm1900, %v6878
      %6915 = vst.msk [vmem:[%s224 + $0x20] sm:$0xff] %vm1900, %v6879
      %6916 = vst.msk [vmem:[%s224 + $0x28] sm:$0xff] %vm1900, %v6880
      %6917 = vst.msk [vmem:[%s224 + $0x30] sm:$0xff] %vm1900, %v6881
      %6918 = vst.msk [vmem:[%s224 + $0x38] sm:$0xff] %vm1900, %v6882
      %6919 = vst.msk [vmem:[%s224 + $0x40] sm:$0xff] %vm1900, %v6883
      %6920 = vst.msk [vmem:[%s224 + $0x48] sm:$0xff] %vm1900, %v6884
      %6921 = vst.msk [vmem:[%s224 + $0x50] sm:$0xff] %vm1900, %v6885
      %6922 = vst.msk [vmem:[%s224 + $0x58] sm:$0xff] %vm1900, %v6886
      %6923 = vst.msk [vmem:[%s224 + $0x60] sm:$0xff] %vm1900, %v6887
      %6924 = vst.msk [vmem:[%s224 + $0x68] sm:$0xff] %vm1900, %v6888
      %6925 = vst.msk [vmem:[%s224 + $0x70] sm:$0xff] %vm1900, %v6889
      %6926 = vst.msk [vmem:[%s224 + $0x78] sm:$0xff] %vm1900, %v6890
      %6927 = vst.msk [vmem:[%s224 + $0x80] sm:$0xff] %vm1900, %v6891
      %6928 = vst.msk [vmem:[%s224 + $0x88] sm:$0xff] %vm1900, %v6892
      %6929 = vst.msk [vmem:[%s224 + $0x90] sm:$0xff] %vm1900, %v6893
      %6930 = vst.msk [vmem:[%s224 + $0x98] sm:$0xff] %vm1900, %v6894
      %6931 = vst.msk [vmem:[%s224 + $0xa0] sm:$0xff] %vm1900, %v6895
      %6932 = vst.msk [vmem:[%s224 + $0xa8] sm:$0xff] %vm1900, %v6896
      %6933 = vst.msk [vmem:[%s224 + $0xb0] sm:$0xff] %vm1900, %v6897
      %6934 = vst.msk [vmem:[%s224 + $0xb8] sm:$0xff] %vm1900, %v6898
      %6935 = vst.msk [vmem:[%s224 + $0xc0] sm:$0xff] %vm1900, %v6899
      %6936 = vst.msk [vmem:[%s224 + $0xc8] sm:$0xff] %vm1900, %v6900
      %6937 = vst.msk [vmem:[%s224 + $0xd0] sm:$0xff] %vm1900, %v6901
      %6938 = vst.msk [vmem:[%s224 + $0xd8] sm:$0xff] %vm1900, %v6902
      %6939 = vst.msk [vmem:[%s224 + $0xe0] sm:$0xff] %vm1900, %v6903
      %6940 = vst.msk [vmem:[%s224 + $0xe8] sm:$0xff] %vm1900, %v6904
      %6941 = vst.msk [vmem:[%s224 + $0xf0] sm:$0xff] %vm1900, %v6905
      %6942 = vst.msk [vmem:[%s224 + $0xf8] sm:$0xff] %vm1900, %v6906
      %6943 = vst.msk [vmem:[%s224 + $0x100] sm:$0xff] %vm1900, %v6907
      %6944 = vst.msk [vmem:[%s224 + $0x108] sm:$0xff] %vm1900, %v6908
      %6945 = vst.msk [vmem:[%s224 + $0x110] sm:$0xff] %vm1900, %v6909
      %6946 = vst.msk [vmem:[%s224 + $0x118] sm:$0xff] %vm1900, %v6910
      %p6947 = scmp.lt.s32.totalorder %s16, 1
      %s6948 = scalar_select %p6947, %s16, 1
      %s6949 = smul.addr %s6948, 36
      %s6950 = smul.addr %s6949, 8
      %s6951 = scalar_lea.vmem %s5, %s6950
      // Predicated region
      $region41: #{tpu_custom_call.1} parent=39 // pred_check
        %p6952 = pneg %p144
      $region42: #{tpu_custom_call.1} parent=39 // pred_check_branch
        %6954 = sbr.rel (%p6952) target = $region44
      $region43: #{tpu_custom_call.1} parent=39 // pred_region
        _
      $region44: #{tpu_custom_call.1} parent=39 // pred_fallthru
        _
    $region40: #{tpu_custom_call.1} parent=5 // pred_fallthru
      _
    %p6955 = scmp.le.s32.totalorder 2, %s11
    // Predicated region
    $region45: #{tpu_custom_call.1} parent=5 // pred_check
      %p6956 = pneg %p6955
    $region46: #{tpu_custom_call.1} parent=5 // pred_check_branch
      %6958 = sbr.rel (%p6956) target = $region48
    $region47: #{tpu_custom_call.1} parent=5 // pred_region
      %s6959 = ssub.s32 %s11, 2
      // Predicated region
      $region49: #{tpu_custom_call.1} parent=47 // pred_check
        %p6960 = pneg %p150
      $region50: #{tpu_custom_call.1} parent=47 // pred_check_branch
        %6962 = sbr.rel (%p6960) target = $region52
      $region51: #{tpu_custom_call.1} parent=47 // pred_region
        %p6963 = scmp.lt.s32.totalorder %s17, 1
        %s6964 = scalar_select %p6963, %s17, 1
        %s6965 = smul.addr %s6964, 36
        %s6966 = smul.addr %s6965, 8
        %s6967 = scalar_lea.vmem %s5, %s6966
      $region52: #{tpu_custom_call.1} parent=47 // pred_fallthru
        _
    $region48: #{tpu_custom_call.1} parent=5 // pred_fallthru
      _
  $region6: #{tpu_custom_call.1} parent=0 // loop_footer
    %s15 = sadd.s32 1, %s11
  $region7: #{tpu_custom_call.1} parent=0 // loop_footer_branch
    %10 = sbr.rel target = $region3
  $region8: #{tpu_custom_call.1} parent=0 // loop_exit
    _

</llo_original>
